<compile_context>
chip_gen: v5e
topology: v5e:2x2
jax: 0.10.0
libtpu: 0.0.40
codegen_flags: <defaults>
</compile_context>

<pallas_src>
import functools
import numpy as np
import jax
import jax.numpy as jnp
from jax import lax
from jax.experimental import pallas as pl
from jax.experimental.pallas import tpu as pltpu

# ----------------------------- config ---------------------------------------
B = 2
C_IN = 3
T_FRAMES = 4
CROP = 16
PATCH = 8
TUBELET = 2
MASK_STRIDE = (1, 1, 1)                 # stride 1 -> repeat_interleave / rearrange are identities
T_P, H_P, W_P = T_FRAMES // TUBELET, CROP // PATCH, CROP // PATCH   # 2, 2, 2
N_PATCH = T_P * H_P * W_P                                           # 8
PATCH_PIX = TUBELET * PATCH * PATCH                                  # 128
PATCH_DIM = PATCH_PIX * C_IN                                         # 384
D_ENC = 32
ENC_DEPTH = 2
ENC_HEADS = 4
D_DEC = 32
DEC_DEPTH = 1
DEC_HEADS = 4
MLP_RATIO = 4
NUM_CLASSES = 10
N_VIS = 2                      # visible (kept) patches per sample
N_MASKED = N_PATCH - N_VIS     # patches to reconstruct
DATA_MEAN = (0.45, 0.45, 0.45)
DATA_STD = (0.225, 0.225, 0.225)

# ----------------------------- parameter slab layout -------------------------

def _block_entries(pfx, d):
    hid = d * MLP_RATIO
    return [
        (f"{pfx}_ln1_g", (1, d)), (f"{pfx}_ln1_b", (1, d)),
        (f"{pfx}_w_qkv", (d, 3 * d)), (f"{pfx}_b_qkv", (1, 3 * d)),
        (f"{pfx}_w_proj", (d, d)), (f"{pfx}_b_proj", (1, d)),
        (f"{pfx}_ln2_g", (1, d)), (f"{pfx}_ln2_b", (1, d)),
        (f"{pfx}_w_fc1", (d, hid)), (f"{pfx}_b_fc1", (1, hid)),
        (f"{pfx}_w_fc2", (hid, d)), (f"{pfx}_b_fc2", (1, d)),
    ]


ENC_BLOCKS = [f"enc{i}" for i in range(ENC_DEPTH)]
DEC_BLOCKS = [f"dec{i}" for i in range(DEC_DEPTH)]

SLAB_A_WIDTH = PATCH_DIM     # 384-lane slab (pixel-dim params + data statistics)
SLAB_B_WIDTH = 128           # 128-lane slab (everything else)

SLAB_A_ENTRIES = [
    ("std_row", (1, PATCH_DIM)), ("mean_row", (1, PATCH_DIM)), ("ch_row", (1, PATCH_DIM)),
    ("head_w", (D_DEC, PATCH_DIM)), ("head_b", (1, PATCH_DIM)),
]
SLAB_B_ENTRIES = (
    [("patch_w", (PATCH_DIM, D_ENC)), ("patch_b", (1, D_ENC)), ("pos_enc", (N_PATCH, D_ENC))]
    + sum([_block_entries(p, D_ENC) for p in ENC_BLOCKS], [])
    + [("enc_norm_g", (1, D_ENC)), ("enc_norm_b", (1, D_ENC)),
       ("w_e2d", (D_ENC, D_DEC)), ("w_cls", (D_ENC, NUM_CLASSES)), ("b_cls", (1, NUM_CLASSES)),
       ("mask_token", (1, D_DEC)), ("pos_dec", (N_PATCH, D_DEC))]
    + sum([_block_entries(p, D_DEC) for p in DEC_BLOCKS], [])
    + [("dec_norm_g", (1, D_DEC)), ("dec_norm_b", (1, D_DEC))]
)


def _build_layout(entries, width):
    layout, row = {}, 0
    for name, (r, c) in entries:
        assert c <= width
        layout[name] = (row, r, c)
        row += -(-r // 8) * 8           # 8-row (sublane) aligned starts
    return layout, max(row, 8)


SLAB_A_LAYOUT, SLAB_A_ROWS = _build_layout(SLAB_A_ENTRIES, SLAB_A_WIDTH)
SLAB_B_LAYOUT, SLAB_B_ROWS = _build_layout(SLAB_B_ENTRIES, SLAB_B_WIDTH)

# ----------------------------- in-kernel helpers -----------------------------

def _rd(ref, layout, name):
    r0, r, c = layout[name]
    return ref[r0:r0 + r, 0:c]          # static slice -> zero-cost view load


def _layernorm(x, g, b, eps=1e-6):
    mu = jnp.mean(x, axis=-1, keepdims=True)
    var = jnp.mean((x - mu) ** 2, axis=-1, keepdims=True)
    return (x - mu) * lax.rsqrt(var + eps) * g + b


def _onehot_from_smem(idx_ref, b, nrows, ncols):
    """(nrows, ncols) float32 selection matrix; row j == e_{idx_ref[b, j]}."""
    row = lax.broadcasted_iota(jnp.int32, (nrows, ncols), 0)
    col = lax.broadcasted_iota(jnp.int32, (nrows, ncols), 1)
    out = jnp.zeros((nrows, ncols), jnp.float32)
    for j in range(nrows):
        out = out + jnp.where((row == j) & (col == idx_ref[b, j]), 1.0, 0.0)
    return out


def _attention_block(x, rd, pfx, num_heads):
    """Pre-norm transformer block; heads stacked along sublanes (single QK^T / softmax / PV)."""
    n, d = x.shape
    dh = d // num_heads
    hn = num_heads * n
    scale = float(dh) ** -0.5

    h = _layernorm(x, rd(pfx + "_ln1_g"), rd(pfx + "_ln1_b"))
    qkv = jnp.dot(h, rd(pfx + "_w_qkv"), preferred_element_type=jnp.float32) + rd(pfx + "_b_qkv")
    q, k, v = qkv[:, :d], qkv[:, d:2 * d], qkv[:, 2 * d:]
    q_s = jnp.concatenate([q[:, i * dh:(i + 1) * dh] for i in range(num_heads)], axis=0)
    k_s = jnp.concatenate([k[:, i * dh:(i + 1) * dh] for i in range(num_heads)], axis=0)
    v_s = jnp.concatenate([v[:, i * dh:(i + 1) * dh] for i in range(num_heads)], axis=0)

    # block-diagonal (per-head) additive bias, built from iota comparisons (no HBM input)
    rid = lax.broadcasted_iota(jnp.int32, (hn, hn), 0)
    cid = lax.broadcasted_iota(jnp.int32, (hn, hn), 1)
    same = None
    for hh in range(num_heads):
        lo, hi = hh * n, (hh + 1) * n
        blk = (rid >= lo) & (rid < hi) & (cid >= lo) & (cid < hi)
        same = blk if same is None else (same | blk)
    bias = jnp.where(same, 0.0, -1e30)

    s = lax.dot_general(q_s, k_s, (((1,), (1,)), ((), ())),
                        preferred_element_type=jnp.float32) * scale + bias
    s = s - jnp.max(s, axis=-1, keepdims=True)
    e = jnp.exp(s)
    p = e * pl.reciprocal(jnp.sum(e, axis=-1, keepdims=True), approx=True)
    o_s = jnp.dot(p, v_s, preferred_element_type=jnp.float32)                 # (hn, dh)
    o = jnp.concatenate([o_s[i * n:(i + 1) * n, :] for i in range(num_heads)], axis=1)
    x = x + jnp.dot(o, rd(pfx + "_w_proj"), preferred_element_type=jnp.float32) + rd(pfx + "_b_proj")

    h2 = _layernorm(x, rd(pfx + "_ln2_g"), rd(pfx + "_ln2_b"))
    h2 = jnp.dot(h2, rd(pfx + "_w_fc1"), preferred_element_type=jnp.float32) + rd(pfx + "_b_fc1")
    # TODO(synk): PyTorch nn.GELU defaults to exact erf; tanh approximation used here
    # since erf has no guaranteed Mosaic lowering.
    h2 = jax.nn.gelu(h2, approximate=True)
    h2 = jnp.dot(h2, rd(pfx + "_w_fc2"), preferred_element_type=jnp.float32) + rd(pfx + "_b_fc2")
    return x + h2


# ----------------------------- fused forward kernel --------------------------

def _forward_kernel(vis_ref, msk_ref, patches_ref, slab_a_ref, slab_b_ref,
                    labels_ref, pred_ref, cls_ref):
    b = pl.program_id(0)
    rd_a = functools.partial(_rd, slab_a_ref, SLAB_A_LAYOUT)
    rd_b = functools.partial(_rd, slab_b_ref, SLAB_B_LAYOUT)

    x_patches = patches_ref[...]                                  # (N_PATCH, PATCH_DIM)

    # one-hot gather matrices from scalar-prefetched (SMEM) patch indices
    g_vis = _onehot_from_smem(vis_ref, b, N_VIS, N_PATCH)         # (N_VIS, N_PATCH)
    g_msk = _onehot_from_smem(msk_ref, b, N_MASKED, N_PATCH)      # (N_MASKED, N_PATCH)

    # ---- pixel targets (normlize_target=True) --------------------------------
    # un-normalize (x*std+mean), then per-(patch, channel) unbiased normalization,
    # computed directly in the (pixel-major, channel-minor) interleaved lane layout.
    unnorm = x_patches * rd_a("std_row") + rd_a("mean_row")
    ch = rd_a("ch_row")                                           # (1, PATCH_DIM) channel ids
    masks = [(ch == float(c)).astype(jnp.float32) for c in range(C_IN)]
    mean_map = jnp.zeros((N_PATCH, PATCH_DIM), jnp.float32)
    for m in masks:
        mu_c = jnp.sum(unnorm * m, axis=-1, keepdims=True) * (1.0 / PATCH_PIX)
        mean_map = mean_map + mu_c * m
    centered = unnorm - mean_map
    var_map = jnp.zeros_like(centered)
    for m in masks:
        var_c = jnp.sum((centered * m) ** 2, axis=-1, keepdims=True) * (1.0 / (PATCH_PIX - 1))
        var_map = var_map + var_c * m
    targets = centered * pl.reciprocal(jnp.sqrt(var_map) + 1e-6, approx=True)
    labels_ref[0] = jnp.dot(g_msk, targets, preferred_element_type=jnp.float32)

    # ---- encoder (visible patches only) ---------------------------------------
    # patch-embed all patches + pos embed, then keep visible rows (matches backbone:
    # x = patch_embed(x) + pos; x_vis = x[~mask]).
    tok = (jnp.dot(x_patches, rd_b("patch_w"), preferred_element_type=jnp.float32)
           + rd_b("patch_b") + rd_b("pos_enc"))
    x = jnp.dot(g_vis, tok, preferred_element_type=jnp.float32)   # (N_VIS, D_ENC)
    for pfx in ENC_BLOCKS:
        x = _attention_block(x, rd_b, pfx, ENC_HEADS)
    enc = _layernorm(x, rd_b("enc_norm_g"), rd_b("enc_norm_b"))

    # classification branch: encoder_to_cls_decoder (no CLS_DECODER cfg) == token mean
    pooled = jnp.mean(enc, axis=0, keepdims=True)                 # (1, D_ENC)
    # TODO(synk): cls_head comes from HEAD_REGISTRY (cfg not given); Linear(D_ENC, NUM_CLASSES).
    cls_ref[0] = (jnp.dot(pooled, rd_b("w_cls"), preferred_element_type=jnp.float32)
                  + rd_b("b_cls"))

    # ---- decoder ---------------------------------------------------------------
    enc_dec = jnp.dot(enc, rd_b("w_e2d"), preferred_element_type=jnp.float32)  # (N_VIS, D_DEC)
    # scatter visible tokens over a mask_token background, add decoder pos-embed
    srow = lax.broadcasted_iota(jnp.int32, (N_PATCH, N_VIS), 0)
    scol = lax.broadcasted_iota(jnp.int32, (N_PATCH, N_VIS), 1)
    scat = jnp.zeros((N_PATCH, N_VIS), jnp.float32)
    for j in range(N_VIS):
        scat = scat + jnp.where((scol == j) & (srow == vis_ref[b, j]), 1.0, 0.0)
    vis_flag = jnp.sum(scat, axis=-1, keepdims=True)              # (N_PATCH, 1)
    xd = (jnp.dot(scat, enc_dec, preferred_element_type=jnp.float32)
          + (1.0 - vis_flag) * rd_b("mask_token") + rd_b("pos_dec"))
    for pfx in DEC_BLOCKS:
        xd = _attention_block(xd, rd_b, pfx, DEC_HEADS)
    hd = _layernorm(xd, rd_b("dec_norm_g"), rd_b("dec_norm_b"))
    recon = jnp.dot(hd, rd_a("head_w"), preferred_element_type=jnp.float32) + rd_a("head_b")
    pred_ref[0] = jnp.dot(g_msk, recon, preferred_element_type=jnp.float32)


# ----------------------------- pallas_call wrapper ----------------------------

def run_forward(patches_flat, vis_idx, masked_idx, slab_a, slab_b):
    batch = patches_flat.shape[0] // N_PATCH
    grid_spec = pltpu.PrefetchScalarGridSpec(
        num_scalar_prefetch=2,
        grid=(batch,),
        in_specs=[
            pl.BlockSpec((N_PATCH, PATCH_DIM), lambda b, vis, msk: (b, 0)),
            pl.BlockSpec((SLAB_A_ROWS, SLAB_A_WIDTH), lambda b, vis, msk: (0, 0)),
            pl.BlockSpec((SLAB_B_ROWS, SLAB_B_WIDTH), lambda b, vis, msk: (0, 0)),
        ],
        out_specs=(
            pl.BlockSpec((1, N_MASKED, PATCH_DIM), lambda b, vis, msk: (b, 0, 0)),
            pl.BlockSpec((1, N_MASKED, PATCH_DIM), lambda b, vis, msk: (b, 0, 0)),
            pl.BlockSpec((1, 1, NUM_CLASSES), lambda b, vis, msk: (b, 0, 0)),
        ),
    )
    return pl.pallas_call(
        _forward_kernel,
        grid_spec=grid_spec,
        out_shape=(jax.ShapeDtypeStruct((batch, N_MASKED, PATCH_DIM), jnp.float32),
                   jax.ShapeDtypeStruct((batch, N_MASKED, PATCH_DIM), jnp.float32),
                   jax.ShapeDtypeStruct((batch, 1, NUM_CLASSES), jnp.float32)),
        compiler_params=pltpu.CompilerParams(
            dimension_semantics=("parallel",),          # per-sample work -> both TCs on v7x
            vmem_limit_bytes=32 * 1024 * 1024),
    )(vis_idx, masked_idx, patches_flat, slab_a, slab_b)


# ----------------------------- model glue -------------------------------------

def get_sinusoid_encoding_table(n_position, d_hid):
    pos = np.arange(n_position)[:, None].astype(np.float64)
    i = np.arange(d_hid)[None, :]
    angle = pos / np.power(10000.0, 2.0 * (i // 2) / d_hid)
    tbl = np.zeros((n_position, d_hid), dtype=np.float64)
    tbl[:, 0::2] = np.sin(angle[:, 0::2])
    tbl[:, 1::2] = np.cos(angle[:, 1::2])
    return jnp.asarray(tbl, dtype=jnp.float32)          # (n, d)


def patchify(video):
    """'b c (t p0) (h p1) (w p2) -> b (t h w) ((p0 p1 p2) c)' pixel-major / channel-minor."""
    b = video.shape[0]
    x = video.reshape(b, C_IN, T_P, TUBELET, H_P, PATCH, W_P, PATCH)
    x = x.transpose(0, 2, 4, 6, 3, 5, 7, 1)             # b t h w p0 p1 p2 c
    return x.reshape(b, N_PATCH, PATCH_DIM)


def indices_of(mask_bool, count):
    """Per-row ascending indices of True entries; count is static & uniform."""
    b, n = mask_bool.shape
    m = mask_bool.astype(jnp.int32)
    rank = jnp.cumsum(m, axis=1) - 1
    dest = jnp.where(mask_bool, rank, count)            # dump False entries past the end
    cols = jnp.broadcast_to(jnp.arange(n, dtype=jnp.int32), (b, n))
    out = jnp.zeros((b, count + 1), jnp.int32)
    out = out.at[jnp.arange(b)[:, None], dest].set(cols)
    return out[:, :count]


def model_forward(packed, video, mask, training=True):
    """mask: (B, T_P, H_P*W_P) bool, True = visible/kept patch (module convention)."""
    b = video.shape[0]
    mask_flat = mask.reshape(b, N_PATCH)
    # mask_stride == [1,1,1] -> repeat_interleave / stride rearranges are identities.
    vis_idx = indices_of(mask_flat, N_VIS)                              # (B, N_VIS)
    masked_idx = indices_of(jnp.logical_not(mask_flat), N_MASKED)       # (B, N_MASKED)
    patches = patchify(video).reshape(b * N_PATCH, PATCH_DIM)
    labels, preds_pixel, preds_cls = run_forward(
        patches, vis_idx, masked_idx, packed["slab_a"], packed["slab_b"])
    preds_cls = preds_cls.reshape(b, NUM_CLASSES)
    if not training:
        # TODO(synk): an eval-only kernel variant would skip the labels/decoder work.
        return {"preds_pixel": None, "labels_pixel": None, "preds_cls": preds_cls}
    return {"preds_pixel": preds_pixel, "labels_pixel": labels, "preds_cls": preds_cls}


# ----------------------------- parameter init / packing -----------------------

def init_params(key):
    keys = iter(jax.random.split(key, 64))

    def nrm(shape, scale=0.02):
        return scale * jax.random.normal(next(keys), shape, jnp.float32)

    p = {}

    def add_block(pfx, d):
        hid = d * MLP_RATIO
        p[f"{pfx}_ln1_g"] = jnp.ones((1, d), jnp.float32)
        p[f"{pfx}_ln1_b"] = jnp.zeros((1, d), jnp.float32)
        p[f"{pfx}_w_qkv"] = nrm((d, 3 * d)); p[f"{pfx}_b_qkv"] = jnp.zeros((1, 3 * d), jnp.float32)
        p[f"{pfx}_w_proj"] = nrm((d, d)); p[f"{pfx}_b_proj"] = jnp.zeros((1, d), jnp.float32)
        p[f"{pfx}_ln2_g"] = jnp.ones((1, d), jnp.float32)
        p[f"{pfx}_ln2_b"] = jnp.zeros((1, d), jnp.float32)
        p[f"{pfx}_w_fc1"] = nrm((d, hid)); p[f"{pfx}_b_fc1"] = jnp.zeros((1, hid), jnp.float32)
        p[f"{pfx}_w_fc2"] = nrm((hid, d)); p[f"{pfx}_b_fc2"] = jnp.zeros((1, d), jnp.float32)

    # data statistics (non-trainable buffers) + channel-id row, interleaved (pixel, channel)
    std = jnp.asarray(DATA_STD, jnp.float32)
    mean = jnp.asarray(DATA_MEAN, jnp.float32)
    p["std_row"] = jnp.tile(std, PATCH_PIX)[None, :]
    p["mean_row"] = jnp.tile(mean, PATCH_PIX)[None, :]
    p["ch_row"] = jnp.tile(jnp.arange(C_IN, dtype=jnp.float32), PATCH_PIX)[None, :]

    # NOTE: Conv3d patch-embed with stride==kernel is a per-patch linear on the
    # (p0 p1 p2 c) flattening used by patchify() (synthetic weights).
    p["patch_w"] = nrm((PATCH_DIM, D_ENC)); p["patch_b"] = jnp.zeros((1, D_ENC), jnp.float32)
    p["pos_enc"] = get_sinusoid_encoding_table(N_PATCH, D_ENC)
    for pfx in ENC_BLOCKS:
        add_block(pfx, D_ENC)
    p["enc_norm_g"] = jnp.ones((1, D_ENC), jnp.float32)
    p["enc_norm_b"] = jnp.zeros((1, D_ENC), jnp.float32)
    p["w_e2d"] = nrm((D_ENC, D_DEC))                                     # bias=False
    p["w_cls"] = nrm((D_ENC, NUM_CLASSES)); p["b_cls"] = jnp.zeros((1, NUM_CLASSES), jnp.float32)
    p["mask_token"] = jnp.zeros((1, D_DEC), jnp.float32)
    p["pos_dec"] = get_sinusoid_encoding_table(N_PATCH, D_DEC)
    for pfx in DEC_BLOCKS:
        add_block(pfx, D_DEC)
    p["dec_norm_g"] = jnp.ones((1, D_DEC), jnp.float32)
    p["dec_norm_b"] = jnp.zeros((1, D_DEC), jnp.float32)
    p["head_w"] = nrm((D_DEC, PATCH_DIM)); p["head_b"] = jnp.zeros((1, PATCH_DIM), jnp.float32)
    return p


def pack_params(params):
    """Offline (once) re-pack of all parameters into two lane-dense slabs (one DMA each)."""
    def pack(entries, layout, rows, width):
        slab = np.zeros((rows, width), np.float32)
        for name, (r, c) in entries:
            r0 = layout[name][0]
            slab[r0:r0 + r, :c] = np.asarray(params[name]).reshape(r, c)
        return jnp.asarray(slab)
    return {"slab_a": pack(SLAB_A_ENTRIES, SLAB_A_LAYOUT, SLAB_A_ROWS, SLAB_A_WIDTH),
            "slab_b": pack(SLAB_B_ENTRIES, SLAB_B_LAYOUT, SLAB_B_ROWS, SLAB_B_WIDTH)}


# ----------------------------- main --------------------------------------------

if __name__ == "__main__":
    key = jax.random.PRNGKey(0)
    k_video, k_mask, k_param = jax.random.split(key, 3)

    video = jax.random.normal(k_video, (B, C_IN, T_FRAMES, CROP, CROP), jnp.float32)

    # boolean mask with exactly N_VIS visible (True) patches per sample
    perm = jax.vmap(lambda k: jax.random.permutation(k, N_PATCH))(
        jax.random.split(k_mask, B))
    vis0 = perm[:, :N_VIS]
    mask_flat = jnp.zeros((B, N_PATCH), jnp.bool_).at[
        jnp.arange(B)[:, None], vis0].set(True)
    mask = mask_flat.reshape(B, T_P, H_P * W_P)        # matches cfg mask_shape layout

    params = init_params(k_param)
    packed = pack_params(params)

    fwd = jax.jit(functools.partial(model_forward, training=True))
    out = fwd(packed, video, mask)
    out = jax.tree_util.tree_map(jax.block_until_ready, out)

    assert out["preds_pixel"].shape == (B, N_MASKED, PATCH_DIM)
    assert out["labels_pixel"].shape == (B, N_MASKED, PATCH_DIM)
    assert out["preds_cls"].shape == (B, NUM_CLASSES)
    assert all(bool(jnp.all(jnp.isfinite(v))) for v in
               (out["preds_pixel"], out["labels_pixel"], out["preds_cls"]))

    print("KERNEL_OK")
</pallas_src>

<mosaic_0001>
module attributes {stable_mosaic.version = 11 : i64} {
  func.func @_forward_kernel(%arg0: i32, %arg1: memref<2x2xi32, #tpu.memory_space<smem>>, %arg2: memref<2x6xi32, #tpu.memory_space<smem>>, %arg3: memref<8x384xf32, #tpu.memory_space<vmem>>, %arg4: memref<64x384xf32, #tpu.memory_space<vmem>>, %arg5: memref<1384x128xf32, #tpu.memory_space<vmem>>, %arg6: memref<1x6x384xf32, #tpu.memory_space<vmem>>, %arg7: memref<1x6x384xf32, #tpu.memory_space<vmem>>, %arg8: memref<1x1x10xf32, #tpu.memory_space<vmem>>) attributes {dimension_semantics = [#tpu.dimension_semantics<parallel>], iteration_bounds = array<i64: 2>, scalar_prefetch = 2 : i64, scratch_operands = 0 : i64, tpu.core_type = #tpu.core_type<tc>, window_params = [{transform_indices = @transform_0, window_bounds = array<i64: 8, 384>}, {pipeline_mode = #tpu.pipeline_mode<synchronous>, transform_indices = @transform_1, window_bounds = array<i64: 64, 384>}, {pipeline_mode = #tpu.pipeline_mode<synchronous>, transform_indices = @transform_2, window_bounds = array<i64: 1384, 128>}, {transform_indices = @transform_3, window_bounds = array<i64: 1, 6, 384>}, {transform_indices = @transform_4, window_bounds = array<i64: 1, 6, 384>}, {transform_indices = @transform_5, window_bounds = array<i64: 1, 1, 10>}]} {
    %c0 = arith.constant 0 : index
    %c0_0 = arith.constant 0 : index
    %0 = vector.load %arg3[%c0, %c0_0] : memref<8x384xf32, #tpu.memory_space<vmem>>, vector<8x384xf32>
    %1 = tpu.iota {dimensions = array<i32: 0>} : vector<2x8xi32>
    %2 = tpu.iota {dimensions = array<i32: 1>} : vector<2x8xi32>
    %cst = arith.constant 0.000000e+00 : f32
    %3 = vector.broadcast %cst : f32 to vector<2x8xf32>
    %c0_i32 = arith.constant 0 : i32
    %4 = vector.broadcast %c0_i32 : i32 to vector<2x8xi32>
    %5 = arith.cmpi eq, %1, %4 : vector<2x8xi32>
    %6 = arith.index_cast %arg0 : i32 to index
    %c0_1 = arith.constant 0 : index
    %7 = memref.load %arg1[%6, %c0_1] : memref<2x2xi32, #tpu.memory_space<smem>>
    %8 = vector.broadcast %7 : i32 to vector<2x8xi32>
    %9 = arith.cmpi eq, %2, %8 : vector<2x8xi32>
    %10 = arith.andi %5, %9 : vector<2x8xi1>
    %cst_2 = arith.constant 1.000000e+00 : f32
    %cst_3 = arith.constant 0.000000e+00 : f32
    %11 = vector.broadcast %cst_2 : f32 to vector<2x8xf32>
    %12 = vector.broadcast %cst_3 : f32 to vector<2x8xf32>
    %13 = arith.select %10, %11, %12 : vector<2x8xi1>, vector<2x8xf32>
    %14 = arith.addf %3, %13 : vector<2x8xf32>
    %c1_i32 = arith.constant 1 : i32
    %15 = vector.broadcast %c1_i32 : i32 to vector<2x8xi32>
    %16 = arith.cmpi eq, %1, %15 : vector<2x8xi32>
    %17 = arith.index_cast %arg0 : i32 to index
    %c1 = arith.constant 1 : index
    %18 = memref.load %arg1[%17, %c1] : memref<2x2xi32, #tpu.memory_space<smem>>
    %19 = vector.broadcast %18 : i32 to vector<2x8xi32>
    %20 = arith.cmpi eq, %2, %19 : vector<2x8xi32>
    %21 = arith.andi %16, %20 : vector<2x8xi1>
    %cst_4 = arith.constant 1.000000e+00 : f32
    %cst_5 = arith.constant 0.000000e+00 : f32
    %22 = vector.broadcast %cst_4 : f32 to vector<2x8xf32>
    %23 = vector.broadcast %cst_5 : f32 to vector<2x8xf32>
    %24 = arith.select %21, %22, %23 : vector<2x8xi1>, vector<2x8xf32>
    %25 = arith.addf %14, %24 : vector<2x8xf32>
    %26 = tpu.iota {dimensions = array<i32: 0>} : vector<6x8xi32>
    %27 = tpu.iota {dimensions = array<i32: 1>} : vector<6x8xi32>
    %cst_6 = arith.constant 0.000000e+00 : f32
    %28 = vector.broadcast %cst_6 : f32 to vector<6x8xf32>
    %c0_i32_7 = arith.constant 0 : i32
    %29 = vector.broadcast %c0_i32_7 : i32 to vector<6x8xi32>
    %30 = arith.cmpi eq, %26, %29 : vector<6x8xi32>
    %31 = arith.index_cast %arg0 : i32 to index
    %c0_8 = arith.constant 0 : index
    %32 = memref.load %arg2[%31, %c0_8] : memref<2x6xi32, #tpu.memory_space<smem>>
    %33 = vector.broadcast %32 : i32 to vector<6x8xi32>
    %34 = arith.cmpi eq, %27, %33 : vector<6x8xi32>
    %35 = arith.andi %30, %34 : vector<6x8xi1>
    %cst_9 = arith.constant 1.000000e+00 : f32
    %cst_10 = arith.constant 0.000000e+00 : f32
    %36 = vector.broadcast %cst_9 : f32 to vector<6x8xf32>
    %37 = vector.broadcast %cst_10 : f32 to vector<6x8xf32>
    %38 = arith.select %35, %36, %37 : vector<6x8xi1>, vector<6x8xf32>
    %39 = arith.addf %28, %38 : vector<6x8xf32>
    %c1_i32_11 = arith.constant 1 : i32
    %40 = vector.broadcast %c1_i32_11 : i32 to vector<6x8xi32>
    %41 = arith.cmpi eq, %26, %40 : vector<6x8xi32>
    %42 = arith.index_cast %arg0 : i32 to index
    %c1_12 = arith.constant 1 : index
    %43 = memref.load %arg2[%42, %c1_12] : memref<2x6xi32, #tpu.memory_space<smem>>
    %44 = vector.broadcast %43 : i32 to vector<6x8xi32>
    %45 = arith.cmpi eq, %27, %44 : vector<6x8xi32>
    %46 = arith.andi %41, %45 : vector<6x8xi1>
    %cst_13 = arith.constant 1.000000e+00 : f32
    %cst_14 = arith.constant 0.000000e+00 : f32
    %47 = vector.broadcast %cst_13 : f32 to vector<6x8xf32>
    %48 = vector.broadcast %cst_14 : f32 to vector<6x8xf32>
    %49 = arith.select %46, %47, %48 : vector<6x8xi1>, vector<6x8xf32>
    %50 = arith.addf %39, %49 : vector<6x8xf32>
    %c2_i32 = arith.constant 2 : i32
    %51 = vector.broadcast %c2_i32 : i32 to vector<6x8xi32>
    %52 = arith.cmpi eq, %26, %51 : vector<6x8xi32>
    %53 = arith.index_cast %arg0 : i32 to index
    %c2 = arith.constant 2 : index
    %54 = memref.load %arg2[%53, %c2] : memref<2x6xi32, #tpu.memory_space<smem>>
    %55 = vector.broadcast %54 : i32 to vector<6x8xi32>
    %56 = arith.cmpi eq, %27, %55 : vector<6x8xi32>
    %57 = arith.andi %52, %56 : vector<6x8xi1>
    %cst_15 = arith.constant 1.000000e+00 : f32
    %cst_16 = arith.constant 0.000000e+00 : f32
    %58 = vector.broadcast %cst_15 : f32 to vector<6x8xf32>
    %59 = vector.broadcast %cst_16 : f32 to vector<6x8xf32>
    %60 = arith.select %57, %58, %59 : vector<6x8xi1>, vector<6x8xf32>
    %61 = arith.addf %50, %60 : vector<6x8xf32>
    %c3_i32 = arith.constant 3 : i32
    %62 = vector.broadcast %c3_i32 : i32 to vector<6x8xi32>
    %63 = arith.cmpi eq, %26, %62 : vector<6x8xi32>
    %64 = arith.index_cast %arg0 : i32 to index
    %c3 = arith.constant 3 : index
    %65 = memref.load %arg2[%64, %c3] : memref<2x6xi32, #tpu.memory_space<smem>>
    %66 = vector.broadcast %65 : i32 to vector<6x8xi32>
    %67 = arith.cmpi eq, %27, %66 : vector<6x8xi32>
    %68 = arith.andi %63, %67 : vector<6x8xi1>
    %cst_17 = arith.constant 1.000000e+00 : f32
    %cst_18 = arith.constant 0.000000e+00 : f32
    %69 = vector.broadcast %cst_17 : f32 to vector<6x8xf32>
    %70 = vector.broadcast %cst_18 : f32 to vector<6x8xf32>
    %71 = arith.select %68, %69, %70 : vector<6x8xi1>, vector<6x8xf32>
    %72 = arith.addf %61, %71 : vector<6x8xf32>
    %c4_i32 = arith.constant 4 : i32
    %73 = vector.broadcast %c4_i32 : i32 to vector<6x8xi32>
    %74 = arith.cmpi eq, %26, %73 : vector<6x8xi32>
    %75 = arith.index_cast %arg0 : i32 to index
    %c4 = arith.constant 4 : index
    %76 = memref.load %arg2[%75, %c4] : memref<2x6xi32, #tpu.memory_space<smem>>
    %77 = vector.broadcast %76 : i32 to vector<6x8xi32>
    %78 = arith.cmpi eq, %27, %77 : vector<6x8xi32>
    %79 = arith.andi %74, %78 : vector<6x8xi1>
    %cst_19 = arith.constant 1.000000e+00 : f32
    %cst_20 = arith.constant 0.000000e+00 : f32
    %80 = vector.broadcast %cst_19 : f32 to vector<6x8xf32>
    %81 = vector.broadcast %cst_20 : f32 to vector<6x8xf32>
    %82 = arith.select %79, %80, %81 : vector<6x8xi1>, vector<6x8xf32>
    %83 = arith.addf %72, %82 : vector<6x8xf32>
    %c5_i32 = arith.constant 5 : i32
    %84 = vector.broadcast %c5_i32 : i32 to vector<6x8xi32>
    %85 = arith.cmpi eq, %26, %84 : vector<6x8xi32>
    %86 = arith.index_cast %arg0 : i32 to index
    %c5 = arith.constant 5 : index
    %87 = memref.load %arg2[%86, %c5] : memref<2x6xi32, #tpu.memory_space<smem>>
    %88 = vector.broadcast %87 : i32 to vector<6x8xi32>
    %89 = arith.cmpi eq, %27, %88 : vector<6x8xi32>
    %90 = arith.andi %85, %89 : vector<6x8xi1>
    %cst_21 = arith.constant 1.000000e+00 : f32
    %cst_22 = arith.constant 0.000000e+00 : f32
    %91 = vector.broadcast %cst_21 : f32 to vector<6x8xf32>
    %92 = vector.broadcast %cst_22 : f32 to vector<6x8xf32>
    %93 = arith.select %90, %91, %92 : vector<6x8xi1>, vector<6x8xf32>
    %94 = arith.addf %83, %93 : vector<6x8xf32>
    %c0_23 = arith.constant 0 : index
    %c0_24 = arith.constant 0 : index
    %95 = vector.load %arg4[%c0_23, %c0_24] : memref<64x384xf32, #tpu.memory_space<vmem>>, vector<1x384xf32>
    %96 = vector.broadcast %95 : vector<1x384xf32> to vector<8x384xf32>
    %97 = arith.mulf %0, %96 : vector<8x384xf32>
    %c8 = arith.constant 8 : index
    %c0_25 = arith.constant 0 : index
    %98 = vector.load %arg4[%c8, %c0_25] : memref<64x384xf32, #tpu.memory_space<vmem>>, vector<1x384xf32>
    %99 = vector.broadcast %98 : vector<1x384xf32> to vector<8x384xf32>
    %100 = arith.addf %97, %99 : vector<8x384xf32>
    %c16 = arith.constant 16 : index
    %c0_26 = arith.constant 0 : index
    %101 = vector.load %arg4[%c16, %c0_26] : memref<64x384xf32, #tpu.memory_space<vmem>>, vector<1x384xf32>
    %cst_27 = arith.constant 0.000000e+00 : f32
    %102 = vector.broadcast %cst_27 : f32 to vector<1x384xf32>
    %103 = arith.cmpf oeq, %101, %102 : vector<1x384xf32>
    %104 = arith.extui %103 : vector<1x384xi1> to vector<1x384xi32>
    %105 = arith.sitofp %104 : vector<1x384xi32> to vector<1x384xf32>
    %cst_28 = arith.constant 1.000000e+00 : f32
    %106 = vector.broadcast %cst_28 : f32 to vector<1x384xf32>
    %107 = arith.cmpf oeq, %101, %106 : vector<1x384xf32>
    %108 = arith.extui %107 : vector<1x384xi1> to vector<1x384xi32>
    %109 = arith.sitofp %108 : vector<1x384xi32> to vector<1x384xf32>
    %cst_29 = arith.constant 2.000000e+00 : f32
    %110 = vector.broadcast %cst_29 : f32 to vector<1x384xf32>
    %111 = arith.cmpf oeq, %101, %110 : vector<1x384xf32>
    %112 = arith.extui %111 : vector<1x384xi1> to vector<1x384xi32>
    %113 = arith.sitofp %112 : vector<1x384xi32> to vector<1x384xf32>
    %cst_30 = arith.constant 0.000000e+00 : f32
    %114 = vector.broadcast %cst_30 : f32 to vector<8x384xf32>
    %115 = vector.broadcast %105 : vector<1x384xf32> to vector<8x384xf32>
    %116 = arith.mulf %100, %115 : vector<8x384xf32>
    %cst_31 = arith.constant dense<0.000000e+00> : vector<8xf32>
    %117 = vector.multi_reduction <add>, %116, %cst_31 [1] : vector<8x384xf32> to vector<8xf32>
    %118 = vector.shape_cast %117 : vector<8xf32> to vector<8x1xf32>
    %cst_32 = arith.constant 7.812500e-03 : f32
    %119 = vector.broadcast %cst_32 : f32 to vector<8x1xf32>
    %120 = arith.mulf %118, %119 : vector<8x1xf32>
    %121 = vector.broadcast %120 : vector<8x1xf32> to vector<8x384xf32>
    %122 = vector.broadcast %105 : vector<1x384xf32> to vector<8x384xf32>
    %123 = arith.mulf %121, %122 : vector<8x384xf32>
    %124 = arith.addf %114, %123 : vector<8x384xf32>
    %125 = vector.broadcast %109 : vector<1x384xf32> to vector<8x384xf32>
    %126 = arith.mulf %100, %125 : vector<8x384xf32>
    %cst_33 = arith.constant dense<0.000000e+00> : vector<8xf32>
    %127 = vector.multi_reduction <add>, %126, %cst_33 [1] : vector<8x384xf32> to vector<8xf32>
    %128 = vector.shape_cast %127 : vector<8xf32> to vector<8x1xf32>
    %cst_34 = arith.constant 7.812500e-03 : f32
    %129 = vector.broadcast %cst_34 : f32 to vector<8x1xf32>
    %130 = arith.mulf %128, %129 : vector<8x1xf32>
    %131 = vector.broadcast %130 : vector<8x1xf32> to vector<8x384xf32>
    %132 = vector.broadcast %109 : vector<1x384xf32> to vector<8x384xf32>
    %133 = arith.mulf %131, %132 : vector<8x384xf32>
    %134 = arith.addf %124, %133 : vector<8x384xf32>
    %135 = vector.broadcast %113 : vector<1x384xf32> to vector<8x384xf32>
    %136 = arith.mulf %100, %135 : vector<8x384xf32>
    %cst_35 = arith.constant dense<0.000000e+00> : vector<8xf32>
    %137 = vector.multi_reduction <add>, %136, %cst_35 [1] : vector<8x384xf32> to vector<8xf32>
    %138 = vector.shape_cast %137 : vector<8xf32> to vector<8x1xf32>
    %cst_36 = arith.constant 7.812500e-03 : f32
    %139 = vector.broadcast %cst_36 : f32 to vector<8x1xf32>
    %140 = arith.mulf %138, %139 : vector<8x1xf32>
    %141 = vector.broadcast %140 : vector<8x1xf32> to vector<8x384xf32>
    %142 = vector.broadcast %113 : vector<1x384xf32> to vector<8x384xf32>
    %143 = arith.mulf %141, %142 : vector<8x384xf32>
    %144 = arith.addf %134, %143 : vector<8x384xf32>
    %145 = arith.subf %100, %144 : vector<8x384xf32>
    %cst_37 = arith.constant 0.000000e+00 : f32
    %146 = vector.broadcast %cst_37 : f32 to vector<8x384xf32>
    %147 = vector.broadcast %105 : vector<1x384xf32> to vector<8x384xf32>
    %148 = arith.mulf %145, %147 : vector<8x384xf32>
    %149 = arith.mulf %148, %148 : vector<8x384xf32>
    %cst_38 = arith.constant dense<0.000000e+00> : vector<8xf32>
    %150 = vector.multi_reduction <add>, %149, %cst_38 [1] : vector<8x384xf32> to vector<8xf32>
    %151 = vector.shape_cast %150 : vector<8xf32> to vector<8x1xf32>
    %cst_39 = arith.constant 0.00787401571 : f32
    %152 = vector.broadcast %cst_39 : f32 to vector<8x1xf32>
    %153 = arith.mulf %151, %152 : vector<8x1xf32>
    %154 = vector.broadcast %153 : vector<8x1xf32> to vector<8x384xf32>
    %155 = vector.broadcast %105 : vector<1x384xf32> to vector<8x384xf32>
    %156 = arith.mulf %154, %155 : vector<8x384xf32>
    %157 = arith.addf %146, %156 : vector<8x384xf32>
    %158 = vector.broadcast %109 : vector<1x384xf32> to vector<8x384xf32>
    %159 = arith.mulf %145, %158 : vector<8x384xf32>
    %160 = arith.mulf %159, %159 : vector<8x384xf32>
    %cst_40 = arith.constant dense<0.000000e+00> : vector<8xf32>
    %161 = vector.multi_reduction <add>, %160, %cst_40 [1] : vector<8x384xf32> to vector<8xf32>
    %162 = vector.shape_cast %161 : vector<8xf32> to vector<8x1xf32>
    %cst_41 = arith.constant 0.00787401571 : f32
    %163 = vector.broadcast %cst_41 : f32 to vector<8x1xf32>
    %164 = arith.mulf %162, %163 : vector<8x1xf32>
    %165 = vector.broadcast %164 : vector<8x1xf32> to vector<8x384xf32>
    %166 = vector.broadcast %109 : vector<1x384xf32> to vector<8x384xf32>
    %167 = arith.mulf %165, %166 : vector<8x384xf32>
    %168 = arith.addf %157, %167 : vector<8x384xf32>
    %169 = vector.broadcast %113 : vector<1x384xf32> to vector<8x384xf32>
    %170 = arith.mulf %145, %169 : vector<8x384xf32>
    %171 = arith.mulf %170, %170 : vector<8x384xf32>
    %cst_42 = arith.constant dense<0.000000e+00> : vector<8xf32>
    %172 = vector.multi_reduction <add>, %171, %cst_42 [1] : vector<8x384xf32> to vector<8xf32>
    %173 = vector.shape_cast %172 : vector<8xf32> to vector<8x1xf32>
    %cst_43 = arith.constant 0.00787401571 : f32
    %174 = vector.broadcast %cst_43 : f32 to vector<8x1xf32>
    %175 = arith.mulf %173, %174 : vector<8x1xf32>
    %176 = vector.broadcast %175 : vector<8x1xf32> to vector<8x384xf32>
    %177 = vector.broadcast %113 : vector<1x384xf32> to vector<8x384xf32>
    %178 = arith.mulf %176, %177 : vector<8x384xf32>
    %179 = arith.addf %168, %178 : vector<8x384xf32>
    %180 = math.sqrt %179 : vector<8x384xf32>
    %cst_44 = arith.constant 9.99999997E-7 : f32
    %181 = vector.broadcast %cst_44 : f32 to vector<8x384xf32>
    %182 = arith.addf %180, %181 : vector<8x384xf32>
    %183 = tpu.reciprocal %182 {approx = true} : vector<8x384xf32> -> vector<8x384xf32>
    %184 = arith.mulf %145, %183 : vector<8x384xf32>
    %cst_45 = arith.constant dense<0.000000e+00> : vector<6x384xf32>
    %185 = tpu.matmul %94, %184, %cst_45 {dimension_numbers = #tpu.dot_dimension_numbers<[1], [0], [0], [1], [0, 0, 1, 1], [], []>} : vector<6x8xf32>, vector<8x384xf32>, vector<6x384xf32> -> vector<6x384xf32>
    %c0_46 = arith.constant 0 : index
    %c0_47 = arith.constant 0 : index
    %c0_48 = arith.constant 0 : index
    %186 = vector.load %arg6[%c0_46, %c0_47, %c0_48] : memref<1x6x384xf32, #tpu.memory_space<vmem>>, vector<1x6x384xf32>
    %187 = vector.shape_cast %186 : vector<1x6x384xf32> to vector<6x384xf32>
    %188 = vector.shape_cast %185 : vector<6x384xf32> to vector<1x6x384xf32>
    tpu.vector_store %arg6[%c0_46, %c0_47, %c0_48], %188 {strides = array<i32>} : memref<1x6x384xf32, #tpu.memory_space<vmem>>, vector<1x6x384xf32>,
    %c0_49 = arith.constant 0 : index
    %c0_50 = arith.constant 0 : index
    %189 = vector.load %arg5[%c0_49, %c0_50] : memref<1384x128xf32, #tpu.memory_space<vmem>>, vector<384x32xf32>
    %cst_51 = arith.constant dense<0.000000e+00> : vector<8x32xf32>
    %190 = tpu.matmul %0, %189, %cst_51 {dimension_numbers = #tpu.dot_dimension_numbers<[1], [0], [0], [1], [0, 0, 1, 1], [], []>} : vector<8x384xf32>, vector<384x32xf32>, vector<8x32xf32> -> vector<8x32xf32>
    %c384 = arith.constant 384 : index
    %c0_52 = arith.constant 0 : index
    %191 = vector.load %arg5[%c384, %c0_52] : memref<1384x128xf32, #tpu.memory_space<vmem>>, vector<1x32xf32>
    %192 = vector.broadcast %191 : vector<1x32xf32> to vector<8x32xf32>
    %193 = arith.addf %190, %192 : vector<8x32xf32>
    %c392 = arith.constant 392 : index
    %c0_53 = arith.constant 0 : index
    %194 = vector.load %arg5[%c392, %c0_53] : memref<1384x128xf32, #tpu.memory_space<vmem>>, vector<8x32xf32>
    %195 = arith.addf %193, %194 : vector<8x32xf32>
    %cst_54 = arith.constant dense<0.000000e+00> : vector<2x32xf32>
    %196 = tpu.matmul %25, %195, %cst_54 {dimension_numbers = #tpu.dot_dimension_numbers<[1], [0], [0], [1], [0, 0, 1, 1], [], []>} : vector<2x8xf32>, vector<8x32xf32>, vector<2x32xf32> -> vector<2x32xf32>
    %c400 = arith.constant 400 : index
    %c0_55 = arith.constant 0 : index
    %197 = vector.load %arg5[%c400, %c0_55] : memref<1384x128xf32, #tpu.memory_space<vmem>>, vector<1x32xf32>
    %c408 = arith.constant 408 : index
    %c0_56 = arith.constant 0 : index
    %198 = vector.load %arg5[%c408, %c0_56] : memref<1384x128xf32, #tpu.memory_space<vmem>>, vector<1x32xf32>
    %cst_57 = arith.constant dense<0.000000e+00> : vector<2xf32>
    %199 = vector.multi_reduction <add>, %196, %cst_57 [1] : vector<2x32xf32> to vector<2xf32>
    %200 = vector.shape_cast %199 : vector<2xf32> to vector<2x1xf32>
    %cst_58 = arith.constant 3.200000e+01 : f32
    %201 = vector.broadcast %cst_58 : f32 to vector<2x1xf32>
    %202 = arith.divf %200, %201 : vector<2x1xf32>
    %203 = vector.broadcast %202 : vector<2x1xf32> to vector<2x32xf32>
    %204 = arith.subf %196, %203 : vector<2x32xf32>
    %205 = arith.mulf %204, %204 : vector<2x32xf32>
    %cst_59 = arith.constant dense<0.000000e+00> : vector<2xf32>
    %206 = vector.multi_reduction <add>, %205, %cst_59 [1] : vector<2x32xf32> to vector<2xf32>
    %207 = vector.shape_cast %206 : vector<2xf32> to vector<2x1xf32>
    %cst_60 = arith.constant 3.200000e+01 : f32
    %208 = vector.broadcast %cst_60 : f32 to vector<2x1xf32>
    %209 = arith.divf %207, %208 : vector<2x1xf32>
    %210 = vector.broadcast %202 : vector<2x1xf32> to vector<2x32xf32>
    %211 = arith.subf %196, %210 : vector<2x32xf32>
    %cst_61 = arith.constant 9.99999997E-7 : f32
    %212 = vector.broadcast %cst_61 : f32 to vector<2x1xf32>
    %213 = arith.addf %209, %212 : vector<2x1xf32>
    %214 = math.rsqrt %213 : vector<2x1xf32>
    %215 = vector.broadcast %214 : vector<2x1xf32> to vector<2x32xf32>
    %216 = arith.mulf %211, %215 : vector<2x32xf32>
    %217 = vector.broadcast %197 : vector<1x32xf32> to vector<2x32xf32>
    %218 = arith.mulf %216, %217 : vector<2x32xf32>
    %219 = vector.broadcast %198 : vector<1x32xf32> to vector<2x32xf32>
    %220 = arith.addf %218, %219 : vector<2x32xf32>
    %c416 = arith.constant 416 : index
    %c0_62 = arith.constant 0 : index
    %221 = vector.load %arg5[%c416, %c0_62] : memref<1384x128xf32, #tpu.memory_space<vmem>>, vector<32x96xf32>
    %cst_63 = arith.constant dense<0.000000e+00> : vector<2x96xf32>
    %222 = tpu.matmul %220, %221, %cst_63 {dimension_numbers = #tpu.dot_dimension_numbers<[1], [0], [0], [1], [0, 0, 1, 1], [], []>} : vector<2x32xf32>, vector<32x96xf32>, vector<2x96xf32> -> vector<2x96xf32>
    %c448 = arith.constant 448 : index
    %c0_64 = arith.constant 0 : index
    %223 = vector.load %arg5[%c448, %c0_64] : memref<1384x128xf32, #tpu.memory_space<vmem>>, vector<1x96xf32>
    %224 = vector.broadcast %223 : vector<1x96xf32> to vector<2x96xf32>
    %225 = arith.addf %222, %224 : vector<2x96xf32>
    %226 = vector.extract_strided_slice %225 {offsets = [0, 0], sizes = [2, 32], strides = [1, 1]} : vector<2x96xf32> to vector<2x32xf32>
    %227 = vector.extract_strided_slice %225 {offsets = [0, 32], sizes = [2, 32], strides = [1, 1]} : vector<2x96xf32> to vector<2x32xf32>
    %228 = vector.extract_strided_slice %225 {offsets = [0, 64], sizes = [2, 32], strides = [1, 1]} : vector<2x96xf32> to vector<2x32xf32>
    %229 = vector.extract_strided_slice %226 {offsets = [0, 0], sizes = [2, 8], strides = [1, 1]} : vector<2x32xf32> to vector<2x8xf32>
    %230 = vector.extract_strided_slice %226 {offsets = [0, 8], sizes = [2, 8], strides = [1, 1]} : vector<2x32xf32> to vector<2x8xf32>
    %231 = vector.extract_strided_slice %226 {offsets = [0, 16], sizes = [2, 8], strides = [1, 1]} : vector<2x32xf32> to vector<2x8xf32>
    %232 = vector.extract_strided_slice %226 {offsets = [0, 24], sizes = [2, 8], strides = [1, 1]} : vector<2x32xf32> to vector<2x8xf32>
    %233 = tpu.concatenate %229, %230, %231, %232 in 0 : vector<2x8xf32>, vector<2x8xf32>, vector<2x8xf32>, vector<2x8xf32> -> vector<8x8xf32>
    %234 = vector.extract_strided_slice %227 {offsets = [0, 0], sizes = [2, 8], strides = [1, 1]} : vector<2x32xf32> to vector<2x8xf32>
    %235 = vector.extract_strided_slice %227 {offsets = [0, 8], sizes = [2, 8], strides = [1, 1]} : vector<2x32xf32> to vector<2x8xf32>
    %236 = vector.extract_strided_slice %227 {offsets = [0, 16], sizes = [2, 8], strides = [1, 1]} : vector<2x32xf32> to vector<2x8xf32>
    %237 = vector.extract_strided_slice %227 {offsets = [0, 24], sizes = [2, 8], strides = [1, 1]} : vector<2x32xf32> to vector<2x8xf32>
    %238 = tpu.concatenate %234, %235, %236, %237 in 0 : vector<2x8xf32>, vector<2x8xf32>, vector<2x8xf32>, vector<2x8xf32> -> vector<8x8xf32>
    %239 = vector.extract_strided_slice %228 {offsets = [0, 0], sizes = [2, 8], strides = [1, 1]} : vector<2x32xf32> to vector<2x8xf32>
    %240 = vector.extract_strided_slice %228 {offsets = [0, 8], sizes = [2, 8], strides = [1, 1]} : vector<2x32xf32> to vector<2x8xf32>
    %241 = vector.extract_strided_slice %228 {offsets = [0, 16], sizes = [2, 8], strides = [1, 1]} : vector<2x32xf32> to vector<2x8xf32>
    %242 = vector.extract_strided_slice %228 {offsets = [0, 24], sizes = [2, 8], strides = [1, 1]} : vector<2x32xf32> to vector<2x8xf32>
    %243 = tpu.concatenate %239, %240, %241, %242 in 0 : vector<2x8xf32>, vector<2x8xf32>, vector<2x8xf32>, vector<2x8xf32> -> vector<8x8xf32>
    %244 = tpu.iota {dimensions = array<i32: 0>} : vector<8x8xi32>
    %245 = tpu.iota {dimensions = array<i32: 1>} : vector<8x8xi32>
    %c0_i32_65 = arith.constant 0 : i32
    %246 = vector.broadcast %c0_i32_65 : i32 to vector<8x8xi32>
    %247 = arith.cmpi sge, %244, %246 : vector<8x8xi32>
    %c2_i32_66 = arith.constant 2 : i32
    %248 = vector.broadcast %c2_i32_66 : i32 to vector<8x8xi32>
    %249 = arith.cmpi slt, %244, %248 : vector<8x8xi32>
    %250 = arith.andi %247, %249 : vector<8x8xi1>
    %c0_i32_67 = arith.constant 0 : i32
    %251 = vector.broadcast %c0_i32_67 : i32 to vector<8x8xi32>
    %252 = arith.cmpi sge, %245, %251 : vector<8x8xi32>
    %253 = arith.andi %250, %252 : vector<8x8xi1>
    %c2_i32_68 = arith.constant 2 : i32
    %254 = vector.broadcast %c2_i32_68 : i32 to vector<8x8xi32>
    %255 = arith.cmpi slt, %245, %254 : vector<8x8xi32>
    %256 = arith.andi %253, %255 : vector<8x8xi1>
    %c2_i32_69 = arith.constant 2 : i32
    %257 = vector.broadcast %c2_i32_69 : i32 to vector<8x8xi32>
    %258 = arith.cmpi sge, %244, %257 : vector<8x8xi32>
    %c4_i32_70 = arith.constant 4 : i32
    %259 = vector.broadcast %c4_i32_70 : i32 to vector<8x8xi32>
    %260 = arith.cmpi slt, %244, %259 : vector<8x8xi32>
    %261 = arith.andi %258, %260 : vector<8x8xi1>
    %c2_i32_71 = arith.constant 2 : i32
    %262 = vector.broadcast %c2_i32_71 : i32 to vector<8x8xi32>
    %263 = arith.cmpi sge, %245, %262 : vector<8x8xi32>
    %264 = arith.andi %261, %263 : vector<8x8xi1>
    %c4_i32_72 = arith.constant 4 : i32
    %265 = vector.broadcast %c4_i32_72 : i32 to vector<8x8xi32>
    %266 = arith.cmpi slt, %245, %265 : vector<8x8xi32>
    %267 = arith.andi %264, %266 : vector<8x8xi1>
    %268 = arith.ori %256, %267 : vector<8x8xi1>
    %c4_i32_73 = arith.constant 4 : i32
    %269 = vector.broadcast %c4_i32_73 : i32 to vector<8x8xi32>
    %270 = arith.cmpi sge, %244, %269 : vector<8x8xi32>
    %c6_i32 = arith.constant 6 : i32
    %271 = vector.broadcast %c6_i32 : i32 to vector<8x8xi32>
    %272 = arith.cmpi slt, %244, %271 : vector<8x8xi32>
    %273 = arith.andi %270, %272 : vector<8x8xi1>
    %c4_i32_74 = arith.constant 4 : i32
    %274 = vector.broadcast %c4_i32_74 : i32 to vector<8x8xi32>
    %275 = arith.cmpi sge, %245, %274 : vector<8x8xi32>
    %276 = arith.andi %273, %275 : vector<8x8xi1>
    %c6_i32_75 = arith.constant 6 : i32
    %277 = vector.broadcast %c6_i32_75 : i32 to vector<8x8xi32>
    %278 = arith.cmpi slt, %245, %277 : vector<8x8xi32>
    %279 = arith.andi %276, %278 : vector<8x8xi1>
    %280 = arith.ori %268, %279 : vector<8x8xi1>
    %c6_i32_76 = arith.constant 6 : i32
    %281 = vector.broadcast %c6_i32_76 : i32 to vector<8x8xi32>
    %282 = arith.cmpi sge, %244, %281 : vector<8x8xi32>
    %c8_i32 = arith.constant 8 : i32
    %283 = vector.broadcast %c8_i32 : i32 to vector<8x8xi32>
    %284 = arith.cmpi slt, %244, %283 : vector<8x8xi32>
    %285 = arith.andi %282, %284 : vector<8x8xi1>
    %c6_i32_77 = arith.constant 6 : i32
    %286 = vector.broadcast %c6_i32_77 : i32 to vector<8x8xi32>
    %287 = arith.cmpi sge, %245, %286 : vector<8x8xi32>
    %288 = arith.andi %285, %287 : vector<8x8xi1>
    %c8_i32_78 = arith.constant 8 : i32
    %289 = vector.broadcast %c8_i32_78 : i32 to vector<8x8xi32>
    %290 = arith.cmpi slt, %245, %289 : vector<8x8xi32>
    %291 = arith.andi %288, %290 : vector<8x8xi1>
    %292 = arith.ori %280, %291 : vector<8x8xi1>
    %cst_79 = arith.constant 0.000000e+00 : f32
    %cst_80 = arith.constant -1.000000e+30 : f32
    %293 = vector.broadcast %cst_79 : f32 to vector<8x8xf32>
    %294 = vector.broadcast %cst_80 : f32 to vector<8x8xf32>
    %295 = arith.select %292, %293, %294 : vector<8x8xi1>, vector<8x8xf32>
    %cst_81 = arith.constant dense<0.000000e+00> : vector<8x8xf32>
    %296 = tpu.matmul %233, %238, %cst_81 {dimension_numbers = #tpu.dot_dimension_numbers<[1], [1], [0], [0], [0, 0, 1, 0], [], []>} : vector<8x8xf32>, vector<8x8xf32>, vector<8x8xf32> -> vector<8x8xf32>
    %cst_82 = arith.constant 0.353553385 : f32
    %297 = vector.broadcast %cst_82 : f32 to vector<8x8xf32>
    %298 = arith.mulf %296, %297 : vector<8x8xf32>
    %299 = arith.addf %298, %295 : vector<8x8xf32>
    %cst_83 = arith.constant dense<0xFF800000> : vector<8xf32>
    %300 = vector.multi_reduction <maximumf>, %299, %cst_83 [1] : vector<8x8xf32> to vector<8xf32>
    %301 = vector.shape_cast %300 : vector<8xf32> to vector<8x1xf32>
    %302 = vector.broadcast %301 : vector<8x1xf32> to vector<8x8xf32>
    %303 = arith.subf %299, %302 : vector<8x8xf32>
    %304 = math.exp %303 : vector<8x8xf32>
    %cst_84 = arith.constant dense<0.000000e+00> : vector<8xf32>
    %305 = vector.multi_reduction <add>, %304, %cst_84 [1] : vector<8x8xf32> to vector<8xf32>
    %306 = vector.shape_cast %305 : vector<8xf32> to vector<8x1xf32>
    %307 = tpu.reciprocal %306 {approx = true} : vector<8x1xf32> -> vector<8x1xf32>
    %308 = vector.broadcast %307 : vector<8x1xf32> to vector<8x8xf32>
    %309 = arith.mulf %304, %308 : vector<8x8xf32>
    %cst_85 = arith.constant dense<0.000000e+00> : vector<8x8xf32>
    %310 = tpu.matmul %309, %243, %cst_85 {dimension_numbers = #tpu.dot_dimension_numbers<[1], [0], [0], [1], [0, 0, 1, 1], [], []>} : vector<8x8xf32>, vector<8x8xf32>, vector<8x8xf32> -> vector<8x8xf32>
    %311 = vector.extract_strided_slice %310 {offsets = [0, 0], sizes = [2, 8], strides = [1, 1]} : vector<8x8xf32> to vector<2x8xf32>
    %312 = vector.extract_strided_slice %310 {offsets = [2, 0], sizes = [2, 8], strides = [1, 1]} : vector<8x8xf32> to vector<2x8xf32>
    %313 = vector.extract_strided_slice %310 {offsets = [4, 0], sizes = [2, 8], strides = [1, 1]} : vector<8x8xf32> to vector<2x8xf32>
    %314 = vector.extract_strided_slice %310 {offsets = [6, 0], sizes = [2, 8], strides = [1, 1]} : vector<8x8xf32> to vector<2x8xf32>
    %315 = tpu.concatenate %311, %312, %313, %314 in 1 : vector<2x8xf32>, vector<2x8xf32>, vector<2x8xf32>, vector<2x8xf32> -> vector<2x32xf32>
    %c456 = arith.constant 456 : index
    %c0_86 = arith.constant 0 : index
    %316 = vector.load %arg5[%c456, %c0_86] : memref<1384x128xf32, #tpu.memory_space<vmem>>, vector<32x32xf32>
    %cst_87 = arith.constant dense<0.000000e+00> : vector<2x32xf32>
    %317 = tpu.matmul %315, %316, %cst_87 {dimension_numbers = #tpu.dot_dimension_numbers<[1], [0], [0], [1], [0, 0, 1, 1], [], []>} : vector<2x32xf32>, vector<32x32xf32>, vector<2x32xf32> -> vector<2x32xf32>
    %318 = arith.addf %196, %317 : vector<2x32xf32>
    %c488 = arith.constant 488 : index
    %c0_88 = arith.constant 0 : index
    %319 = vector.load %arg5[%c488, %c0_88] : memref<1384x128xf32, #tpu.memory_space<vmem>>, vector<1x32xf32>
    %320 = vector.broadcast %319 : vector<1x32xf32> to vector<2x32xf32>
    %321 = arith.addf %318, %320 : vector<2x32xf32>
    %c496 = arith.constant 496 : index
    %c0_89 = arith.constant 0 : index
    %322 = vector.load %arg5[%c496, %c0_89] : memref<1384x128xf32, #tpu.memory_space<vmem>>, vector<1x32xf32>
    %c504 = arith.constant 504 : index
    %c0_90 = arith.constant 0 : index
    %323 = vector.load %arg5[%c504, %c0_90] : memref<1384x128xf32, #tpu.memory_space<vmem>>, vector<1x32xf32>
    %cst_91 = arith.constant dense<0.000000e+00> : vector<2xf32>
    %324 = vector.multi_reduction <add>, %321, %cst_91 [1] : vector<2x32xf32> to vector<2xf32>
    %325 = vector.shape_cast %324 : vector<2xf32> to vector<2x1xf32>
    %cst_92 = arith.constant 3.200000e+01 : f32
    %326 = vector.broadcast %cst_92 : f32 to vector<2x1xf32>
    %327 = arith.divf %325, %326 : vector<2x1xf32>
    %328 = vector.broadcast %327 : vector<2x1xf32> to vector<2x32xf32>
    %329 = arith.subf %321, %328 : vector<2x32xf32>
    %330 = arith.mulf %329, %329 : vector<2x32xf32>
    %cst_93 = arith.constant dense<0.000000e+00> : vector<2xf32>
    %331 = vector.multi_reduction <add>, %330, %cst_93 [1] : vector<2x32xf32> to vector<2xf32>
    %332 = vector.shape_cast %331 : vector<2xf32> to vector<2x1xf32>
    %cst_94 = arith.constant 3.200000e+01 : f32
    %333 = vector.broadcast %cst_94 : f32 to vector<2x1xf32>
    %334 = arith.divf %332, %333 : vector<2x1xf32>
    %335 = vector.broadcast %327 : vector<2x1xf32> to vector<2x32xf32>
    %336 = arith.subf %321, %335 : vector<2x32xf32>
    %cst_95 = arith.constant 9.99999997E-7 : f32
    %337 = vector.broadcast %cst_95 : f32 to vector<2x1xf32>
    %338 = arith.addf %334, %337 : vector<2x1xf32>
    %339 = math.rsqrt %338 : vector<2x1xf32>
    %340 = vector.broadcast %339 : vector<2x1xf32> to vector<2x32xf32>
    %341 = arith.mulf %336, %340 : vector<2x32xf32>
    %342 = vector.broadcast %322 : vector<1x32xf32> to vector<2x32xf32>
    %343 = arith.mulf %341, %342 : vector<2x32xf32>
    %344 = vector.broadcast %323 : vector<1x32xf32> to vector<2x32xf32>
    %345 = arith.addf %343, %344 : vector<2x32xf32>
    %c512 = arith.constant 512 : index
    %c0_96 = arith.constant 0 : index
    %346 = vector.load %arg5[%c512, %c0_96] : memref<1384x128xf32, #tpu.memory_space<vmem>>, vector<32x128xf32>
    %cst_97 = arith.constant dense<0.000000e+00> : vector<2x128xf32>
    %347 = tpu.matmul %345, %346, %cst_97 {dimension_numbers = #tpu.dot_dimension_numbers<[1], [0], [0], [1], [0, 0, 1, 1], [], []>} : vector<2x32xf32>, vector<32x128xf32>, vector<2x128xf32> -> vector<2x128xf32>
    %c544 = arith.constant 544 : index
    %c0_98 = arith.constant 0 : index
    %348 = vector.load %arg5[%c544, %c0_98] : memref<1384x128xf32, #tpu.memory_space<vmem>>, vector<1x128xf32>
    %349 = vector.broadcast %348 : vector<1x128xf32> to vector<2x128xf32>
    %350 = arith.addf %347, %349 : vector<2x128xf32>
    %351 = arith.mulf %350, %350 : vector<2x128xf32>
    %352 = arith.mulf %350, %351 : vector<2x128xf32>
    %cst_99 = arith.constant 4.471500e-02 : f32
    %353 = vector.broadcast %cst_99 : f32 to vector<2x128xf32>
    %354 = arith.mulf %353, %352 : vector<2x128xf32>
    %355 = arith.addf %350, %354 : vector<2x128xf32>
    %cst_100 = arith.constant 0.797884583 : f32
    %356 = vector.broadcast %cst_100 : f32 to vector<2x128xf32>
    %357 = arith.mulf %356, %355 : vector<2x128xf32>
    %358 = math.tanh %357 : vector<2x128xf32>
    %cst_101 = arith.constant 1.000000e+00 : f32
    %359 = vector.broadcast %cst_101 : f32 to vector<2x128xf32>
    %360 = arith.addf %359, %358 : vector<2x128xf32>
    %cst_102 = arith.constant 5.000000e-01 : f32
    %361 = vector.broadcast %cst_102 : f32 to vector<2x128xf32>
    %362 = arith.mulf %361, %360 : vector<2x128xf32>
    %363 = arith.mulf %350, %362 : vector<2x128xf32>
    %c552 = arith.constant 552 : index
    %c0_103 = arith.constant 0 : index
    %364 = vector.load %arg5[%c552, %c0_103] : memref<1384x128xf32, #tpu.memory_space<vmem>>, vector<128x32xf32>
    %cst_104 = arith.constant dense<0.000000e+00> : vector<2x32xf32>
    %365 = tpu.matmul %363, %364, %cst_104 {dimension_numbers = #tpu.dot_dimension_numbers<[1], [0], [0], [1], [0, 0, 1, 1], [], []>} : vector<2x128xf32>, vector<128x32xf32>, vector<2x32xf32> -> vector<2x32xf32>
    %c680 = arith.constant 680 : index
    %c0_105 = arith.constant 0 : index
    %366 = vector.load %arg5[%c680, %c0_105] : memref<1384x128xf32, #tpu.memory_space<vmem>>, vector<1x32xf32>
    %367 = vector.broadcast %366 : vector<1x32xf32> to vector<2x32xf32>
    %368 = arith.addf %365, %367 : vector<2x32xf32>
    %369 = arith.addf %321, %368 : vector<2x32xf32>
    %c688 = arith.constant 688 : index
    %c0_106 = arith.constant 0 : index
    %370 = vector.load %arg5[%c688, %c0_106] : memref<1384x128xf32, #tpu.memory_space<vmem>>, vector<1x32xf32>
    %c696 = arith.constant 696 : index
    %c0_107 = arith.constant 0 : index
    %371 = vector.load %arg5[%c696, %c0_107] : memref<1384x128xf32, #tpu.memory_space<vmem>>, vector<1x32xf32>
    %cst_108 = arith.constant dense<0.000000e+00> : vector<2xf32>
    %372 = vector.multi_reduction <add>, %369, %cst_108 [1] : vector<2x32xf32> to vector<2xf32>
    %373 = vector.shape_cast %372 : vector<2xf32> to vector<2x1xf32>
    %cst_109 = arith.constant 3.200000e+01 : f32
    %374 = vector.broadcast %cst_109 : f32 to vector<2x1xf32>
    %375 = arith.divf %373, %374 : vector<2x1xf32>
    %376 = vector.broadcast %375 : vector<2x1xf32> to vector<2x32xf32>
    %377 = arith.subf %369, %376 : vector<2x32xf32>
    %378 = arith.mulf %377, %377 : vector<2x32xf32>
    %cst_110 = arith.constant dense<0.000000e+00> : vector<2xf32>
    %379 = vector.multi_reduction <add>, %378, %cst_110 [1] : vector<2x32xf32> to vector<2xf32>
    %380 = vector.shape_cast %379 : vector<2xf32> to vector<2x1xf32>
    %cst_111 = arith.constant 3.200000e+01 : f32
    %381 = vector.broadcast %cst_111 : f32 to vector<2x1xf32>
    %382 = arith.divf %380, %381 : vector<2x1xf32>
    %383 = vector.broadcast %375 : vector<2x1xf32> to vector<2x32xf32>
    %384 = arith.subf %369, %383 : vector<2x32xf32>
    %cst_112 = arith.constant 9.99999997E-7 : f32
    %385 = vector.broadcast %cst_112 : f32 to vector<2x1xf32>
    %386 = arith.addf %382, %385 : vector<2x1xf32>
    %387 = math.rsqrt %386 : vector<2x1xf32>
    %388 = vector.broadcast %387 : vector<2x1xf32> to vector<2x32xf32>
    %389 = arith.mulf %384, %388 : vector<2x32xf32>
    %390 = vector.broadcast %370 : vector<1x32xf32> to vector<2x32xf32>
    %391 = arith.mulf %389, %390 : vector<2x32xf32>
    %392 = vector.broadcast %371 : vector<1x32xf32> to vector<2x32xf32>
    %393 = arith.addf %391, %392 : vector<2x32xf32>
    %c704 = arith.constant 704 : index
    %c0_113 = arith.constant 0 : index
    %394 = vector.load %arg5[%c704, %c0_113] : memref<1384x128xf32, #tpu.memory_space<vmem>>, vector<32x96xf32>
    %cst_114 = arith.constant dense<0.000000e+00> : vector<2x96xf32>
    %395 = tpu.matmul %393, %394, %cst_114 {dimension_numbers = #tpu.dot_dimension_numbers<[1], [0], [0], [1], [0, 0, 1, 1], [], []>} : vector<2x32xf32>, vector<32x96xf32>, vector<2x96xf32> -> vector<2x96xf32>
    %c736 = arith.constant 736 : index
    %c0_115 = arith.constant 0 : index
    %396 = vector.load %arg5[%c736, %c0_115] : memref<1384x128xf32, #tpu.memory_space<vmem>>, vector<1x96xf32>
    %397 = vector.broadcast %396 : vector<1x96xf32> to vector<2x96xf32>
    %398 = arith.addf %395, %397 : vector<2x96xf32>
    %399 = vector.extract_strided_slice %398 {offsets = [0, 0], sizes = [2, 32], strides = [1, 1]} : vector<2x96xf32> to vector<2x32xf32>
    %400 = vector.extract_strided_slice %398 {offsets = [0, 32], sizes = [2, 32], strides = [1, 1]} : vector<2x96xf32> to vector<2x32xf32>
    %401 = vector.extract_strided_slice %398 {offsets = [0, 64], sizes = [2, 32], strides = [1, 1]} : vector<2x96xf32> to vector<2x32xf32>
    %402 = vector.extract_strided_slice %399 {offsets = [0, 0], sizes = [2, 8], strides = [1, 1]} : vector<2x32xf32> to vector<2x8xf32>
    %403 = vector.extract_strided_slice %399 {offsets = [0, 8], sizes = [2, 8], strides = [1, 1]} : vector<2x32xf32> to vector<2x8xf32>
    %404 = vector.extract_strided_slice %399 {offsets = [0, 16], sizes = [2, 8], strides = [1, 1]} : vector<2x32xf32> to vector<2x8xf32>
    %405 = vector.extract_strided_slice %399 {offsets = [0, 24], sizes = [2, 8], strides = [1, 1]} : vector<2x32xf32> to vector<2x8xf32>
    %406 = tpu.concatenate %402, %403, %404, %405 in 0 : vector<2x8xf32>, vector<2x8xf32>, vector<2x8xf32>, vector<2x8xf32> -> vector<8x8xf32>
    %407 = vector.extract_strided_slice %400 {offsets = [0, 0], sizes = [2, 8], strides = [1, 1]} : vector<2x32xf32> to vector<2x8xf32>
    %408 = vector.extract_strided_slice %400 {offsets = [0, 8], sizes = [2, 8], strides = [1, 1]} : vector<2x32xf32> to vector<2x8xf32>
    %409 = vector.extract_strided_slice %400 {offsets = [0, 16], sizes = [2, 8], strides = [1, 1]} : vector<2x32xf32> to vector<2x8xf32>
    %410 = vector.extract_strided_slice %400 {offsets = [0, 24], sizes = [2, 8], strides = [1, 1]} : vector<2x32xf32> to vector<2x8xf32>
    %411 = tpu.concatenate %407, %408, %409, %410 in 0 : vector<2x8xf32>, vector<2x8xf32>, vector<2x8xf32>, vector<2x8xf32> -> vector<8x8xf32>
    %412 = vector.extract_strided_slice %401 {offsets = [0, 0], sizes = [2, 8], strides = [1, 1]} : vector<2x32xf32> to vector<2x8xf32>
    %413 = vector.extract_strided_slice %401 {offsets = [0, 8], sizes = [2, 8], strides = [1, 1]} : vector<2x32xf32> to vector<2x8xf32>
    %414 = vector.extract_strided_slice %401 {offsets = [0, 16], sizes = [2, 8], strides = [1, 1]} : vector<2x32xf32> to vector<2x8xf32>
    %415 = vector.extract_strided_slice %401 {offsets = [0, 24], sizes = [2, 8], strides = [1, 1]} : vector<2x32xf32> to vector<2x8xf32>
    %416 = tpu.concatenate %412, %413, %414, %415 in 0 : vector<2x8xf32>, vector<2x8xf32>, vector<2x8xf32>, vector<2x8xf32> -> vector<8x8xf32>
    %417 = tpu.iota {dimensions = array<i32: 0>} : vector<8x8xi32>
    %418 = tpu.iota {dimensions = array<i32: 1>} : vector<8x8xi32>
    %c0_i32_116 = arith.constant 0 : i32
    %419 = vector.broadcast %c0_i32_116 : i32 to vector<8x8xi32>
    %420 = arith.cmpi sge, %417, %419 : vector<8x8xi32>
    %c2_i32_117 = arith.constant 2 : i32
    %421 = vector.broadcast %c2_i32_117 : i32 to vector<8x8xi32>
    %422 = arith.cmpi slt, %417, %421 : vector<8x8xi32>
    %423 = arith.andi %420, %422 : vector<8x8xi1>
    %c0_i32_118 = arith.constant 0 : i32
    %424 = vector.broadcast %c0_i32_118 : i32 to vector<8x8xi32>
    %425 = arith.cmpi sge, %418, %424 : vector<8x8xi32>
    %426 = arith.andi %423, %425 : vector<8x8xi1>
    %c2_i32_119 = arith.constant 2 : i32
    %427 = vector.broadcast %c2_i32_119 : i32 to vector<8x8xi32>
    %428 = arith.cmpi slt, %418, %427 : vector<8x8xi32>
    %429 = arith.andi %426, %428 : vector<8x8xi1>
    %c2_i32_120 = arith.constant 2 : i32
    %430 = vector.broadcast %c2_i32_120 : i32 to vector<8x8xi32>
    %431 = arith.cmpi sge, %417, %430 : vector<8x8xi32>
    %c4_i32_121 = arith.constant 4 : i32
    %432 = vector.broadcast %c4_i32_121 : i32 to vector<8x8xi32>
    %433 = arith.cmpi slt, %417, %432 : vector<8x8xi32>
    %434 = arith.andi %431, %433 : vector<8x8xi1>
    %c2_i32_122 = arith.constant 2 : i32
    %435 = vector.broadcast %c2_i32_122 : i32 to vector<8x8xi32>
    %436 = arith.cmpi sge, %418, %435 : vector<8x8xi32>
    %437 = arith.andi %434, %436 : vector<8x8xi1>
    %c4_i32_123 = arith.constant 4 : i32
    %438 = vector.broadcast %c4_i32_123 : i32 to vector<8x8xi32>
    %439 = arith.cmpi slt, %418, %438 : vector<8x8xi32>
    %440 = arith.andi %437, %439 : vector<8x8xi1>
    %441 = arith.ori %429, %440 : vector<8x8xi1>
    %c4_i32_124 = arith.constant 4 : i32
    %442 = vector.broadcast %c4_i32_124 : i32 to vector<8x8xi32>
    %443 = arith.cmpi sge, %417, %442 : vector<8x8xi32>
    %c6_i32_125 = arith.constant 6 : i32
    %444 = vector.broadcast %c6_i32_125 : i32 to vector<8x8xi32>
    %445 = arith.cmpi slt, %417, %444 : vector<8x8xi32>
    %446 = arith.andi %443, %445 : vector<8x8xi1>
    %c4_i32_126 = arith.constant 4 : i32
    %447 = vector.broadcast %c4_i32_126 : i32 to vector<8x8xi32>
    %448 = arith.cmpi sge, %418, %447 : vector<8x8xi32>
    %449 = arith.andi %446, %448 : vector<8x8xi1>
    %c6_i32_127 = arith.constant 6 : i32
    %450 = vector.broadcast %c6_i32_127 : i32 to vector<8x8xi32>
    %451 = arith.cmpi slt, %418, %450 : vector<8x8xi32>
    %452 = arith.andi %449, %451 : vector<8x8xi1>
    %453 = arith.ori %441, %452 : vector<8x8xi1>
    %c6_i32_128 = arith.constant 6 : i32
    %454 = vector.broadcast %c6_i32_128 : i32 to vector<8x8xi32>
    %455 = arith.cmpi sge, %417, %454 : vector<8x8xi32>
    %c8_i32_129 = arith.constant 8 : i32
    %456 = vector.broadcast %c8_i32_129 : i32 to vector<8x8xi32>
    %457 = arith.cmpi slt, %417, %456 : vector<8x8xi32>
    %458 = arith.andi %455, %457 : vector<8x8xi1>
    %c6_i32_130 = arith.constant 6 : i32
    %459 = vector.broadcast %c6_i32_130 : i32 to vector<8x8xi32>
    %460 = arith.cmpi sge, %418, %459 : vector<8x8xi32>
    %461 = arith.andi %458, %460 : vector<8x8xi1>
    %c8_i32_131 = arith.constant 8 : i32
    %462 = vector.broadcast %c8_i32_131 : i32 to vector<8x8xi32>
    %463 = arith.cmpi slt, %418, %462 : vector<8x8xi32>
    %464 = arith.andi %461, %463 : vector<8x8xi1>
    %465 = arith.ori %453, %464 : vector<8x8xi1>
    %cst_132 = arith.constant 0.000000e+00 : f32
    %cst_133 = arith.constant -1.000000e+30 : f32
    %466 = vector.broadcast %cst_132 : f32 to vector<8x8xf32>
    %467 = vector.broadcast %cst_133 : f32 to vector<8x8xf32>
    %468 = arith.select %465, %466, %467 : vector<8x8xi1>, vector<8x8xf32>
    %cst_134 = arith.constant dense<0.000000e+00> : vector<8x8xf32>
    %469 = tpu.matmul %406, %411, %cst_134 {dimension_numbers = #tpu.dot_dimension_numbers<[1], [1], [0], [0], [0, 0, 1, 0], [], []>} : vector<8x8xf32>, vector<8x8xf32>, vector<8x8xf32> -> vector<8x8xf32>
    %cst_135 = arith.constant 0.353553385 : f32
    %470 = vector.broadcast %cst_135 : f32 to vector<8x8xf32>
    %471 = arith.mulf %469, %470 : vector<8x8xf32>
    %472 = arith.addf %471, %468 : vector<8x8xf32>
    %cst_136 = arith.constant dense<0xFF800000> : vector<8xf32>
    %473 = vector.multi_reduction <maximumf>, %472, %cst_136 [1] : vector<8x8xf32> to vector<8xf32>
    %474 = vector.shape_cast %473 : vector<8xf32> to vector<8x1xf32>
    %475 = vector.broadcast %474 : vector<8x1xf32> to vector<8x8xf32>
    %476 = arith.subf %472, %475 : vector<8x8xf32>
    %477 = math.exp %476 : vector<8x8xf32>
    %cst_137 = arith.constant dense<0.000000e+00> : vector<8xf32>
    %478 = vector.multi_reduction <add>, %477, %cst_137 [1] : vector<8x8xf32> to vector<8xf32>
    %479 = vector.shape_cast %478 : vector<8xf32> to vector<8x1xf32>
    %480 = tpu.reciprocal %479 {approx = true} : vector<8x1xf32> -> vector<8x1xf32>
    %481 = vector.broadcast %480 : vector<8x1xf32> to vector<8x8xf32>
    %482 = arith.mulf %477, %481 : vector<8x8xf32>
    %cst_138 = arith.constant dense<0.000000e+00> : vector<8x8xf32>
    %483 = tpu.matmul %482, %416, %cst_138 {dimension_numbers = #tpu.dot_dimension_numbers<[1], [0], [0], [1], [0, 0, 1, 1], [], []>} : vector<8x8xf32>, vector<8x8xf32>, vector<8x8xf32> -> vector<8x8xf32>
    %484 = vector.extract_strided_slice %483 {offsets = [0, 0], sizes = [2, 8], strides = [1, 1]} : vector<8x8xf32> to vector<2x8xf32>
    %485 = vector.extract_strided_slice %483 {offsets = [2, 0], sizes = [2, 8], strides = [1, 1]} : vector<8x8xf32> to vector<2x8xf32>
    %486 = vector.extract_strided_slice %483 {offsets = [4, 0], sizes = [2, 8], strides = [1, 1]} : vector<8x8xf32> to vector<2x8xf32>
    %487 = vector.extract_strided_slice %483 {offsets = [6, 0], sizes = [2, 8], strides = [1, 1]} : vector<8x8xf32> to vector<2x8xf32>
    %488 = tpu.concatenate %484, %485, %486, %487 in 1 : vector<2x8xf32>, vector<2x8xf32>, vector<2x8xf32>, vector<2x8xf32> -> vector<2x32xf32>
    %c744 = arith.constant 744 : index
    %c0_139 = arith.constant 0 : index
    %489 = vector.load %arg5[%c744, %c0_139] : memref<1384x128xf32, #tpu.memory_space<vmem>>, vector<32x32xf32>
    %cst_140 = arith.constant dense<0.000000e+00> : vector<2x32xf32>
    %490 = tpu.matmul %488, %489, %cst_140 {dimension_numbers = #tpu.dot_dimension_numbers<[1], [0], [0], [1], [0, 0, 1, 1], [], []>} : vector<2x32xf32>, vector<32x32xf32>, vector<2x32xf32> -> vector<2x32xf32>
    %491 = arith.addf %369, %490 : vector<2x32xf32>
    %c776 = arith.constant 776 : index
    %c0_141 = arith.constant 0 : index
    %492 = vector.load %arg5[%c776, %c0_141] : memref<1384x128xf32, #tpu.memory_space<vmem>>, vector<1x32xf32>
    %493 = vector.broadcast %492 : vector<1x32xf32> to vector<2x32xf32>
    %494 = arith.addf %491, %493 : vector<2x32xf32>
    %c784 = arith.constant 784 : index
    %c0_142 = arith.constant 0 : index
    %495 = vector.load %arg5[%c784, %c0_142] : memref<1384x128xf32, #tpu.memory_space<vmem>>, vector<1x32xf32>
    %c792 = arith.constant 792 : index
    %c0_143 = arith.constant 0 : index
    %496 = vector.load %arg5[%c792, %c0_143] : memref<1384x128xf32, #tpu.memory_space<vmem>>, vector<1x32xf32>
    %cst_144 = arith.constant dense<0.000000e+00> : vector<2xf32>
    %497 = vector.multi_reduction <add>, %494, %cst_144 [1] : vector<2x32xf32> to vector<2xf32>
    %498 = vector.shape_cast %497 : vector<2xf32> to vector<2x1xf32>
    %cst_145 = arith.constant 3.200000e+01 : f32
    %499 = vector.broadcast %cst_145 : f32 to vector<2x1xf32>
    %500 = arith.divf %498, %499 : vector<2x1xf32>
    %501 = vector.broadcast %500 : vector<2x1xf32> to vector<2x32xf32>
    %502 = arith.subf %494, %501 : vector<2x32xf32>
    %503 = arith.mulf %502, %502 : vector<2x32xf32>
    %cst_146 = arith.constant dense<0.000000e+00> : vector<2xf32>
    %504 = vector.multi_reduction <add>, %503, %cst_146 [1] : vector<2x32xf32> to vector<2xf32>
    %505 = vector.shape_cast %504 : vector<2xf32> to vector<2x1xf32>
    %cst_147 = arith.constant 3.200000e+01 : f32
    %506 = vector.broadcast %cst_147 : f32 to vector<2x1xf32>
    %507 = arith.divf %505, %506 : vector<2x1xf32>
    %508 = vector.broadcast %500 : vector<2x1xf32> to vector<2x32xf32>
    %509 = arith.subf %494, %508 : vector<2x32xf32>
    %cst_148 = arith.constant 9.99999997E-7 : f32
    %510 = vector.broadcast %cst_148 : f32 to vector<2x1xf32>
    %511 = arith.addf %507, %510 : vector<2x1xf32>
    %512 = math.rsqrt %511 : vector<2x1xf32>
    %513 = vector.broadcast %512 : vector<2x1xf32> to vector<2x32xf32>
    %514 = arith.mulf %509, %513 : vector<2x32xf32>
    %515 = vector.broadcast %495 : vector<1x32xf32> to vector<2x32xf32>
    %516 = arith.mulf %514, %515 : vector<2x32xf32>
    %517 = vector.broadcast %496 : vector<1x32xf32> to vector<2x32xf32>
    %518 = arith.addf %516, %517 : vector<2x32xf32>
    %c800 = arith.constant 800 : index
    %c0_149 = arith.constant 0 : index
    %519 = vector.load %arg5[%c800, %c0_149] : memref<1384x128xf32, #tpu.memory_space<vmem>>, vector<32x128xf32>
    %cst_150 = arith.constant dense<0.000000e+00> : vector<2x128xf32>
    %520 = tpu.matmul %518, %519, %cst_150 {dimension_numbers = #tpu.dot_dimension_numbers<[1], [0], [0], [1], [0, 0, 1, 1], [], []>} : vector<2x32xf32>, vector<32x128xf32>, vector<2x128xf32> -> vector<2x128xf32>
    %c832 = arith.constant 832 : index
    %c0_151 = arith.constant 0 : index
    %521 = vector.load %arg5[%c832, %c0_151] : memref<1384x128xf32, #tpu.memory_space<vmem>>, vector<1x128xf32>
    %522 = vector.broadcast %521 : vector<1x128xf32> to vector<2x128xf32>
    %523 = arith.addf %520, %522 : vector<2x128xf32>
    %524 = arith.mulf %523, %523 : vector<2x128xf32>
    %525 = arith.mulf %523, %524 : vector<2x128xf32>
    %cst_152 = arith.constant 4.471500e-02 : f32
    %526 = vector.broadcast %cst_152 : f32 to vector<2x128xf32>
    %527 = arith.mulf %526, %525 : vector<2x128xf32>
    %528 = arith.addf %523, %527 : vector<2x128xf32>
    %cst_153 = arith.constant 0.797884583 : f32
    %529 = vector.broadcast %cst_153 : f32 to vector<2x128xf32>
    %530 = arith.mulf %529, %528 : vector<2x128xf32>
    %531 = math.tanh %530 : vector<2x128xf32>
    %cst_154 = arith.constant 1.000000e+00 : f32
    %532 = vector.broadcast %cst_154 : f32 to vector<2x128xf32>
    %533 = arith.addf %532, %531 : vector<2x128xf32>
    %cst_155 = arith.constant 5.000000e-01 : f32
    %534 = vector.broadcast %cst_155 : f32 to vector<2x128xf32>
    %535 = arith.mulf %534, %533 : vector<2x128xf32>
    %536 = arith.mulf %523, %535 : vector<2x128xf32>
    %c840 = arith.constant 840 : index
    %c0_156 = arith.constant 0 : index
    %537 = vector.load %arg5[%c840, %c0_156] : memref<1384x128xf32, #tpu.memory_space<vmem>>, vector<128x32xf32>
    %cst_157 = arith.constant dense<0.000000e+00> : vector<2x32xf32>
    %538 = tpu.matmul %536, %537, %cst_157 {dimension_numbers = #tpu.dot_dimension_numbers<[1], [0], [0], [1], [0, 0, 1, 1], [], []>} : vector<2x128xf32>, vector<128x32xf32>, vector<2x32xf32> -> vector<2x32xf32>
    %c968 = arith.constant 968 : index
    %c0_158 = arith.constant 0 : index
    %539 = vector.load %arg5[%c968, %c0_158] : memref<1384x128xf32, #tpu.memory_space<vmem>>, vector<1x32xf32>
    %540 = vector.broadcast %539 : vector<1x32xf32> to vector<2x32xf32>
    %541 = arith.addf %538, %540 : vector<2x32xf32>
    %542 = arith.addf %494, %541 : vector<2x32xf32>
    %c976 = arith.constant 976 : index
    %c0_159 = arith.constant 0 : index
    %543 = vector.load %arg5[%c976, %c0_159] : memref<1384x128xf32, #tpu.memory_space<vmem>>, vector<1x32xf32>
    %c984 = arith.constant 984 : index
    %c0_160 = arith.constant 0 : index
    %544 = vector.load %arg5[%c984, %c0_160] : memref<1384x128xf32, #tpu.memory_space<vmem>>, vector<1x32xf32>
    %cst_161 = arith.constant dense<0.000000e+00> : vector<2xf32>
    %545 = vector.multi_reduction <add>, %542, %cst_161 [1] : vector<2x32xf32> to vector<2xf32>
    %546 = vector.shape_cast %545 : vector<2xf32> to vector<2x1xf32>
    %cst_162 = arith.constant 3.200000e+01 : f32
    %547 = vector.broadcast %cst_162 : f32 to vector<2x1xf32>
    %548 = arith.divf %546, %547 : vector<2x1xf32>
    %549 = vector.broadcast %548 : vector<2x1xf32> to vector<2x32xf32>
    %550 = arith.subf %542, %549 : vector<2x32xf32>
    %551 = arith.mulf %550, %550 : vector<2x32xf32>
    %cst_163 = arith.constant dense<0.000000e+00> : vector<2xf32>
    %552 = vector.multi_reduction <add>, %551, %cst_163 [1] : vector<2x32xf32> to vector<2xf32>
    %553 = vector.shape_cast %552 : vector<2xf32> to vector<2x1xf32>
    %cst_164 = arith.constant 3.200000e+01 : f32
    %554 = vector.broadcast %cst_164 : f32 to vector<2x1xf32>
    %555 = arith.divf %553, %554 : vector<2x1xf32>
    %556 = vector.broadcast %548 : vector<2x1xf32> to vector<2x32xf32>
    %557 = arith.subf %542, %556 : vector<2x32xf32>
    %cst_165 = arith.constant 9.99999997E-7 : f32
    %558 = vector.broadcast %cst_165 : f32 to vector<2x1xf32>
    %559 = arith.addf %555, %558 : vector<2x1xf32>
    %560 = math.rsqrt %559 : vector<2x1xf32>
    %561 = vector.broadcast %560 : vector<2x1xf32> to vector<2x32xf32>
    %562 = arith.mulf %557, %561 : vector<2x32xf32>
    %563 = vector.broadcast %543 : vector<1x32xf32> to vector<2x32xf32>
    %564 = arith.mulf %562, %563 : vector<2x32xf32>
    %565 = vector.broadcast %544 : vector<1x32xf32> to vector<2x32xf32>
    %566 = arith.addf %564, %565 : vector<2x32xf32>
    %cst_166 = arith.constant dense<0.000000e+00> : vector<32xf32>
    %567 = vector.multi_reduction <add>, %566, %cst_166 [0] : vector<2x32xf32> to vector<32xf32>
    %568 = vector.shape_cast %567 : vector<32xf32> to vector<1x32xf32>
    %cst_167 = arith.constant 2.000000e+00 : f32
    %569 = vector.broadcast %cst_167 : f32 to vector<1x32xf32>
    %570 = arith.divf %568, %569 : vector<1x32xf32>
    %c1024 = arith.constant 1024 : index
    %c0_168 = arith.constant 0 : index
    %571 = vector.load %arg5[%c1024, %c0_168] : memref<1384x128xf32, #tpu.memory_space<vmem>>, vector<32x10xf32>
    %cst_169 = arith.constant dense<0.000000e+00> : vector<1x10xf32>
    %572 = tpu.matmul %570, %571, %cst_169 {dimension_numbers = #tpu.dot_dimension_numbers<[1], [0], [0], [1], [0, 0, 1, 1], [], []>} : vector<1x32xf32>, vector<32x10xf32>, vector<1x10xf32> -> vector<1x10xf32>
    %c1056 = arith.constant 1056 : index
    %c0_170 = arith.constant 0 : index
    %573 = vector.load %arg5[%c1056, %c0_170] : memref<1384x128xf32, #tpu.memory_space<vmem>>, vector<1x10xf32>
    %574 = arith.addf %572, %573 : vector<1x10xf32>
    %c0_171 = arith.constant 0 : index
    %c0_172 = arith.constant 0 : index
    %c0_173 = arith.constant 0 : index
    %575 = vector.load %arg8[%c0_171, %c0_172, %c0_173] : memref<1x1x10xf32, #tpu.memory_space<vmem>>, vector<1x1x10xf32>
    %576 = vector.shape_cast %575 : vector<1x1x10xf32> to vector<1x10xf32>
    %577 = vector.shape_cast %574 : vector<1x10xf32> to vector<1x1x10xf32>
    tpu.vector_store %arg8[%c0_171, %c0_172, %c0_173], %577 {strides = array<i32>} : memref<1x1x10xf32, #tpu.memory_space<vmem>>, vector<1x1x10xf32>,
    %c992 = arith.constant 992 : index
    %c0_174 = arith.constant 0 : index
    %578 = vector.load %arg5[%c992, %c0_174] : memref<1384x128xf32, #tpu.memory_space<vmem>>, vector<32x32xf32>
    %cst_175 = arith.constant dense<0.000000e+00> : vector<2x32xf32>
    %579 = tpu.matmul %566, %578, %cst_175 {dimension_numbers = #tpu.dot_dimension_numbers<[1], [0], [0], [1], [0, 0, 1, 1], [], []>} : vector<2x32xf32>, vector<32x32xf32>, vector<2x32xf32> -> vector<2x32xf32>
    %580 = tpu.iota {dimensions = array<i32: 0>} : vector<8x2xi32>
    %581 = tpu.iota {dimensions = array<i32: 1>} : vector<8x2xi32>
    %cst_176 = arith.constant 0.000000e+00 : f32
    %582 = vector.broadcast %cst_176 : f32 to vector<8x2xf32>
    %c0_i32_177 = arith.constant 0 : i32
    %583 = vector.broadcast %c0_i32_177 : i32 to vector<8x2xi32>
    %584 = arith.cmpi eq, %581, %583 : vector<8x2xi32>
    %585 = arith.index_cast %arg0 : i32 to index
    %c0_178 = arith.constant 0 : index
    %586 = memref.load %arg1[%585, %c0_178] : memref<2x2xi32, #tpu.memory_space<smem>>
    %587 = vector.broadcast %586 : i32 to vector<8x2xi32>
    %588 = arith.cmpi eq, %580, %587 : vector<8x2xi32>
    %589 = arith.andi %584, %588 : vector<8x2xi1>
    %cst_179 = arith.constant 1.000000e+00 : f32
    %cst_180 = arith.constant 0.000000e+00 : f32
    %590 = vector.broadcast %cst_179 : f32 to vector<8x2xf32>
    %591 = vector.broadcast %cst_180 : f32 to vector<8x2xf32>
    %592 = arith.select %589, %590, %591 : vector<8x2xi1>, vector<8x2xf32>
    %593 = arith.addf %582, %592 : vector<8x2xf32>
    %c1_i32_181 = arith.constant 1 : i32
    %594 = vector.broadcast %c1_i32_181 : i32 to vector<8x2xi32>
    %595 = arith.cmpi eq, %581, %594 : vector<8x2xi32>
    %596 = arith.index_cast %arg0 : i32 to index
    %c1_182 = arith.constant 1 : index
    %597 = memref.load %arg1[%596, %c1_182] : memref<2x2xi32, #tpu.memory_space<smem>>
    %598 = vector.broadcast %597 : i32 to vector<8x2xi32>
    %599 = arith.cmpi eq, %580, %598 : vector<8x2xi32>
    %600 = arith.andi %595, %599 : vector<8x2xi1>
    %cst_183 = arith.constant 1.000000e+00 : f32
    %cst_184 = arith.constant 0.000000e+00 : f32
    %601 = vector.broadcast %cst_183 : f32 to vector<8x2xf32>
    %602 = vector.broadcast %cst_184 : f32 to vector<8x2xf32>
    %603 = arith.select %600, %601, %602 : vector<8x2xi1>, vector<8x2xf32>
    %604 = arith.addf %593, %603 : vector<8x2xf32>
    %cst_185 = arith.constant dense<0.000000e+00> : vector<8xf32>
    %605 = vector.multi_reduction <add>, %604, %cst_185 [1] : vector<8x2xf32> to vector<8xf32>
    %606 = vector.shape_cast %605 : vector<8xf32> to vector<8x1xf32>
    %cst_186 = arith.constant dense<0.000000e+00> : vector<8x32xf32>
    %607 = tpu.matmul %604, %579, %cst_186 {dimension_numbers = #tpu.dot_dimension_numbers<[1], [0], [0], [1], [0, 0, 1, 1], [], []>} : vector<8x2xf32>, vector<2x32xf32>, vector<8x32xf32> -> vector<8x32xf32>
    %cst_187 = arith.constant 1.000000e+00 : f32
    %608 = vector.broadcast %cst_187 : f32 to vector<8x1xf32>
    %609 = arith.subf %608, %606 : vector<8x1xf32>
    %c1064 = arith.constant 1064 : index
    %c0_188 = arith.constant 0 : index
    %610 = vector.load %arg5[%c1064, %c0_188] : memref<1384x128xf32, #tpu.memory_space<vmem>>, vector<1x32xf32>
    %611 = vector.broadcast %609 : vector<8x1xf32> to vector<8x32xf32>
    %612 = vector.broadcast %610 : vector<1x32xf32> to vector<8x32xf32>
    %613 = arith.mulf %611, %612 : vector<8x32xf32>
    %614 = arith.addf %607, %613 : vector<8x32xf32>
    %c1072 = arith.constant 1072 : index
    %c0_189 = arith.constant 0 : index
    %615 = vector.load %arg5[%c1072, %c0_189] : memref<1384x128xf32, #tpu.memory_space<vmem>>, vector<8x32xf32>
    %616 = arith.addf %614, %615 : vector<8x32xf32>
    %c1080 = arith.constant 1080 : index
    %c0_190 = arith.constant 0 : index
    %617 = vector.load %arg5[%c1080, %c0_190] : memref<1384x128xf32, #tpu.memory_space<vmem>>, vector<1x32xf32>
    %c1088 = arith.constant 1088 : index
    %c0_191 = arith.constant 0 : index
    %618 = vector.load %arg5[%c1088, %c0_191] : memref<1384x128xf32, #tpu.memory_space<vmem>>, vector<1x32xf32>
    %cst_192 = arith.constant dense<0.000000e+00> : vector<8xf32>
    %619 = vector.multi_reduction <add>, %616, %cst_192 [1] : vector<8x32xf32> to vector<8xf32>
    %620 = vector.shape_cast %619 : vector<8xf32> to vector<8x1xf32>
    %cst_193 = arith.constant 3.200000e+01 : f32
    %621 = vector.broadcast %cst_193 : f32 to vector<8x1xf32>
    %622 = arith.divf %620, %621 : vector<8x1xf32>
    %623 = vector.broadcast %622 : vector<8x1xf32> to vector<8x32xf32>
    %624 = arith.subf %616, %623 : vector<8x32xf32>
    %625 = arith.mulf %624, %624 : vector<8x32xf32>
    %cst_194 = arith.constant dense<0.000000e+00> : vector<8xf32>
    %626 = vector.multi_reduction <add>, %625, %cst_194 [1] : vector<8x32xf32> to vector<8xf32>
    %627 = vector.shape_cast %626 : vector<8xf32> to vector<8x1xf32>
    %cst_195 = arith.constant 3.200000e+01 : f32
    %628 = vector.broadcast %cst_195 : f32 to vector<8x1xf32>
    %629 = arith.divf %627, %628 : vector<8x1xf32>
    %630 = vector.broadcast %622 : vector<8x1xf32> to vector<8x32xf32>
    %631 = arith.subf %616, %630 : vector<8x32xf32>
    %cst_196 = arith.constant 9.99999997E-7 : f32
    %632 = vector.broadcast %cst_196 : f32 to vector<8x1xf32>
    %633 = arith.addf %629, %632 : vector<8x1xf32>
    %634 = math.rsqrt %633 : vector<8x1xf32>
    %635 = vector.broadcast %634 : vector<8x1xf32> to vector<8x32xf32>
    %636 = arith.mulf %631, %635 : vector<8x32xf32>
    %637 = vector.broadcast %617 : vector<1x32xf32> to vector<8x32xf32>
    %638 = arith.mulf %636, %637 : vector<8x32xf32>
    %639 = vector.broadcast %618 : vector<1x32xf32> to vector<8x32xf32>
    %640 = arith.addf %638, %639 : vector<8x32xf32>
    %c1096 = arith.constant 1096 : index
    %c0_197 = arith.constant 0 : index
    %641 = vector.load %arg5[%c1096, %c0_197] : memref<1384x128xf32, #tpu.memory_space<vmem>>, vector<32x96xf32>
    %cst_198 = arith.constant dense<0.000000e+00> : vector<8x96xf32>
    %642 = tpu.matmul %640, %641, %cst_198 {dimension_numbers = #tpu.dot_dimension_numbers<[1], [0], [0], [1], [0, 0, 1, 1], [], []>} : vector<8x32xf32>, vector<32x96xf32>, vector<8x96xf32> -> vector<8x96xf32>
    %c1128 = arith.constant 1128 : index
    %c0_199 = arith.constant 0 : index
    %643 = vector.load %arg5[%c1128, %c0_199] : memref<1384x128xf32, #tpu.memory_space<vmem>>, vector<1x96xf32>
    %644 = vector.broadcast %643 : vector<1x96xf32> to vector<8x96xf32>
    %645 = arith.addf %642, %644 : vector<8x96xf32>
    %646 = vector.extract_strided_slice %645 {offsets = [0, 0], sizes = [8, 32], strides = [1, 1]} : vector<8x96xf32> to vector<8x32xf32>
    %647 = vector.extract_strided_slice %645 {offsets = [0, 32], sizes = [8, 32], strides = [1, 1]} : vector<8x96xf32> to vector<8x32xf32>
    %648 = vector.extract_strided_slice %645 {offsets = [0, 64], sizes = [8, 32], strides = [1, 1]} : vector<8x96xf32> to vector<8x32xf32>
    %649 = vector.extract_strided_slice %646 {offsets = [0, 0], sizes = [8, 8], strides = [1, 1]} : vector<8x32xf32> to vector<8x8xf32>
    %650 = vector.extract_strided_slice %646 {offsets = [0, 8], sizes = [8, 8], strides = [1, 1]} : vector<8x32xf32> to vector<8x8xf32>
    %651 = vector.extract_strided_slice %646 {offsets = [0, 16], sizes = [8, 8], strides = [1, 1]} : vector<8x32xf32> to vector<8x8xf32>
    %652 = vector.extract_strided_slice %646 {offsets = [0, 24], sizes = [8, 8], strides = [1, 1]} : vector<8x32xf32> to vector<8x8xf32>
    %653 = tpu.concatenate %649, %650, %651, %652 in 0 : vector<8x8xf32>, vector<8x8xf32>, vector<8x8xf32>, vector<8x8xf32> -> vector<32x8xf32>
    %654 = vector.extract_strided_slice %647 {offsets = [0, 0], sizes = [8, 8], strides = [1, 1]} : vector<8x32xf32> to vector<8x8xf32>
    %655 = vector.extract_strided_slice %647 {offsets = [0, 8], sizes = [8, 8], strides = [1, 1]} : vector<8x32xf32> to vector<8x8xf32>
    %656 = vector.extract_strided_slice %647 {offsets = [0, 16], sizes = [8, 8], strides = [1, 1]} : vector<8x32xf32> to vector<8x8xf32>
    %657 = vector.extract_strided_slice %647 {offsets = [0, 24], sizes = [8, 8], strides = [1, 1]} : vector<8x32xf32> to vector<8x8xf32>
    %658 = tpu.concatenate %654, %655, %656, %657 in 0 : vector<8x8xf32>, vector<8x8xf32>, vector<8x8xf32>, vector<8x8xf32> -> vector<32x8xf32>
    %659 = vector.extract_strided_slice %648 {offsets = [0, 0], sizes = [8, 8], strides = [1, 1]} : vector<8x32xf32> to vector<8x8xf32>
    %660 = vector.extract_strided_slice %648 {offsets = [0, 8], sizes = [8, 8], strides = [1, 1]} : vector<8x32xf32> to vector<8x8xf32>
    %661 = vector.extract_strided_slice %648 {offsets = [0, 16], sizes = [8, 8], strides = [1, 1]} : vector<8x32xf32> to vector<8x8xf32>
    %662 = vector.extract_strided_slice %648 {offsets = [0, 24], sizes = [8, 8], strides = [1, 1]} : vector<8x32xf32> to vector<8x8xf32>
    %663 = tpu.concatenate %659, %660, %661, %662 in 0 : vector<8x8xf32>, vector<8x8xf32>, vector<8x8xf32>, vector<8x8xf32> -> vector<32x8xf32>
    %664 = tpu.iota {dimensions = array<i32: 0>} : vector<32x32xi32>
    %665 = tpu.iota {dimensions = array<i32: 1>} : vector<32x32xi32>
    %c0_i32_200 = arith.constant 0 : i32
    %666 = vector.broadcast %c0_i32_200 : i32 to vector<32x32xi32>
    %667 = arith.cmpi sge, %664, %666 : vector<32x32xi32>
    %c8_i32_201 = arith.constant 8 : i32
    %668 = vector.broadcast %c8_i32_201 : i32 to vector<32x32xi32>
    %669 = arith.cmpi slt, %664, %668 : vector<32x32xi32>
    %670 = arith.andi %667, %669 : vector<32x32xi1>
    %c0_i32_202 = arith.constant 0 : i32
    %671 = vector.broadcast %c0_i32_202 : i32 to vector<32x32xi32>
    %672 = arith.cmpi sge, %665, %671 : vector<32x32xi32>
    %673 = arith.andi %670, %672 : vector<32x32xi1>
    %c8_i32_203 = arith.constant 8 : i32
    %674 = vector.broadcast %c8_i32_203 : i32 to vector<32x32xi32>
    %675 = arith.cmpi slt, %665, %674 : vector<32x32xi32>
    %676 = arith.andi %673, %675 : vector<32x32xi1>
    %c8_i32_204 = arith.constant 8 : i32
    %677 = vector.broadcast %c8_i32_204 : i32 to vector<32x32xi32>
    %678 = arith.cmpi sge, %664, %677 : vector<32x32xi32>
    %c16_i32 = arith.constant 16 : i32
    %679 = vector.broadcast %c16_i32 : i32 to vector<32x32xi32>
    %680 = arith.cmpi slt, %664, %679 : vector<32x32xi32>
    %681 = arith.andi %678, %680 : vector<32x32xi1>
    %c8_i32_205 = arith.constant 8 : i32
    %682 = vector.broadcast %c8_i32_205 : i32 to vector<32x32xi32>
    %683 = arith.cmpi sge, %665, %682 : vector<32x32xi32>
    %684 = arith.andi %681, %683 : vector<32x32xi1>
    %c16_i32_206 = arith.constant 16 : i32
    %685 = vector.broadcast %c16_i32_206 : i32 to vector<32x32xi32>
    %686 = arith.cmpi slt, %665, %685 : vector<32x32xi32>
    %687 = arith.andi %684, %686 : vector<32x32xi1>
    %688 = arith.ori %676, %687 : vector<32x32xi1>
    %c16_i32_207 = arith.constant 16 : i32
    %689 = vector.broadcast %c16_i32_207 : i32 to vector<32x32xi32>
    %690 = arith.cmpi sge, %664, %689 : vector<32x32xi32>
    %c24_i32 = arith.constant 24 : i32
    %691 = vector.broadcast %c24_i32 : i32 to vector<32x32xi32>
    %692 = arith.cmpi slt, %664, %691 : vector<32x32xi32>
    %693 = arith.andi %690, %692 : vector<32x32xi1>
    %c16_i32_208 = arith.constant 16 : i32
    %694 = vector.broadcast %c16_i32_208 : i32 to vector<32x32xi32>
    %695 = arith.cmpi sge, %665, %694 : vector<32x32xi32>
    %696 = arith.andi %693, %695 : vector<32x32xi1>
    %c24_i32_209 = arith.constant 24 : i32
    %697 = vector.broadcast %c24_i32_209 : i32 to vector<32x32xi32>
    %698 = arith.cmpi slt, %665, %697 : vector<32x32xi32>
    %699 = arith.andi %696, %698 : vector<32x32xi1>
    %700 = arith.ori %688, %699 : vector<32x32xi1>
    %c24_i32_210 = arith.constant 24 : i32
    %701 = vector.broadcast %c24_i32_210 : i32 to vector<32x32xi32>
    %702 = arith.cmpi sge, %664, %701 : vector<32x32xi32>
    %c32_i32 = arith.constant 32 : i32
    %703 = vector.broadcast %c32_i32 : i32 to vector<32x32xi32>
    %704 = arith.cmpi slt, %664, %703 : vector<32x32xi32>
    %705 = arith.andi %702, %704 : vector<32x32xi1>
    %c24_i32_211 = arith.constant 24 : i32
    %706 = vector.broadcast %c24_i32_211 : i32 to vector<32x32xi32>
    %707 = arith.cmpi sge, %665, %706 : vector<32x32xi32>
    %708 = arith.andi %705, %707 : vector<32x32xi1>
    %c32_i32_212 = arith.constant 32 : i32
    %709 = vector.broadcast %c32_i32_212 : i32 to vector<32x32xi32>
    %710 = arith.cmpi slt, %665, %709 : vector<32x32xi32>
    %711 = arith.andi %708, %710 : vector<32x32xi1>
    %712 = arith.ori %700, %711 : vector<32x32xi1>
    %cst_213 = arith.constant 0.000000e+00 : f32
    %cst_214 = arith.constant -1.000000e+30 : f32
    %713 = vector.broadcast %cst_213 : f32 to vector<32x32xf32>
    %714 = vector.broadcast %cst_214 : f32 to vector<32x32xf32>
    %715 = arith.select %712, %713, %714 : vector<32x32xi1>, vector<32x32xf32>
    %cst_215 = arith.constant dense<0.000000e+00> : vector<32x32xf32>
    %716 = tpu.matmul %653, %658, %cst_215 {dimension_numbers = #tpu.dot_dimension_numbers<[1], [1], [0], [0], [0, 0, 1, 0], [], []>} : vector<32x8xf32>, vector<32x8xf32>, vector<32x32xf32> -> vector<32x32xf32>
    %cst_216 = arith.constant 0.353553385 : f32
    %717 = vector.broadcast %cst_216 : f32 to vector<32x32xf32>
    %718 = arith.mulf %716, %717 : vector<32x32xf32>
    %719 = arith.addf %718, %715 : vector<32x32xf32>
    %cst_217 = arith.constant dense<0xFF800000> : vector<32xf32>
    %720 = vector.multi_reduction <maximumf>, %719, %cst_217 [1] : vector<32x32xf32> to vector<32xf32>
    %721 = vector.shape_cast %720 : vector<32xf32> to vector<32x1xf32>
    %722 = vector.broadcast %721 : vector<32x1xf32> to vector<32x32xf32>
    %723 = arith.subf %719, %722 : vector<32x32xf32>
    %724 = math.exp %723 : vector<32x32xf32>
    %cst_218 = arith.constant dense<0.000000e+00> : vector<32xf32>
    %725 = vector.multi_reduction <add>, %724, %cst_218 [1] : vector<32x32xf32> to vector<32xf32>
    %726 = vector.shape_cast %725 : vector<32xf32> to vector<32x1xf32>
    %727 = tpu.reciprocal %726 {approx = true} : vector<32x1xf32> -> vector<32x1xf32>
    %728 = vector.broadcast %727 : vector<32x1xf32> to vector<32x32xf32>
    %729 = arith.mulf %724, %728 : vector<32x32xf32>
    %cst_219 = arith.constant dense<0.000000e+00> : vector<32x8xf32>
    %730 = tpu.matmul %729, %663, %cst_219 {dimension_numbers = #tpu.dot_dimension_numbers<[1], [0], [0], [1], [0, 0, 1, 1], [], []>} : vector<32x32xf32>, vector<32x8xf32>, vector<32x8xf32> -> vector<32x8xf32>
    %731 = vector.extract_strided_slice %730 {offsets = [0, 0], sizes = [8, 8], strides = [1, 1]} : vector<32x8xf32> to vector<8x8xf32>
    %732 = vector.extract_strided_slice %730 {offsets = [8, 0], sizes = [8, 8], strides = [1, 1]} : vector<32x8xf32> to vector<8x8xf32>
    %733 = vector.extract_strided_slice %730 {offsets = [16, 0], sizes = [8, 8], strides = [1, 1]} : vector<32x8xf32> to vector<8x8xf32>
    %734 = vector.extract_strided_slice %730 {offsets = [24, 0], sizes = [8, 8], strides = [1, 1]} : vector<32x8xf32> to vector<8x8xf32>
    %735 = tpu.concatenate %731, %732, %733, %734 in 1 : vector<8x8xf32>, vector<8x8xf32>, vector<8x8xf32>, vector<8x8xf32> -> vector<8x32xf32>
    %c1136 = arith.constant 1136 : index
    %c0_220 = arith.constant 0 : index
    %736 = vector.load %arg5[%c1136, %c0_220] : memref<1384x128xf32, #tpu.memory_space<vmem>>, vector<32x32xf32>
    %cst_221 = arith.constant dense<0.000000e+00> : vector<8x32xf32>
    %737 = tpu.matmul %735, %736, %cst_221 {dimension_numbers = #tpu.dot_dimension_numbers<[1], [0], [0], [1], [0, 0, 1, 1], [], []>} : vector<8x32xf32>, vector<32x32xf32>, vector<8x32xf32> -> vector<8x32xf32>
    %738 = arith.addf %616, %737 : vector<8x32xf32>
    %c1168 = arith.constant 1168 : index
    %c0_222 = arith.constant 0 : index
    %739 = vector.load %arg5[%c1168, %c0_222] : memref<1384x128xf32, #tpu.memory_space<vmem>>, vector<1x32xf32>
    %740 = vector.broadcast %739 : vector<1x32xf32> to vector<8x32xf32>
    %741 = arith.addf %738, %740 : vector<8x32xf32>
    %c1176 = arith.constant 1176 : index
    %c0_223 = arith.constant 0 : index
    %742 = vector.load %arg5[%c1176, %c0_223] : memref<1384x128xf32, #tpu.memory_space<vmem>>, vector<1x32xf32>
    %c1184 = arith.constant 1184 : index
    %c0_224 = arith.constant 0 : index
    %743 = vector.load %arg5[%c1184, %c0_224] : memref<1384x128xf32, #tpu.memory_space<vmem>>, vector<1x32xf32>
    %cst_225 = arith.constant dense<0.000000e+00> : vector<8xf32>
    %744 = vector.multi_reduction <add>, %741, %cst_225 [1] : vector<8x32xf32> to vector<8xf32>
    %745 = vector.shape_cast %744 : vector<8xf32> to vector<8x1xf32>
    %cst_226 = arith.constant 3.200000e+01 : f32
    %746 = vector.broadcast %cst_226 : f32 to vector<8x1xf32>
    %747 = arith.divf %745, %746 : vector<8x1xf32>
    %748 = vector.broadcast %747 : vector<8x1xf32> to vector<8x32xf32>
    %749 = arith.subf %741, %748 : vector<8x32xf32>
    %750 = arith.mulf %749, %749 : vector<8x32xf32>
    %cst_227 = arith.constant dense<0.000000e+00> : vector<8xf32>
    %751 = vector.multi_reduction <add>, %750, %cst_227 [1] : vector<8x32xf32> to vector<8xf32>
    %752 = vector.shape_cast %751 : vector<8xf32> to vector<8x1xf32>
    %cst_228 = arith.constant 3.200000e+01 : f32
    %753 = vector.broadcast %cst_228 : f32 to vector<8x1xf32>
    %754 = arith.divf %752, %753 : vector<8x1xf32>
    %755 = vector.broadcast %747 : vector<8x1xf32> to vector<8x32xf32>
    %756 = arith.subf %741, %755 : vector<8x32xf32>
    %cst_229 = arith.constant 9.99999997E-7 : f32
    %757 = vector.broadcast %cst_229 : f32 to vector<8x1xf32>
    %758 = arith.addf %754, %757 : vector<8x1xf32>
    %759 = math.rsqrt %758 : vector<8x1xf32>
    %760 = vector.broadcast %759 : vector<8x1xf32> to vector<8x32xf32>
    %761 = arith.mulf %756, %760 : vector<8x32xf32>
    %762 = vector.broadcast %742 : vector<1x32xf32> to vector<8x32xf32>
    %763 = arith.mulf %761, %762 : vector<8x32xf32>
    %764 = vector.broadcast %743 : vector<1x32xf32> to vector<8x32xf32>
    %765 = arith.addf %763, %764 : vector<8x32xf32>
    %c1192 = arith.constant 1192 : index
    %c0_230 = arith.constant 0 : index
    %766 = vector.load %arg5[%c1192, %c0_230] : memref<1384x128xf32, #tpu.memory_space<vmem>>, vector<32x128xf32>
    %cst_231 = arith.constant dense<0.000000e+00> : vector<8x128xf32>
    %767 = tpu.matmul %765, %766, %cst_231 {dimension_numbers = #tpu.dot_dimension_numbers<[1], [0], [0], [1], [0, 0, 1, 1], [], []>} : vector<8x32xf32>, vector<32x128xf32>, vector<8x128xf32> -> vector<8x128xf32>
    %c1224 = arith.constant 1224 : index
    %c0_232 = arith.constant 0 : index
    %768 = vector.load %arg5[%c1224, %c0_232] : memref<1384x128xf32, #tpu.memory_space<vmem>>, vector<1x128xf32>
    %769 = vector.broadcast %768 : vector<1x128xf32> to vector<8x128xf32>
    %770 = arith.addf %767, %769 : vector<8x128xf32>
    %771 = arith.mulf %770, %770 : vector<8x128xf32>
    %772 = arith.mulf %770, %771 : vector<8x128xf32>
    %cst_233 = arith.constant 4.471500e-02 : f32
    %773 = vector.broadcast %cst_233 : f32 to vector<8x128xf32>
    %774 = arith.mulf %773, %772 : vector<8x128xf32>
    %775 = arith.addf %770, %774 : vector<8x128xf32>
    %cst_234 = arith.constant 0.797884583 : f32
    %776 = vector.broadcast %cst_234 : f32 to vector<8x128xf32>
    %777 = arith.mulf %776, %775 : vector<8x128xf32>
    %778 = math.tanh %777 : vector<8x128xf32>
    %cst_235 = arith.constant 1.000000e+00 : f32
    %779 = vector.broadcast %cst_235 : f32 to vector<8x128xf32>
    %780 = arith.addf %779, %778 : vector<8x128xf32>
    %cst_236 = arith.constant 5.000000e-01 : f32
    %781 = vector.broadcast %cst_236 : f32 to vector<8x128xf32>
    %782 = arith.mulf %781, %780 : vector<8x128xf32>
    %783 = arith.mulf %770, %782 : vector<8x128xf32>
    %c1232 = arith.constant 1232 : index
    %c0_237 = arith.constant 0 : index
    %784 = vector.load %arg5[%c1232, %c0_237] : memref<1384x128xf32, #tpu.memory_space<vmem>>, vector<128x32xf32>
    %cst_238 = arith.constant dense<0.000000e+00> : vector<8x32xf32>
    %785 = tpu.matmul %783, %784, %cst_238 {dimension_numbers = #tpu.dot_dimension_numbers<[1], [0], [0], [1], [0, 0, 1, 1], [], []>} : vector<8x128xf32>, vector<128x32xf32>, vector<8x32xf32> -> vector<8x32xf32>
    %c1360 = arith.constant 1360 : index
    %c0_239 = arith.constant 0 : index
    %786 = vector.load %arg5[%c1360, %c0_239] : memref<1384x128xf32, #tpu.memory_space<vmem>>, vector<1x32xf32>
    %787 = vector.broadcast %786 : vector<1x32xf32> to vector<8x32xf32>
    %788 = arith.addf %785, %787 : vector<8x32xf32>
    %789 = arith.addf %741, %788 : vector<8x32xf32>
    %c1368 = arith.constant 1368 : index
    %c0_240 = arith.constant 0 : index
    %790 = vector.load %arg5[%c1368, %c0_240] : memref<1384x128xf32, #tpu.memory_space<vmem>>, vector<1x32xf32>
    %c1376 = arith.constant 1376 : index
    %c0_241 = arith.constant 0 : index
    %791 = vector.load %arg5[%c1376, %c0_241] : memref<1384x128xf32, #tpu.memory_space<vmem>>, vector<1x32xf32>
    %cst_242 = arith.constant dense<0.000000e+00> : vector<8xf32>
    %792 = vector.multi_reduction <add>, %789, %cst_242 [1] : vector<8x32xf32> to vector<8xf32>
    %793 = vector.shape_cast %792 : vector<8xf32> to vector<8x1xf32>
    %cst_243 = arith.constant 3.200000e+01 : f32
    %794 = vector.broadcast %cst_243 : f32 to vector<8x1xf32>
    %795 = arith.divf %793, %794 : vector<8x1xf32>
    %796 = vector.broadcast %795 : vector<8x1xf32> to vector<8x32xf32>
    %797 = arith.subf %789, %796 : vector<8x32xf32>
    %798 = arith.mulf %797, %797 : vector<8x32xf32>
    %cst_244 = arith.constant dense<0.000000e+00> : vector<8xf32>
    %799 = vector.multi_reduction <add>, %798, %cst_244 [1] : vector<8x32xf32> to vector<8xf32>
    %800 = vector.shape_cast %799 : vector<8xf32> to vector<8x1xf32>
    %cst_245 = arith.constant 3.200000e+01 : f32
    %801 = vector.broadcast %cst_245 : f32 to vector<8x1xf32>
    %802 = arith.divf %800, %801 : vector<8x1xf32>
    %803 = vector.broadcast %795 : vector<8x1xf32> to vector<8x32xf32>
    %804 = arith.subf %789, %803 : vector<8x32xf32>
    %cst_246 = arith.constant 9.99999997E-7 : f32
    %805 = vector.broadcast %cst_246 : f32 to vector<8x1xf32>
    %806 = arith.addf %802, %805 : vector<8x1xf32>
    %807 = math.rsqrt %806 : vector<8x1xf32>
    %808 = vector.broadcast %807 : vector<8x1xf32> to vector<8x32xf32>
    %809 = arith.mulf %804, %808 : vector<8x32xf32>
    %810 = vector.broadcast %790 : vector<1x32xf32> to vector<8x32xf32>
    %811 = arith.mulf %809, %810 : vector<8x32xf32>
    %812 = vector.broadcast %791 : vector<1x32xf32> to vector<8x32xf32>
    %813 = arith.addf %811, %812 : vector<8x32xf32>
    %c24 = arith.constant 24 : index
    %c0_247 = arith.constant 0 : index
    %814 = vector.load %arg4[%c24, %c0_247] : memref<64x384xf32, #tpu.memory_space<vmem>>, vector<32x384xf32>
    %cst_248 = arith.constant dense<0.000000e+00> : vector<8x384xf32>
    %815 = tpu.matmul %813, %814, %cst_248 {dimension_numbers = #tpu.dot_dimension_numbers<[1], [0], [0], [1], [0, 0, 1, 1], [], []>} : vector<8x32xf32>, vector<32x384xf32>, vector<8x384xf32> -> vector<8x384xf32>
    %c56 = arith.constant 56 : index
    %c0_249 = arith.constant 0 : index
    %816 = vector.load %arg4[%c56, %c0_249] : memref<64x384xf32, #tpu.memory_space<vmem>>, vector<1x384xf32>
    %817 = vector.broadcast %816 : vector<1x384xf32> to vector<8x384xf32>
    %818 = arith.addf %815, %817 : vector<8x384xf32>
    %cst_250 = arith.constant dense<0.000000e+00> : vector<6x384xf32>
    %819 = tpu.matmul %94, %818, %cst_250 {dimension_numbers = #tpu.dot_dimension_numbers<[1], [0], [0], [1], [0, 0, 1, 1], [], []>} : vector<6x8xf32>, vector<8x384xf32>, vector<6x384xf32> -> vector<6x384xf32>
    %c0_251 = arith.constant 0 : index
    %c0_252 = arith.constant 0 : index
    %c0_253 = arith.constant 0 : index
    %820 = vector.load %arg7[%c0_251, %c0_252, %c0_253] : memref<1x6x384xf32, #tpu.memory_space<vmem>>, vector<1x6x384xf32>
    %821 = vector.shape_cast %820 : vector<1x6x384xf32> to vector<6x384xf32>
    %822 = vector.shape_cast %819 : vector<6x384xf32> to vector<1x6x384xf32>
    tpu.vector_store %arg7[%c0_251, %c0_252, %c0_253], %822 {strides = array<i32>} : memref<1x6x384xf32, #tpu.memory_space<vmem>>, vector<1x6x384xf32>,
    return
  }
  func.func @transform_0(%arg0: i32, %arg1: memref<2x2xi32, #tpu.memory_space<smem>>, %arg2: memref<2x6xi32, #tpu.memory_space<smem>>) -> (i32, i32) {
    %c0_i32 = arith.constant 0 : i32
    %c0_i32_0 = arith.constant 0 : i32
    return %arg0, %c0_i32 : i32, i32
  }
  func.func @transform_1(%arg0: i32, %arg1: memref<2x2xi32, #tpu.memory_space<smem>>, %arg2: memref<2x6xi32, #tpu.memory_space<smem>>) -> (i32, i32) {
    %c0_i32 = arith.constant 0 : i32
    %c0_i32_0 = arith.constant 0 : i32
    %c0_i32_1 = arith.constant 0 : i32
    return %c0_i32, %c0_i32_0 : i32, i32
  }
  func.func @transform_2(%arg0: i32, %arg1: memref<2x2xi32, #tpu.memory_space<smem>>, %arg2: memref<2x6xi32, #tpu.memory_space<smem>>) -> (i32, i32) {
    %c0_i32 = arith.constant 0 : i32
    %c0_i32_0 = arith.constant 0 : i32
    %c0_i32_1 = arith.constant 0 : i32
    return %c0_i32, %c0_i32_0 : i32, i32
  }
  func.func @transform_3(%arg0: i32, %arg1: memref<2x2xi32, #tpu.memory_space<smem>>, %arg2: memref<2x6xi32, #tpu.memory_space<smem>>) -> (i32, i32, i32) {
    %c0_i32 = arith.constant 0 : i32
    %c0_i32_0 = arith.constant 0 : i32
    %c0_i32_1 = arith.constant 0 : i32
    return %arg0, %c0_i32, %c0_i32_0 : i32, i32, i32
  }
  func.func @transform_4(%arg0: i32, %arg1: memref<2x2xi32, #tpu.memory_space<smem>>, %arg2: memref<2x6xi32, #tpu.memory_space<smem>>) -> (i32, i32, i32) {
    %c0_i32 = arith.constant 0 : i32
    %c0_i32_0 = arith.constant 0 : i32
    %c0_i32_1 = arith.constant 0 : i32
    return %arg0, %c0_i32, %c0_i32_0 : i32, i32, i32
  }
  func.func @transform_5(%arg0: i32, %arg1: memref<2x2xi32, #tpu.memory_space<smem>>, %arg2: memref<2x6xi32, #tpu.memory_space<smem>>) -> (i32, i32, i32) {
    %c0_i32 = arith.constant 0 : i32
    %c0_i32_0 = arith.constant 0 : i32
    %c0_i32_1 = arith.constant 0 : i32
    return %arg0, %c0_i32, %c0_i32_0 : i32, i32, i32
  }
}

</mosaic_0001>

<llo_original>
// kernel: model_forward.1
$region0: #{model_forward.1}
  #allocation0 [shape = 'u32[]', space=smem, size = 0x4, offset = 0x4, fixed_abs, tag = 'smem constant byte address 0x4 - core index']
  #allocation1 [shape = 'u32[72,128]{1,0:T(1,128)}', space=vmem, size = 0x9000, scoped, tag = 'internal scratch']
  #allocation2 [shape = 's32[1]{0}', space=sflag, size = 0x4, scoped, tag = 'scoped memory for model_forward.1']
  #allocation3 [shape = 'u8[1024]{0}', space=smem, size = 0x400, scoped, tag = 'prefetched SMEM operand 0']
  #allocation4 [shape = 'u8[1024]{0}', space=smem, size = 0x400, scoped, tag = 'prefetched SMEM operand 1']
  %s0 = inlined_call_operand.vmem [shape: s32[2,2], index: 0, kind: input, shape index: {}]
  %s1 = inlined_call_operand.vmem [shape: s32[2,6], index: 1, kind: input, shape index: {}]
  %s2 = inlined_call_operand.vmem [shape: f32[16,384], index: 2, kind: input, shape index: {}]
  %s3 = inlined_call_operand.vmem [shape: f32[64,384], index: 3, kind: input, shape index: {}]
  %s4 = inlined_call_operand.vmem [shape: f32[1384,128], index: 4, kind: input, shape index: {}]
  %s5 = inlined_call_operand.vmem [shape: f32[2,6,384], index: 5, kind: output, shape index: {0}]
  %s6 = inlined_call_operand.vmem [shape: f32[2,6,384], index: 6, kind: output, shape index: {1}]
  %s7 = inlined_call_operand.hbm [shape: f32[2,1,10], index: 7, kind: output, shape index: {2}]
  %8 = xla_tuple %s5, %s6, %s7
  %s9 = sld [smem:[#allocation0]]
  $region61: #{model_forward.1} parent=0
    _
  %s11 = ssub.s32 1, %s9
  %s12 = scalar_select 0, %s11, %s9
  %s14 = sshll.u32 %s0, 4
  %s15 = int_to_ptr.vmem [resolvable:$true] %s14
  %17 = dma.vmem_to_smem %s15, 32, [#allocation3], [#allocation2]
  %s19 = sshll.u32 %s1, 4
  %s20 = int_to_ptr.vmem [resolvable:$true] %s19
  %22 = dma.vmem_to_smem %s20, 32, [#allocation4], [#allocation2]
  %24 = dma.done [#allocation2], 64
  %25 = sfence
  $region1: #{model_forward.1} parent=0
    #allocation5 [shape = 'u8[1024]{0}', space=vmem, size = 0x400, scoped, tag = 'output window, operand 2']
    #allocation6 [shape = 's32[2]{0}', space=sflag, size = 0x8, scoped, tag = 'scoped memory for model_forward.1']
    %26 = vsyncpa [#allocation6], 0
    %s27 = scalar_lea.sflag [#allocation6], 1
    %28 = vsyncpa %s27, 0
    loop: start=0, step=1, limit=4
    $region2: #{model_forward.1} parent=1 // loop_pre_header
      _
    $region3: #{model_forward.1} parent=1 // loop_header
      %s30 = sphi 0, %s34
      %p31 = scmp.ge.s32.totalorder %s30, 4
      %s40 = sphi 0, %s42
      %s43 = sphi 0, %s40
      %s44 = sphi 0, %s43
      %s60 = sphi 0, %s44
      %s64 = sphi 0, %s64
      %s66 = sphi 0, %s64
      %s67 = sphi 0, %s66
      %s81 = sphi 0, %s67
      %s85 = sphi 0, %s85
      %s87 = sphi 0, %s85
      %s88 = sphi 0, %s87
      %s102 = sphi 0, %s88
      %s108 = sphi 0, %s110
      %s111 = sphi 0, %s108
      %s112 = sphi 0, %s111
      %s128 = sphi 0, %s112
      %s134 = sphi 0, %s136
      %s137 = sphi 0, %s134
      %s138 = sphi 0, %s137
      %s154 = sphi 0, %s138
      %s160 = sphi 0, %s162
      %s163 = sphi 0, %s160
      %s164 = sphi 0, %s163
      %s180 = sphi 0, %s164
    $region4: #{model_forward.1} parent=1 // loop_header_branch
      %33 = sbr.rel (%p31) target = $region8
    $region5: #{model_forward.1} parent=1 // loop_body
      %s35 = ssub.s32 %s30, 1
      %s36 = ssub.s32 %s30, 2
      %s37 = sadd.s32 %s30, 1
      %s38 = ssub.s32 %s30, %s37
      %p39 = scmp.eq.s32.totalorder %s38, 0
      %s41 = sadd.s32 %s40, 1
      %s42 = scalar_select %p39, %s40, %s41
      %p45 = pneg %p39
      %p46 = scmp.eq.s32.totalorder %s30, 1
      %p47 = por %p45, %p46
      %p48 = scmp.ne.s32.totalorder %s40, %s43
      %p49 = scmp.eq.s32.totalorder %s30, 0
      %p50 = por %p48, %p49
      %p51 = scmp.ne.s32.totalorder %s40, %s43
      %p52 = scmp.eq.s32.totalorder %s35, 1
      %p53 = por %p51, %p52
      %p54 = scmp.ne.s32.totalorder %s43, %s44
      %p55 = scmp.eq.s32.totalorder %s35, 0
      %p56 = por %p54, %p55
      %p57 = scmp.ne.s32.totalorder %s43, %s44
      %p58 = scmp.eq.s32.totalorder %s36, 1
      %p59 = por %p57, %p58
      %p61 = scmp.ne.s32.totalorder %s44, %s60
      %p62 = scmp.eq.s32.totalorder %s36, 0
      %p63 = por %p61, %p62
      %s65 = sadd.s32 %s64, 1
      %p68 = scmp.eq.s32.totalorder %s30, 1
      %p69 = scmp.ne.s32.totalorder %s64, %s66
      %p70 = scmp.eq.s32.totalorder %s30, 0
      %p71 = por %p69, %p70
      %p72 = scmp.ne.s32.totalorder %s64, %s66
      %p73 = scmp.eq.s32.totalorder %s35, 1
      %p74 = por %p72, %p73
      %p75 = scmp.ne.s32.totalorder %s66, %s67
      %p76 = scmp.eq.s32.totalorder %s35, 0
      %p77 = por %p75, %p76
      %p78 = scmp.ne.s32.totalorder %s66, %s67
      %p79 = scmp.eq.s32.totalorder %s36, 1
      %p80 = por %p78, %p79
      %p82 = scmp.ne.s32.totalorder %s67, %s81
      %p83 = scmp.eq.s32.totalorder %s36, 0
      %p84 = por %p82, %p83
      %s86 = sadd.s32 %s85, 1
      %p89 = scmp.eq.s32.totalorder %s30, 1
      %p90 = scmp.ne.s32.totalorder %s85, %s87
      %p91 = scmp.eq.s32.totalorder %s30, 0
      %p92 = por %p90, %p91
      %p93 = scmp.ne.s32.totalorder %s85, %s87
      %p94 = scmp.eq.s32.totalorder %s35, 1
      %p95 = por %p93, %p94
      %p96 = scmp.ne.s32.totalorder %s87, %s88
      %p97 = scmp.eq.s32.totalorder %s35, 0
      %p98 = por %p96, %p97
      %p99 = scmp.ne.s32.totalorder %s87, %s88
      %p100 = scmp.eq.s32.totalorder %s36, 1
      %p101 = por %p99, %p100
      %p103 = scmp.ne.s32.totalorder %s88, %s102
      %p104 = scmp.eq.s32.totalorder %s36, 0
      %p105 = por %p103, %p104
      %s106 = ssub.s32 %s30, %s37
      %p107 = scmp.eq.s32.totalorder %s106, 0
      %s109 = sadd.s32 %s108, 1
      %s110 = scalar_select %p107, %s108, %s109
      %p113 = pneg %p107
      %p114 = scmp.eq.s32.totalorder %s30, 1
      %p115 = por %p113, %p114
      %p116 = scmp.ne.s32.totalorder %s108, %s111
      %p117 = scmp.eq.s32.totalorder %s30, 0
      %p118 = por %p116, %p117
      %p119 = scmp.ne.s32.totalorder %s108, %s111
      %p120 = scmp.eq.s32.totalorder %s35, 1
      %p121 = por %p119, %p120
      %p122 = scmp.ne.s32.totalorder %s111, %s112
      %p123 = scmp.eq.s32.totalorder %s35, 0
      %p124 = por %p122, %p123
      %p125 = scmp.ne.s32.totalorder %s111, %s112
      %p126 = scmp.eq.s32.totalorder %s36, 1
      %p127 = por %p125, %p126
      %p129 = scmp.ne.s32.totalorder %s112, %s128
      %p130 = scmp.eq.s32.totalorder %s36, 0
      %p131 = por %p129, %p130
      %s132 = ssub.s32 %s30, %s37
      %p133 = scmp.eq.s32.totalorder %s132, 0
      %s135 = sadd.s32 %s134, 1
      %s136 = scalar_select %p133, %s134, %s135
      %p139 = pneg %p133
      %p140 = scmp.eq.s32.totalorder %s30, 1
      %p141 = por %p139, %p140
      %p142 = scmp.ne.s32.totalorder %s134, %s137
      %p143 = scmp.eq.s32.totalorder %s30, 0
      %p144 = por %p142, %p143
      %p145 = scmp.ne.s32.totalorder %s134, %s137
      %p146 = scmp.eq.s32.totalorder %s35, 1
      %p147 = por %p145, %p146
      %p148 = scmp.ne.s32.totalorder %s137, %s138
      %p149 = scmp.eq.s32.totalorder %s35, 0
      %p150 = por %p148, %p149
      %p151 = scmp.ne.s32.totalorder %s137, %s138
      %p152 = scmp.eq.s32.totalorder %s36, 1
      %p153 = por %p151, %p152
      %p155 = scmp.ne.s32.totalorder %s138, %s154
      %p156 = scmp.eq.s32.totalorder %s36, 0
      %p157 = por %p155, %p156
      %s158 = ssub.s32 %s30, %s37
      %p159 = scmp.eq.s32.totalorder %s158, 0
      %s161 = sadd.s32 %s160, 1
      %s162 = scalar_select %p159, %s160, %s161
      %p165 = pneg %p159
      %p166 = scmp.eq.s32.totalorder %s30, 1
      %p167 = por %p165, %p166
      %p168 = scmp.ne.s32.totalorder %s160, %s163
      %p169 = scmp.eq.s32.totalorder %s30, 0
      %p170 = por %p168, %p169
      %p171 = scmp.ne.s32.totalorder %s160, %s163
      %p172 = scmp.eq.s32.totalorder %s35, 1
      %p173 = por %p171, %p172
      %p174 = scmp.ne.s32.totalorder %s163, %s164
      %p175 = scmp.eq.s32.totalorder %s35, 0
      %p176 = por %p174, %p175
      %p177 = scmp.ne.s32.totalorder %s163, %s164
      %p178 = scmp.eq.s32.totalorder %s36, 1
      %p179 = por %p177, %p178
      %p181 = scmp.ne.s32.totalorder %s164, %s180
      %p182 = scmp.eq.s32.totalorder %s36, 0
      %p183 = por %p181, %p182
      %p184 = scmp.le.s32.totalorder 1, %s30
      %p185 = scmp.lt.s32.totalorder %s30, 3
      %p186 = pnand %p184, %p185
      %p187 = pneg %p186
      // Predicated region
      $region9: #{model_forward.1} parent=5 // pred_check
        _
      $region10: #{model_forward.1} parent=5 // pred_check_branch
        %189 = sbr.rel (%p186) target = $region12
      $region11: #{model_forward.1} parent=5 // pred_region
        %s190 = ssub.s32 %s30, 1
        // Predicated region
        $region13: #{model_forward.1} parent=11 // pred_check
          %p191 = pneg %p77
        $region14: #{model_forward.1} parent=11 // pred_check_branch
          %193 = sbr.rel (%p191) target = $region16
        $region15: #{model_forward.1} parent=11 // pred_region
          _
        $region16: #{model_forward.1} parent=11 // pred_fallthru
          _
        // Predicated region
        $region17: #{model_forward.1} parent=11 // pred_check
          %p194 = pneg %p98
        $region18: #{model_forward.1} parent=11 // pred_check_branch
          %196 = sbr.rel (%p194) target = $region20
        $region19: #{model_forward.1} parent=11 // pred_region
          _
        $region20: #{model_forward.1} parent=11 // pred_fallthru
          _
      $region12: #{model_forward.1} parent=5 // pred_fallthru
        _
      %p197 = scmp.lt.s32.totalorder %s30, 2
      // Predicated region
      $region21: #{model_forward.1} parent=5 // pred_check
        %p198 = pneg %p197
      $region22: #{model_forward.1} parent=5 // pred_check_branch
        %200 = sbr.rel (%p198) target = $region24
      $region23: #{model_forward.1} parent=5 // pred_region
        // Predicated region
        $region25: #{model_forward.1} parent=23 // pred_check
          %p201 = pneg %p50
        $region26: #{model_forward.1} parent=23 // pred_check_branch
          %203 = sbr.rel (%p201) target = $region28
        $region27: #{model_forward.1} parent=23 // pred_region
          %p204 = scmp.lt.s32.totalorder %s30, 1
          %s205 = scalar_select %p204, %s30, 1
          %s206 = smul.addr %s205, 3
          %s207 = smul.addr %s206, 8
          %s208 = scalar_lea.vmem %s2, %s207
        $region28: #{model_forward.1} parent=23 // pred_fallthru
          _
      $region24: #{model_forward.1} parent=5 // pred_fallthru
        _
      %p209 = scmp.le.s32.totalorder 1, %s30
      %p210 = scmp.lt.s32.totalorder %s30, 3
      %p211 = pnand %p209, %p210
      %p212 = pneg %p211
      // Predicated region
      $region29: #{model_forward.1} parent=5 // pred_check
        _
      $region30: #{model_forward.1} parent=5 // pred_check_branch
        %214 = sbr.rel (%p211) target = $region32
      $region31: #{model_forward.1} parent=5 // pred_region
        %s215 = ssub.s32 %s30, 1
        %p216 = scmp.lt.s32.totalorder %s35, 1
        %s217 = scalar_select %p216, %s35, 1
        %s218 = smul.addr %s217, 3
        %s219 = smul.addr %s218, 8
        %s220 = scalar_lea.vmem %s2, %s219
        %p221 = pneg %p56
        %p222 = pneg %p53
        %p223 = pneg %p77
        %p224 = pneg %p74
        %p225 = pneg %p98
        %p226 = pneg %p95
        %p227 = pneg %p124
        %p228 = pneg %p121
        %p229 = scmp.lt.s32.totalorder %s35, 1
        %s230 = scalar_select %p229, %s35, 1
        %s231 = smul.addr %s230, 3
        %s232 = smul.addr %s231, 8
        %s233 = scalar_lea.vmem %s5, %s232
        %p234 = pneg %p150
        %p235 = pneg %p147
        %p236 = scmp.lt.s32.totalorder %s35, 1
        %s237 = scalar_select %p236, %s35, 1
        %s238 = smul.addr %s237, 3
        %s239 = smul.addr %s238, 8
        %s240 = scalar_lea.vmem %s6, %s239
        %p241 = pneg %p176
        %p242 = pneg %p173
        %s243 = sand.u32 %s163, 1
        %s244 = scalar_lea.sflag [#allocation6], %s243
        %s245 = sand.u32 %s163, 1
        %s246 = scalar_lea.vmem [#allocation5], %s245
        %p247 = scmp.lt.s32.totalorder %s35, 1
        %s248 = scalar_select %p247, %s35, 1
        %s249 = smul.addr %s248, 3
        %s250 = smul.addr %s249, 8
        %s251 = scalar_lea.vmem %s2, %s250
        %p252 = scmp.lt.s32.totalorder %s35, 1
        %s253 = scalar_select %p252, %s35, 1
        %s254 = smul.addr %s253, 3
        %s255 = smul.addr %s254, 8
        %s256 = scalar_lea.vmem %s5, %s255
        %p257 = scmp.lt.s32.totalorder %s35, 1
        %s258 = scalar_select %p257, %s35, 1
        %s259 = smul.addr %s258, 3
        %s260 = smul.addr %s259, 8
        %s261 = scalar_lea.vmem %s6, %s260
        %v262 = vld [vmem:[%s251] sm:$0xff]
        %v263 = vld [vmem:[%s251 + $0x8] sm:$0xff]
        %v264 = vld [vmem:[%s251 + $0x10] sm:$0xff]
        %v265 = vlaneseq
        %v266 = vshrl.u32 %v265, 7
        %v267 = vlaneseq
        %v268 = vand.u32 %v267, 127
        %vm269 = vcmp.eq.s32.totalorder %v266, 0
        %s270 = smul.u32 %s35, 128
        %s271 = sld [smem:[#allocation3 + %s270]]
        %v272 = vstv %s271
        %vm273 = vcmp.eq.s32.totalorder %v268, %v272
        %vm274 = vmand %vm269, %vm273
        %v275 = vsel %vm274, 1.0, 0.0
        %v276 = vadd.f32 %v275, 0.0
        %vm277 = vcmp.eq.s32.totalorder %v266, 1
        %s278 = sadd.s32 %s270, 1
        %s279 = sld [smem:[#allocation3 + %s278]]
        %v280 = vstv %s279
        %vm281 = vcmp.eq.s32.totalorder %v268, %v280
        %vm282 = vmand %vm277, %vm281
        %v283 = vsel %vm282, 1.0, 0.0
        %v284 = vadd.f32 %v276, %v283
        %s285 = sld [smem:[#allocation4 + %s270]]
        %v286 = vstv %s285
        %vm287 = vcmp.eq.s32.totalorder %v268, %v286
        %vm288 = vmand %vm269, %vm287
        %v289 = vsel %vm288, 1.0, 0.0
        %v290 = vadd.f32 %v289, 0.0
        %s291 = sld [smem:[#allocation4 + %s278]]
        %v292 = vstv %s291
        %vm293 = vcmp.eq.s32.totalorder %v268, %v292
        %vm294 = vmand %vm277, %vm293
        %v295 = vsel %vm294, 1.0, 0.0
        %v296 = vadd.f32 %v290, %v295
        %vm297 = vcmp.eq.s32.totalorder %v266, 2
        %s298 = sadd.s32 %s270, 2
        %s299 = sld [smem:[#allocation4 + %s298]]
        %v300 = vstv %s299
        %vm301 = vcmp.eq.s32.totalorder %v268, %v300
        %vm302 = vmand %vm297, %vm301
        %v303 = vsel %vm302, 1.0, 0.0
        %v304 = vadd.f32 %v296, %v303
        %vm305 = vcmp.eq.s32.totalorder %v266, 3
        %s306 = sadd.s32 %s270, 3
        %s307 = sld [smem:[#allocation4 + %s306]]
        %v308 = vstv %s307
        %vm309 = vcmp.eq.s32.totalorder %v268, %v308
        %vm310 = vmand %vm305, %vm309
        %v311 = vsel %vm310, 1.0, 0.0
        %v312 = vadd.f32 %v304, %v311
        %vm313 = vcmp.eq.s32.totalorder %v266, 4
        %s314 = sadd.s32 %s270, 4
        %s315 = sld [smem:[#allocation4 + %s314]]
        %v316 = vstv %s315
        %vm317 = vcmp.eq.s32.totalorder %v268, %v316
        %vm318 = vmand %vm313, %vm317
        %v319 = vsel %vm318, 1.0, 0.0
        %v320 = vadd.f32 %v312, %v319
        %vm321 = vcmp.eq.s32.totalorder %v266, 5
        %s322 = sadd.s32 %s270, 5
        %s323 = sld [smem:[#allocation4 + %s322]]
        %v324 = vstv %s323
        %vm325 = vcmp.eq.s32.totalorder %v268, %v324
        %vm326 = vmand %vm321, %vm325
        %v327 = vsel %vm326, 1.0, 0.0
        %v328 = vadd.f32 %v320, %v327
        %v329 = vld [vmem:[%s3] ss:$8 sm:$0x7]
        %v331 = vperm.slane %v329, 0
        %v332 = vperm.slane %v329, 1
        %v333 = vperm.slane %v329, 2
        %v337 = vmul.f32 %v262, %v331
        %v338 = vmul.f32 %v263, %v332
        %v339 = vmul.f32 %v264, %v333
        %s340 = scalar_lea.vmem %s3, 24
        %v341 = vld [vmem:[%s340] ss:$8 sm:$0x7]
        %v343 = vperm.slane %v341, 0
        %v344 = vperm.slane %v341, 1
        %v345 = vperm.slane %v341, 2
        %v349 = vadd.f32 %v337, %v343
        %v350 = vadd.f32 %v338, %v344
        %v351 = vadd.f32 %v339, %v345
        %s352 = scalar_lea.vmem %s3, 48
        %v353 = vld [vmem:[%s352] ss:$8 sm:$0x7]
        %vm354 = vcmp.eq.f32.partialorder %v353, 0.0
        %v355 = vsel %vm354, 1, 0
        %v356 = vcvt.s32.f32 %v355
        %vm357 = vcmp.eq.f32.partialorder %v353, 1.0
        %v358 = vsel %vm357, 1, 0
        %v359 = vcvt.s32.f32 %v358
        %vm360 = vcmp.eq.f32.partialorder %v353, 2.0
        %v361 = vsel %vm360, 1, 0
        %v362 = vcvt.s32.f32 %v361
        %v364 = vperm.slane %v356, 0
        %v365 = vperm.slane %v356, 1
        %v366 = vperm.slane %v356, 2
        %v370 = vmul.f32 %v349, %v364
        %v371 = vmul.f32 %v350, %v365
        %v372 = vmul.f32 %v351, %v366
        %v373 = vadd.f32 %v370, %v371
        %v374 = vadd.f32 %v373, %v372
        %375 = vadd.xlane.f32.xlu0 %v374
        %v376 = vpop.xlane.xlu0 %375
        %v377 = vmul.f32 %v376, 0.0078125
        %v378 = vmul.f32 %v377, %v364
        %v379 = vmul.f32 %v377, %v365
        %v380 = vmul.f32 %v377, %v366
        %v381 = vadd.f32 %v378, 0.0
        %v382 = vadd.f32 %v379, 0.0
        %v383 = vadd.f32 %v380, 0.0
        %v385 = vperm.slane %v359, 0
        %v386 = vperm.slane %v359, 1
        %v387 = vperm.slane %v359, 2
        %v391 = vmul.f32 %v349, %v385
        %v392 = vmul.f32 %v350, %v386
        %v393 = vmul.f32 %v351, %v387
        %v394 = vadd.f32 %v391, %v392
        %v395 = vadd.f32 %v394, %v393
        %396 = vadd.xlane.f32.xlu0 %v395
        %v397 = vpop.xlane.xlu0 %396
        %v398 = vmul.f32 %v397, 0.0078125
        %v399 = vmul.f32 %v398, %v385
        %v400 = vmul.f32 %v398, %v386
        %v401 = vmul.f32 %v398, %v387
        %v402 = vadd.f32 %v381, %v399
        %v403 = vadd.f32 %v382, %v400
        %v404 = vadd.f32 %v383, %v401
        %v406 = vperm.slane %v362, 0
        %v407 = vperm.slane %v362, 1
        %v408 = vperm.slane %v362, 2
        %v412 = vmul.f32 %v349, %v406
        %v413 = vmul.f32 %v350, %v407
        %v414 = vmul.f32 %v351, %v408
        %v415 = vadd.f32 %v412, %v413
        %v416 = vadd.f32 %v415, %v414
        %417 = vadd.xlane.f32.xlu0 %v416
        %v418 = vpop.xlane.xlu0 %417
        %v419 = vmul.f32 %v418, 0.0078125
        %v420 = vmul.f32 %v419, %v406
        %v421 = vmul.f32 %v419, %v407
        %v422 = vmul.f32 %v419, %v408
        %v423 = vadd.f32 %v402, %v420
        %v424 = vadd.f32 %v403, %v421
        %v425 = vadd.f32 %v404, %v422
        %v426 = vsub.f32 %v349, %v423
        %v427 = vsub.f32 %v350, %v424
        %v428 = vsub.f32 %v351, %v425
        %v429 = vmul.f32 %v426, %v364
        %v430 = vmul.f32 %v427, %v365
        %v431 = vmul.f32 %v428, %v366
        %v432 = vmul.f32 %v429, %v429
        %v433 = vmul.f32 %v430, %v430
        %v434 = vmul.f32 %v431, %v431
        %v435 = vadd.f32 %v432, %v433
        %v436 = vadd.f32 %v435, %v434
        %437 = vadd.xlane.f32.xlu0 %v436
        %v438 = vpop.xlane.xlu0 %437
        %v439 = vmul.f32 %v438, 0.007874016
        %v440 = vmul.f32 %v439, %v364
        %v441 = vmul.f32 %v439, %v365
        %v442 = vmul.f32 %v439, %v366
        %v443 = vadd.f32 %v440, 0.0
        %v444 = vadd.f32 %v441, 0.0
        %v445 = vadd.f32 %v442, 0.0
        %v446 = vmul.f32 %v426, %v385
        %v447 = vmul.f32 %v427, %v386
        %v448 = vmul.f32 %v428, %v387
        %v449 = vmul.f32 %v446, %v446
        %v450 = vmul.f32 %v447, %v447
        %v451 = vmul.f32 %v448, %v448
        %v452 = vadd.f32 %v449, %v450
        %v453 = vadd.f32 %v452, %v451
        %454 = vadd.xlane.f32.xlu0 %v453
        %v455 = vpop.xlane.xlu0 %454
        %v456 = vmul.f32 %v455, 0.007874016
        %v457 = vmul.f32 %v456, %v385
        %v458 = vmul.f32 %v456, %v386
        %v459 = vmul.f32 %v456, %v387
        %v460 = vadd.f32 %v443, %v457
        %v461 = vadd.f32 %v444, %v458
        %v462 = vadd.f32 %v445, %v459
        %v463 = vmul.f32 %v426, %v406
        %v464 = vmul.f32 %v427, %v407
        %v465 = vmul.f32 %v428, %v408
        %v466 = vmul.f32 %v463, %v463
        %v467 = vmul.f32 %v464, %v464
        %v468 = vmul.f32 %v465, %v465
        %v469 = vadd.f32 %v466, %v467
        %v470 = vadd.f32 %v469, %v468
        %471 = vadd.xlane.f32.xlu0 %v470
        %v472 = vpop.xlane.xlu0 %471
        %v473 = vmul.f32 %v472, 0.007874016
        %v474 = vmul.f32 %v473, %v406
        %v475 = vmul.f32 %v473, %v407
        %v476 = vmul.f32 %v473, %v408
        %v477 = vadd.f32 %v460, %v474
        %v478 = vadd.f32 %v461, %v475
        %v479 = vadd.f32 %v462, %v476
        %v480 = vrsqrt.pop %v477
        %v481 = vmul.f32 %v480, %v477
        %v482 = vmul.f32 %v481, %v480
        %v483 = vmul.f32 0.5, %v482
        %v484 = vsub.f32 1.5, %v483
        %v485 = vmul.f32 %v480, %v484
        %v486 = vmul.f32 %v477, %v485
        %vm487 = vcmp.eq.f32.partialorder %v477, inf
        %v488 = vsel %vm487, %v477, %v486
        %vm489 = vcmp.eq.f32.partialorder %v477, 0.0
        %v490 = vand.u32 %v477, 2147483648
        %v491 = vsel %vm489, %v490, %v488
        %v492 = vrsqrt.pop %v478
        %v493 = vmul.f32 %v492, %v478
        %v494 = vmul.f32 %v493, %v492
        %v495 = vmul.f32 0.5, %v494
        %v496 = vsub.f32 1.5, %v495
        %v497 = vmul.f32 %v492, %v496
        %v498 = vmul.f32 %v478, %v497
        %vm499 = vcmp.eq.f32.partialorder %v478, inf
        %v500 = vsel %vm499, %v478, %v498
        %vm501 = vcmp.eq.f32.partialorder %v478, 0.0
        %v502 = vand.u32 %v478, 2147483648
        %v503 = vsel %vm501, %v502, %v500
        %v504 = vrsqrt.pop %v479
        %v505 = vmul.f32 %v504, %v479
        %v506 = vmul.f32 %v505, %v504
        %v507 = vmul.f32 0.5, %v506
        %v508 = vsub.f32 1.5, %v507
        %v509 = vmul.f32 %v504, %v508
        %v510 = vmul.f32 %v479, %v509
        %vm511 = vcmp.eq.f32.partialorder %v479, inf
        %v512 = vsel %vm511, %v479, %v510
        %vm513 = vcmp.eq.f32.partialorder %v479, 0.0
        %v514 = vand.u32 %v479, 2147483648
        %v515 = vsel %vm513, %v514, %v512
        %v516 = vadd.f32 %v491, 1e-06
        %v517 = vadd.f32 %v503, 1e-06
        %v518 = vadd.f32 %v515, 1e-06
        %v519 = vrcp.pop %v516
        %v520 = vrcp.pop %v517
        %v521 = vrcp.pop %v518
        %v522 = vmul.f32 %v426, %v519
        %v523 = vmul.f32 %v427, %v520
        %v524 = vmul.f32 %v428, %v521
        %vm525 = vcmask 64512
        %v527 = vsel %vm525, %v328, 0
        %529 = vmatpush.msra.mxu0 0.0
        %530 = vmatpush.msra.mxu0 0.0
        %531 = vmatpush.msra.mxu0 0.0
        %532 = vmatpush.msra.mxu0 0.0
        %533 = vmatpush.msra.mxu0 0.0
        %534 = vmatpush.msra.mxu0 0.0
        %535 = vmatpush.msra.mxu0 0.0
        %536 = vmatpush.msra.mxu0 0.0
        %537 = vmatpush.msra.mxu0 0.0
        %538 = vmatpush.msra.mxu0 0.0
        %539 = vmatpush.msra.mxu0 0.0
        %540 = vmatpush.msra.mxu0 0.0
        %541 = vmatpush.msra.mxu0 0.0
        %542 = vmatpush.msra.mxu0 0.0
        %543 = vmatpush.msra.mxu0 0.0
        %544 = vmatpush.msra.mxu0 %v522
        %545 = vmatmul.f32.gmra.mxu0 %v527
        %v546 = vpop.f32.mrf.mxu0
        %v547 = vadd.f32 0.0, %v546
        %548 = vdwg.mxu0
        %549 = vmatpush.msra.mxu0 0.0
        %550 = vmatpush.msra.mxu0 0.0
        %551 = vmatpush.msra.mxu0 0.0
        %552 = vmatpush.msra.mxu0 0.0
        %553 = vmatpush.msra.mxu0 0.0
        %554 = vmatpush.msra.mxu0 0.0
        %555 = vmatpush.msra.mxu0 0.0
        %556 = vmatpush.msra.mxu0 0.0
        %557 = vmatpush.msra.mxu0 0.0
        %558 = vmatpush.msra.mxu0 0.0
        %559 = vmatpush.msra.mxu0 0.0
        %560 = vmatpush.msra.mxu0 0.0
        %561 = vmatpush.msra.mxu0 0.0
        %562 = vmatpush.msra.mxu0 0.0
        %563 = vmatpush.msra.mxu0 0.0
        %564 = vmatpush.msra.mxu0 %v523
        %565 = vmatmul.f32.gmra.mxu0 %v527
        %v566 = vpop.f32.mrf.mxu0
        %v567 = vadd.f32 0.0, %v566
        %568 = vdwg.mxu0
        %569 = vmatpush.msra.mxu0 0.0
        %570 = vmatpush.msra.mxu0 0.0
        %571 = vmatpush.msra.mxu0 0.0
        %572 = vmatpush.msra.mxu0 0.0
        %573 = vmatpush.msra.mxu0 0.0
        %574 = vmatpush.msra.mxu0 0.0
        %575 = vmatpush.msra.mxu0 0.0
        %576 = vmatpush.msra.mxu0 0.0
        %577 = vmatpush.msra.mxu0 0.0
        %578 = vmatpush.msra.mxu0 0.0
        %579 = vmatpush.msra.mxu0 0.0
        %580 = vmatpush.msra.mxu0 0.0
        %581 = vmatpush.msra.mxu0 0.0
        %582 = vmatpush.msra.mxu0 0.0
        %583 = vmatpush.msra.mxu0 0.0
        %584 = vmatpush.msra.mxu0 %v524
        %585 = vmatmul.f32.gmra.mxu0 %v527
        %v586 = vpop.f32.mrf.mxu0
        %v587 = vadd.f32 0.0, %v586
        %588 = vdwg.mxu0
        %589 = vst [vmem:[%s256] sm:$0x3f] %v547
        %590 = vst [vmem:[%s256 + $0x8] sm:$0x3f] %v567
        %591 = vst [vmem:[%s256 + $0x10] sm:$0x3f] %v587
        %v592 = vld [vmem:[%s4] sm:$0xff]
        %v593 = vld [vmem:[%s4 + $0x8] sm:$0xff]
        %v594 = vld [vmem:[%s4 + $0x10] sm:$0xff]
        %v595 = vld [vmem:[%s4 + $0x18] sm:$0xff]
        %v596 = vld [vmem:[%s4 + $0x20] sm:$0xff]
        %v597 = vld [vmem:[%s4 + $0x28] sm:$0xff]
        %v598 = vld [vmem:[%s4 + $0x30] sm:$0xff]
        %v599 = vld [vmem:[%s4 + $0x38] sm:$0xff]
        %v600 = vld [vmem:[%s4 + $0x40] sm:$0xff]
        %v601 = vld [vmem:[%s4 + $0x48] sm:$0xff]
        %v602 = vld [vmem:[%s4 + $0x50] sm:$0xff]
        %v603 = vld [vmem:[%s4 + $0x58] sm:$0xff]
        %v604 = vld [vmem:[%s4 + $0x60] sm:$0xff]
        %v605 = vld [vmem:[%s4 + $0x68] sm:$0xff]
        %v606 = vld [vmem:[%s4 + $0x70] sm:$0xff]
        %v607 = vld [vmem:[%s4 + $0x78] sm:$0xff]
        %v608 = vld [vmem:[%s4 + $0x80] sm:$0xff]
        %v609 = vld [vmem:[%s4 + $0x88] sm:$0xff]
        %v610 = vld [vmem:[%s4 + $0x90] sm:$0xff]
        %v611 = vld [vmem:[%s4 + $0x98] sm:$0xff]
        %v612 = vld [vmem:[%s4 + $0xa0] sm:$0xff]
        %v613 = vld [vmem:[%s4 + $0xa8] sm:$0xff]
        %v614 = vld [vmem:[%s4 + $0xb0] sm:$0xff]
        %v615 = vld [vmem:[%s4 + $0xb8] sm:$0xff]
        %v616 = vld [vmem:[%s4 + $0xc0] sm:$0xff]
        %v617 = vld [vmem:[%s4 + $0xc8] sm:$0xff]
        %v618 = vld [vmem:[%s4 + $0xd0] sm:$0xff]
        %v619 = vld [vmem:[%s4 + $0xd8] sm:$0xff]
        %v620 = vld [vmem:[%s4 + $0xe0] sm:$0xff]
        %v621 = vld [vmem:[%s4 + $0xe8] sm:$0xff]
        %v622 = vld [vmem:[%s4 + $0xf0] sm:$0xff]
        %v623 = vld [vmem:[%s4 + $0xf8] sm:$0xff]
        %v624 = vld [vmem:[%s4 + $0x100] sm:$0xff]
        %v625 = vld [vmem:[%s4 + $0x108] sm:$0xff]
        %v626 = vld [vmem:[%s4 + $0x110] sm:$0xff]
        %v627 = vld [vmem:[%s4 + $0x118] sm:$0xff]
        %v628 = vld [vmem:[%s4 + $0x120] sm:$0xff]
        %v629 = vld [vmem:[%s4 + $0x128] sm:$0xff]
        %v630 = vld [vmem:[%s4 + $0x130] sm:$0xff]
        %v631 = vld [vmem:[%s4 + $0x138] sm:$0xff]
        %v632 = vld [vmem:[%s4 + $0x140] sm:$0xff]
        %v633 = vld [vmem:[%s4 + $0x148] sm:$0xff]
        %v634 = vld [vmem:[%s4 + $0x150] sm:$0xff]
        %v635 = vld [vmem:[%s4 + $0x158] sm:$0xff]
        %v636 = vld [vmem:[%s4 + $0x160] sm:$0xff]
        %v637 = vld [vmem:[%s4 + $0x168] sm:$0xff]
        %v638 = vld [vmem:[%s4 + $0x170] sm:$0xff]
        %v639 = vld [vmem:[%s4 + $0x178] sm:$0xff]
        %v640 = vld [vmem:[%s4 + $0x180] sm:$0x1]
        %v641 = vperm.slane %v640, 0
        %642 = vmatpush.msra.mxu0 %v607
        %643 = vmatpush.msra.mxu0 %v606
        %644 = vmatpush.msra.mxu0 %v605
        %645 = vmatpush.msra.mxu0 %v604
        %646 = vmatpush.msra.mxu0 %v603
        %647 = vmatpush.msra.mxu0 %v602
        %648 = vmatpush.msra.mxu0 %v601
        %649 = vmatpush.msra.mxu0 %v600
        %650 = vmatpush.msra.mxu0 %v599
        %651 = vmatpush.msra.mxu0 %v598
        %652 = vmatpush.msra.mxu0 %v597
        %653 = vmatpush.msra.mxu0 %v596
        %654 = vmatpush.msra.mxu0 %v595
        %655 = vmatpush.msra.mxu0 %v594
        %656 = vmatpush.msra.mxu0 %v593
        %657 = vmatpush.msra.mxu0 %v592
        %658 = vmatmul.f32.gmra.mxu0 %v262
        %v659 = vpop.f32.mrf.mxu0
        %v660 = vadd.f32 %v641, %v659
        %661 = vdwg.mxu0
        %662 = vmatpush.msra.mxu0 %v623
        %663 = vmatpush.msra.mxu0 %v622
        %664 = vmatpush.msra.mxu0 %v621
        %665 = vmatpush.msra.mxu0 %v620
        %666 = vmatpush.msra.mxu0 %v619
        %667 = vmatpush.msra.mxu0 %v618
        %668 = vmatpush.msra.mxu0 %v617
        %669 = vmatpush.msra.mxu0 %v616
        %670 = vmatpush.msra.mxu0 %v615
        %671 = vmatpush.msra.mxu0 %v614
        %672 = vmatpush.msra.mxu0 %v613
        %673 = vmatpush.msra.mxu0 %v612
        %674 = vmatpush.msra.mxu0 %v611
        %675 = vmatpush.msra.mxu0 %v610
        %676 = vmatpush.msra.mxu0 %v609
        %677 = vmatpush.msra.mxu0 %v608
        %678 = vmatmul.f32.gmra.mxu0 %v263
        %v679 = vpop.f32.mrf.mxu0
        %v680 = vadd.f32 %v660, %v679
        %681 = vdwg.mxu0
        %682 = vmatpush.msra.mxu0 %v639
        %683 = vmatpush.msra.mxu0 %v638
        %684 = vmatpush.msra.mxu0 %v637
        %685 = vmatpush.msra.mxu0 %v636
        %686 = vmatpush.msra.mxu0 %v635
        %687 = vmatpush.msra.mxu0 %v634
        %688 = vmatpush.msra.mxu0 %v633
        %689 = vmatpush.msra.mxu0 %v632
        %690 = vmatpush.msra.mxu0 %v631
        %691 = vmatpush.msra.mxu0 %v630
        %692 = vmatpush.msra.mxu0 %v629
        %693 = vmatpush.msra.mxu0 %v628
        %694 = vmatpush.msra.mxu0 %v627
        %695 = vmatpush.msra.mxu0 %v626
        %696 = vmatpush.msra.mxu0 %v625
        %697 = vmatpush.msra.mxu0 %v624
        %698 = vmatmul.f32.gmra.mxu0 %v264
        %v699 = vpop.f32.mrf.mxu0
        %v700 = vadd.f32 %v680, %v699
        %701 = vdwg.mxu0
        %v702 = vld [vmem:[%s4 + $0x188] sm:$0xff]
        %v703 = vadd.f32 %v700, %v702
        %v705 = vsel %vm525, %v284, 0
        %707 = vmatpush.msra.mxu0 0.0
        %708 = vmatpush.msra.mxu0 0.0
        %709 = vmatpush.msra.mxu0 0.0
        %710 = vmatpush.msra.mxu0 0.0
        %711 = vmatpush.msra.mxu0 0.0
        %712 = vmatpush.msra.mxu0 0.0
        %713 = vmatpush.msra.mxu0 0.0
        %714 = vmatpush.msra.mxu0 0.0
        %715 = vmatpush.msra.mxu0 0.0
        %716 = vmatpush.msra.mxu0 0.0
        %717 = vmatpush.msra.mxu0 0.0
        %718 = vmatpush.msra.mxu0 0.0
        %719 = vmatpush.msra.mxu0 0.0
        %720 = vmatpush.msra.mxu0 0.0
        %721 = vmatpush.msra.mxu0 0.0
        %722 = vmatpush.msra.mxu0 %v703
        %723 = vmatmul.f32.gmra.mxu0 %v705
        %v724 = vpop.f32.mrf.mxu0
        %v725 = vadd.f32 0.0, %v724
        %726 = vdwg.mxu0
        %v727 = vld [vmem:[%s4 + $0x190] sm:$0x1]
        %v728 = vld [vmem:[%s4 + $0x198] sm:$0x1]
        %vm729 = vcmask 254976
        %v730 = vsel %vm729, %v725, 0.0
        %731 = vadd.xlane.f32.xlu0 %v730
        %v732 = vpop.xlane.xlu0 %731
        %v733 = vrcp.pop 32.0
        %v734 = vmul.f32 32.0, %v733
        %v735 = vsub.f32 1.0, %v734
        %v736 = vmul.f32 %v733, %v735
        %v737 = vadd.f32 %v733, %v736
        %vm738 = vweird.f32 %v733
        %v739 = vsel %vm738, %v733, %v737
        %v740 = vmul.f32 %v732, %v739
        %v741 = vsub.f32 %v725, %v740
        %v742 = vmul.f32 %v741, %v741
        %v743 = vsel %vm729, %v742, 0.0
        %744 = vadd.xlane.f32.xlu0 %v743
        %v745 = vpop.xlane.xlu0 %744
        %v746 = vmul.f32 %v745, %v739
        %v747 = vadd.f32 %v746, 1e-06
        %v748 = vrsqrt.pop %v747
        %v749 = vmul.f32 %v748, %v747
        %v750 = vmul.f32 %v749, %v748
        %v751 = vmul.f32 0.5, %v750
        %v752 = vsub.f32 1.5, %v751
        %v753 = vmul.f32 %v748, %v752
        %vm754 = vweird.f32 %v747
        %vm755 = vweird.f32 %v748
        %vm756 = vmor %vm754, %vm755
        %v757 = vsel %vm756, %v748, %v753
        %v758 = vmul.f32 %v741, %v757
        %v759 = vperm.slane %v727, 0
        %v760 = vmul.f32 %v758, %v759
        %v761 = vperm.slane %v728, 0
        %v762 = vadd.f32 %v760, %v761
        %v763 = vld [vmem:[%s4 + $0x1a0] sm:$0xff]
        %v764 = vld [vmem:[%s4 + $0x1a8] sm:$0xff]
        %v765 = vld [vmem:[%s4 + $0x1b0] sm:$0xff]
        %v766 = vld [vmem:[%s4 + $0x1b8] sm:$0xff]
        %v767 = vld [vmem:[%s4 + $0x1c0] sm:$0x1]
        %v768 = vperm.slane %v767, 0
        %vm769 = vcmask 261120
        %v771 = vsel %vm769, %v762, 0
        %773 = vmatpush.msra.mxu0 0.0
        %774 = vmatpush.msra.mxu0 0.0
        %775 = vmatpush.msra.mxu0 0.0
        %776 = vmatpush.msra.mxu0 0.0
        %777 = vmatpush.msra.mxu0 0.0
        %778 = vmatpush.msra.mxu0 0.0
        %779 = vmatpush.msra.mxu0 0.0
        %780 = vmatpush.msra.mxu0 0.0
        %781 = vmatpush.msra.mxu0 0.0
        %782 = vmatpush.msra.mxu0 0.0
        %783 = vmatpush.msra.mxu0 0.0
        %784 = vmatpush.msra.mxu0 0.0
        %785 = vmatpush.msra.mxu0 %v766
        %786 = vmatpush.msra.mxu0 %v765
        %787 = vmatpush.msra.mxu0 %v764
        %788 = vmatpush.msra.mxu0 %v763
        %789 = vmatmul.f32.gmra.mxu0 %v771
        %v790 = vpop.f32.mrf.mxu0
        %v791 = vadd.f32 %v768, %v790
        %792 = vdwg.mxu0
        %v794 = vrot.slane %v791, 6
        %795 = vrot.lane.b32.xlu0 %v794, 120
        %v796 = vpop.permute.xlu0 %795
        %v798 = vrot.slane %v791, 4
        %799 = vrot.lane.b32.xlu0 %v798, 112
        %v800 = vpop.permute.xlu0 %799
        %v802 = vrot.slane %v791, 2
        %803 = vrot.lane.b32.xlu0 %v802, 104
        %v804 = vpop.permute.xlu0 %803
        %vm806 = vcmask 1041408
        %v807 = vsel %vm806, %v791, %v796
        %vm808 = vcmask 1043456
        %v809 = vsel %vm808, %v807, %v800
        %vm810 = vcmask 1045504
        %v811 = vsel %vm810, %v809, %v804
        %vm812 = vcmp.ge.s32.totalorder %v266, 0
        %vm813 = vcmp.lt.s32.totalorder %v266, 2
        %vm814 = vmand %vm812, %vm813
        %vm815 = vcmp.ge.s32.totalorder %v268, 0
        %vm816 = vmand %vm814, %vm815
        %vm817 = vcmp.lt.s32.totalorder %v268, 2
        %vm818 = vmand %vm816, %vm817
        %vm819 = vcmp.ge.s32.totalorder %v266, 2
        %vm820 = vcmp.lt.s32.totalorder %v266, 4
        %vm821 = vmand %vm819, %vm820
        %vm822 = vcmp.ge.s32.totalorder %v268, 2
        %vm823 = vmand %vm821, %vm822
        %vm824 = vcmp.lt.s32.totalorder %v268, 4
        %vm825 = vmand %vm823, %vm824
        %vm826 = vmor %vm818, %vm825
        %vm827 = vcmp.ge.s32.totalorder %v266, 4
        %vm828 = vcmp.lt.s32.totalorder %v266, 6
        %vm829 = vmand %vm827, %vm828
        %vm830 = vcmp.ge.s32.totalorder %v268, 4
        %vm831 = vmand %vm829, %vm830
        %vm832 = vcmp.lt.s32.totalorder %v268, 6
        %vm833 = vmand %vm831, %vm832
        %vm834 = vmor %vm826, %vm833
        %vm835 = vcmp.ge.s32.totalorder %v266, 6
        %vm836 = vcmp.lt.s32.totalorder %v266, 8
        %vm837 = vmand %vm835, %vm836
        %vm838 = vcmp.ge.s32.totalorder %v268, 6
        %vm839 = vmand %vm837, %vm838
        %vm840 = vcmp.lt.s32.totalorder %v268, 8
        %vm841 = vmand %vm839, %vm840
        %vm842 = vmor %vm834, %vm841
        %v843 = vsel %vm842, 0.0, -1e+30
        %845 = vrot.lane.b32.xlu0 %v811, 96
        %v846 = vpop.permute.xlu0 %845
        %v847 = vsel %vm525, %v811, 0
        %v849 = vsel %vm525, %v846, 0
        %851 = vmatpush.xpose.msra.mxu0 0.0
        %852 = vmatpush.xpose.msra.mxu0 0.0
        %853 = vmatpush.xpose.msra.mxu0 0.0
        %854 = vmatpush.xpose.msra.mxu0 0.0
        %855 = vmatpush.xpose.msra.mxu0 0.0
        %856 = vmatpush.xpose.msra.mxu0 0.0
        %857 = vmatpush.xpose.msra.mxu0 0.0
        %858 = vmatpush.xpose.msra.mxu0 0.0
        %859 = vmatpush.xpose.msra.mxu0 0.0
        %860 = vmatpush.xpose.msra.mxu0 0.0
        %861 = vmatpush.xpose.msra.mxu0 0.0
        %862 = vmatpush.xpose.msra.mxu0 0.0
        %863 = vmatpush.xpose.msra.mxu0 0.0
        %864 = vmatpush.xpose.msra.mxu0 0.0
        %865 = vmatpush.xpose.msra.mxu0 0.0
        %866 = vmatpush.xpose.msra.mxu0 %v849
        %867 = vmatmul.f32.gmra.mxu0 %v847
        %v868 = vpop.f32.mrf.mxu0
        %v869 = vadd.f32 0.0, %v868
        %870 = vdwg.mxu0
        %v871 = vmul.f32 %v869, 0.35355338
        %v872 = vadd.f32 %v871, %v843
        %v873 = vsel %vm525, %v872, -inf
        %874 = vmax.xlane.f32.xlu0 %v873
        %v875 = vpop.xlane.xlu0 %874
        %v876 = vsub.f32 %v872, %v875
        %v877 = vmul.f32 %v876, 1.442695
        %v878 = vpow.pop %v877
        %v879 = vsel %vm525, %v878, 0.0
        %880 = vadd.xlane.f32.xlu0 %v879
        %v881 = vpop.xlane.xlu0 %880
        %v882 = vrcp.pop %v881
        %v883 = vmul.f32 %v878, %v882
        %884 = vrot.lane.b32.xlu0 %v811, 64
        %v885 = vpop.permute.xlu0 %884
        %v888 = vsel %vm525, %v883, 0
        %890 = vmatpush.msra.mxu0 0.0
        %891 = vmatpush.msra.mxu0 0.0
        %892 = vmatpush.msra.mxu0 0.0
        %893 = vmatpush.msra.mxu0 0.0
        %894 = vmatpush.msra.mxu0 0.0
        %895 = vmatpush.msra.mxu0 0.0
        %896 = vmatpush.msra.mxu0 0.0
        %897 = vmatpush.msra.mxu0 0.0
        %898 = vmatpush.msra.mxu0 0.0
        %899 = vmatpush.msra.mxu0 0.0
        %900 = vmatpush.msra.mxu0 0.0
        %901 = vmatpush.msra.mxu0 0.0
        %902 = vmatpush.msra.mxu0 0.0
        %903 = vmatpush.msra.mxu0 0.0
        %904 = vmatpush.msra.mxu0 0.0
        %905 = vmatpush.msra.mxu0 %v885
        %906 = vmatmul.f32.gmra.mxu0 %v888
        %v907 = vpop.f32.mrf.mxu0
        %v908 = vadd.f32 0.0, %v907
        %909 = vdwg.mxu0
        %v911 = vrot.slane %v908, 2
        %912 = vrot.lane.b32.xlu0 %v911, 8
        %v913 = vpop.permute.xlu0 %912
        %v915 = vrot.slane %v908, 4
        %916 = vrot.lane.b32.xlu0 %v915, 16
        %v917 = vpop.permute.xlu0 %916
        %v919 = vrot.slane %v908, 6
        %920 = vrot.lane.b32.xlu0 %v919, 24
        %v921 = vpop.permute.xlu0 %920
        %v923 = vsel %vm525, %v908, %v913
        %vm924 = vcmask 130048
        %v925 = vsel %vm924, %v923, %v917
        %vm926 = vcmask 195584
        %v927 = vsel %vm926, %v925, %v921
        %v928 = vld [vmem:[%s4 + $0x1c8] sm:$0xff]
        %v929 = vld [vmem:[%s4 + $0x1d0] sm:$0xff]
        %v930 = vld [vmem:[%s4 + $0x1d8] sm:$0xff]
        %v931 = vld [vmem:[%s4 + $0x1e0] sm:$0xff]
        %v933 = vsel %vm769, %v927, 0
        %935 = vmatpush.msra.mxu0 0.0
        %936 = vmatpush.msra.mxu0 0.0
        %937 = vmatpush.msra.mxu0 0.0
        %938 = vmatpush.msra.mxu0 0.0
        %939 = vmatpush.msra.mxu0 0.0
        %940 = vmatpush.msra.mxu0 0.0
        %941 = vmatpush.msra.mxu0 0.0
        %942 = vmatpush.msra.mxu0 0.0
        %943 = vmatpush.msra.mxu0 0.0
        %944 = vmatpush.msra.mxu0 0.0
        %945 = vmatpush.msra.mxu0 0.0
        %946 = vmatpush.msra.mxu0 0.0
        %947 = vmatpush.msra.mxu0 %v931
        %948 = vmatpush.msra.mxu0 %v930
        %949 = vmatpush.msra.mxu0 %v929
        %950 = vmatpush.msra.mxu0 %v928
        %951 = vmatmul.f32.gmra.mxu0 %v933
        %v952 = vpop.f32.mrf.mxu0
        %v953 = vadd.f32 0.0, %v952
        %954 = vdwg.mxu0
        %v955 = vadd.f32 %v725, %v953
        %v956 = vld [vmem:[%s4 + $0x1e8] sm:$0x1]
        %v957 = vperm.slane %v956, 0
        %v958 = vadd.f32 %v955, %v957
        %v959 = vld [vmem:[%s4 + $0x1f0] sm:$0x1]
        %v960 = vld [vmem:[%s4 + $0x1f8] sm:$0x1]
        %v961 = vsel %vm729, %v958, 0.0
        %962 = vadd.xlane.f32.xlu0 %v961
        %v963 = vpop.xlane.xlu0 %962
        %v964 = vmul.f32 %v963, %v739
        %v965 = vsub.f32 %v958, %v964
        %v966 = vmul.f32 %v965, %v965
        %v967 = vsel %vm729, %v966, 0.0
        %968 = vadd.xlane.f32.xlu0 %v967
        %v969 = vpop.xlane.xlu0 %968
        %v970 = vmul.f32 %v969, %v739
        %v971 = vadd.f32 %v970, 1e-06
        %v972 = vrsqrt.pop %v971
        %v973 = vmul.f32 %v972, %v971
        %v974 = vmul.f32 %v973, %v972
        %v975 = vmul.f32 0.5, %v974
        %v976 = vsub.f32 1.5, %v975
        %v977 = vmul.f32 %v972, %v976
        %vm978 = vweird.f32 %v971
        %vm979 = vweird.f32 %v972
        %vm980 = vmor %vm978, %vm979
        %v981 = vsel %vm980, %v972, %v977
        %v982 = vmul.f32 %v965, %v981
        %v983 = vperm.slane %v959, 0
        %v984 = vmul.f32 %v982, %v983
        %v985 = vperm.slane %v960, 0
        %v986 = vadd.f32 %v984, %v985
        %v987 = vld [vmem:[%s4 + $0x200] sm:$0xff]
        %v988 = vld [vmem:[%s4 + $0x208] sm:$0xff]
        %v989 = vld [vmem:[%s4 + $0x210] sm:$0xff]
        %v990 = vld [vmem:[%s4 + $0x218] sm:$0xff]
        %v991 = vld [vmem:[%s4 + $0x220] sm:$0x1]
        %v992 = vperm.slane %v991, 0
        %v994 = vsel %vm769, %v986, 0
        %996 = vmatpush.msra.mxu0 0.0
        %997 = vmatpush.msra.mxu0 0.0
        %998 = vmatpush.msra.mxu0 0.0
        %999 = vmatpush.msra.mxu0 0.0
        %1000 = vmatpush.msra.mxu0 0.0
        %1001 = vmatpush.msra.mxu0 0.0
        %1002 = vmatpush.msra.mxu0 0.0
        %1003 = vmatpush.msra.mxu0 0.0
        %1004 = vmatpush.msra.mxu0 0.0
        %1005 = vmatpush.msra.mxu0 0.0
        %1006 = vmatpush.msra.mxu0 0.0
        %1007 = vmatpush.msra.mxu0 0.0
        %1008 = vmatpush.msra.mxu0 %v990
        %1009 = vmatpush.msra.mxu0 %v989
        %1010 = vmatpush.msra.mxu0 %v988
        %1011 = vmatpush.msra.mxu0 %v987
        %1012 = vmatmul.f32.gmra.mxu0 %v994
        %v1013 = vpop.f32.mrf.mxu0
        %v1014 = vadd.f32 %v992, %v1013
        %1015 = vdwg.mxu0
        %v1016 = vmul.f32 %v1014, %v1014
        %v1017 = vmul.f32 %v1014, %v1016
        %v1018 = vmul.f32 %v1017, 0.044715
        %v1019 = vadd.f32 %v1014, %v1018
        %v1020 = vmul.f32 %v1019, 0.7978846
        %v1021 = vtanh.pop %v1020
        %v1022 = vadd.f32 %v1021, 1.0
        %v1023 = vmul.f32 %v1022, 0.5
        %v1024 = vmul.f32 %v1014, %v1023
        %v1025 = vld [vmem:[%s4 + $0x228] sm:$0xff]
        %v1026 = vld [vmem:[%s4 + $0x230] sm:$0xff]
        %v1027 = vld [vmem:[%s4 + $0x238] sm:$0xff]
        %v1028 = vld [vmem:[%s4 + $0x240] sm:$0xff]
        %v1029 = vld [vmem:[%s4 + $0x248] sm:$0xff]
        %v1030 = vld [vmem:[%s4 + $0x250] sm:$0xff]
        %v1031 = vld [vmem:[%s4 + $0x258] sm:$0xff]
        %v1032 = vld [vmem:[%s4 + $0x260] sm:$0xff]
        %v1033 = vld [vmem:[%s4 + $0x268] sm:$0xff]
        %v1034 = vld [vmem:[%s4 + $0x270] sm:$0xff]
        %v1035 = vld [vmem:[%s4 + $0x278] sm:$0xff]
        %v1036 = vld [vmem:[%s4 + $0x280] sm:$0xff]
        %v1037 = vld [vmem:[%s4 + $0x288] sm:$0xff]
        %v1038 = vld [vmem:[%s4 + $0x290] sm:$0xff]
        %v1039 = vld [vmem:[%s4 + $0x298] sm:$0xff]
        %v1040 = vld [vmem:[%s4 + $0x2a0] sm:$0xff]
        %v1041 = vld [vmem:[%s4 + $0x2a8] sm:$0x1]
        %v1042 = vperm.slane %v1041, 0
        %1043 = vmatpush.msra.mxu0 %v1040
        %1044 = vmatpush.msra.mxu0 %v1039
        %1045 = vmatpush.msra.mxu0 %v1038
        %1046 = vmatpush.msra.mxu0 %v1037
        %1047 = vmatpush.msra.mxu0 %v1036
        %1048 = vmatpush.msra.mxu0 %v1035
        %1049 = vmatpush.msra.mxu0 %v1034
        %1050 = vmatpush.msra.mxu0 %v1033
        %1051 = vmatpush.msra.mxu0 %v1032
        %1052 = vmatpush.msra.mxu0 %v1031
        %1053 = vmatpush.msra.mxu0 %v1030
        %1054 = vmatpush.msra.mxu0 %v1029
        %1055 = vmatpush.msra.mxu0 %v1028
        %1056 = vmatpush.msra.mxu0 %v1027
        %1057 = vmatpush.msra.mxu0 %v1026
        %1058 = vmatpush.msra.mxu0 %v1025
        %1059 = vmatmul.f32.gmra.mxu0 %v1024
        %v1060 = vpop.f32.mrf.mxu0
        %v1061 = vadd.f32 %v1042, %v1060
        %1062 = vdwg.mxu0
        %v1063 = vadd.f32 %v958, %v1061
        %v1064 = vld [vmem:[%s4 + $0x2b0] sm:$0x1]
        %v1065 = vld [vmem:[%s4 + $0x2b8] sm:$0x1]
        %v1066 = vsel %vm729, %v1063, 0.0
        %1067 = vadd.xlane.f32.xlu0 %v1066
        %v1068 = vpop.xlane.xlu0 %1067
        %v1069 = vmul.f32 %v1068, %v739
        %v1070 = vsub.f32 %v1063, %v1069
        %v1071 = vmul.f32 %v1070, %v1070
        %v1072 = vsel %vm729, %v1071, 0.0
        %1073 = vadd.xlane.f32.xlu0 %v1072
        %v1074 = vpop.xlane.xlu0 %1073
        %v1075 = vmul.f32 %v1074, %v739
        %v1076 = vadd.f32 %v1075, 1e-06
        %v1077 = vrsqrt.pop %v1076
        %v1078 = vmul.f32 %v1077, %v1076
        %v1079 = vmul.f32 %v1078, %v1077
        %v1080 = vmul.f32 0.5, %v1079
        %v1081 = vsub.f32 1.5, %v1080
        %v1082 = vmul.f32 %v1077, %v1081
        %vm1083 = vweird.f32 %v1076
        %vm1084 = vweird.f32 %v1077
        %vm1085 = vmor %vm1083, %vm1084
        %v1086 = vsel %vm1085, %v1077, %v1082
        %v1087 = vmul.f32 %v1070, %v1086
        %v1088 = vperm.slane %v1064, 0
        %v1089 = vmul.f32 %v1087, %v1088
        %v1090 = vperm.slane %v1065, 0
        %v1091 = vadd.f32 %v1089, %v1090
        %v1092 = vld [vmem:[%s4 + $0x2c0] sm:$0xff]
        %v1093 = vld [vmem:[%s4 + $0x2c8] sm:$0xff]
        %v1094 = vld [vmem:[%s4 + $0x2d0] sm:$0xff]
        %v1095 = vld [vmem:[%s4 + $0x2d8] sm:$0xff]
        %v1096 = vld [vmem:[%s4 + $0x2e0] sm:$0x1]
        %v1097 = vperm.slane %v1096, 0
        %v1099 = vsel %vm769, %v1091, 0
        %1101 = vmatpush.msra.mxu0 0.0
        %1102 = vmatpush.msra.mxu0 0.0
        %1103 = vmatpush.msra.mxu0 0.0
        %1104 = vmatpush.msra.mxu0 0.0
        %1105 = vmatpush.msra.mxu0 0.0
        %1106 = vmatpush.msra.mxu0 0.0
        %1107 = vmatpush.msra.mxu0 0.0
        %1108 = vmatpush.msra.mxu0 0.0
        %1109 = vmatpush.msra.mxu0 0.0
        %1110 = vmatpush.msra.mxu0 0.0
        %1111 = vmatpush.msra.mxu0 0.0
        %1112 = vmatpush.msra.mxu0 0.0
        %1113 = vmatpush.msra.mxu0 %v1095
        %1114 = vmatpush.msra.mxu0 %v1094
        %1115 = vmatpush.msra.mxu0 %v1093
        %1116 = vmatpush.msra.mxu0 %v1092
        %1117 = vmatmul.f32.gmra.mxu0 %v1099
        %v1118 = vpop.f32.mrf.mxu0
        %v1119 = vadd.f32 %v1097, %v1118
        %1120 = vdwg.mxu0
        %v1122 = vrot.slane %v1119, 6
        %1123 = vrot.lane.b32.xlu0 %v1122, 120
        %v1124 = vpop.permute.xlu0 %1123
        %v1126 = vrot.slane %v1119, 4
        %1127 = vrot.lane.b32.xlu0 %v1126, 112
        %v1128 = vpop.permute.xlu0 %1127
        %v1130 = vrot.slane %v1119, 2
        %1131 = vrot.lane.b32.xlu0 %v1130, 104
        %v1132 = vpop.permute.xlu0 %1131
        %v1134 = vsel %vm806, %v1119, %v1124
        %v1135 = vsel %vm808, %v1134, %v1128
        %v1136 = vsel %vm810, %v1135, %v1132
        %1138 = vrot.lane.b32.xlu0 %v1136, 96
        %v1139 = vpop.permute.xlu0 %1138
        %v1140 = vsel %vm525, %v1136, 0
        %v1142 = vsel %vm525, %v1139, 0
        %1144 = vmatpush.xpose.msra.mxu0 0.0
        %1145 = vmatpush.xpose.msra.mxu0 0.0
        %1146 = vmatpush.xpose.msra.mxu0 0.0
        %1147 = vmatpush.xpose.msra.mxu0 0.0
        %1148 = vmatpush.xpose.msra.mxu0 0.0
        %1149 = vmatpush.xpose.msra.mxu0 0.0
        %1150 = vmatpush.xpose.msra.mxu0 0.0
        %1151 = vmatpush.xpose.msra.mxu0 0.0
        %1152 = vmatpush.xpose.msra.mxu0 0.0
        %1153 = vmatpush.xpose.msra.mxu0 0.0
        %1154 = vmatpush.xpose.msra.mxu0 0.0
        %1155 = vmatpush.xpose.msra.mxu0 0.0
        %1156 = vmatpush.xpose.msra.mxu0 0.0
        %1157 = vmatpush.xpose.msra.mxu0 0.0
        %1158 = vmatpush.xpose.msra.mxu0 0.0
        %1159 = vmatpush.xpose.msra.mxu0 %v1142
        %1160 = vmatmul.f32.gmra.mxu0 %v1140
        %v1161 = vpop.f32.mrf.mxu0
        %v1162 = vadd.f32 0.0, %v1161
        %1163 = vdwg.mxu0
        %v1164 = vmul.f32 %v1162, 0.35355338
        %v1165 = vadd.f32 %v1164, %v843
        %v1166 = vsel %vm525, %v1165, -inf
        %1167 = vmax.xlane.f32.xlu0 %v1166
        %v1168 = vpop.xlane.xlu0 %1167
        %v1169 = vsub.f32 %v1165, %v1168
        %v1170 = vmul.f32 %v1169, 1.442695
        %v1171 = vpow.pop %v1170
        %v1172 = vsel %vm525, %v1171, 0.0
        %1173 = vadd.xlane.f32.xlu0 %v1172
        %v1174 = vpop.xlane.xlu0 %1173
        %v1175 = vrcp.pop %v1174
        %v1176 = vmul.f32 %v1171, %v1175
        %1177 = vrot.lane.b32.xlu0 %v1136, 64
        %v1178 = vpop.permute.xlu0 %1177
        %v1181 = vsel %vm525, %v1176, 0
        %1183 = vmatpush.msra.mxu0 0.0
        %1184 = vmatpush.msra.mxu0 0.0
        %1185 = vmatpush.msra.mxu0 0.0
        %1186 = vmatpush.msra.mxu0 0.0
        %1187 = vmatpush.msra.mxu0 0.0
        %1188 = vmatpush.msra.mxu0 0.0
        %1189 = vmatpush.msra.mxu0 0.0
        %1190 = vmatpush.msra.mxu0 0.0
        %1191 = vmatpush.msra.mxu0 0.0
        %1192 = vmatpush.msra.mxu0 0.0
        %1193 = vmatpush.msra.mxu0 0.0
        %1194 = vmatpush.msra.mxu0 0.0
        %1195 = vmatpush.msra.mxu0 0.0
        %1196 = vmatpush.msra.mxu0 0.0
        %1197 = vmatpush.msra.mxu0 0.0
        %1198 = vmatpush.msra.mxu0 %v1178
        %1199 = vmatmul.f32.gmra.mxu0 %v1181
        %v1200 = vpop.f32.mrf.mxu0
        %v1201 = vadd.f32 0.0, %v1200
        %1202 = vdwg.mxu0
        %v1204 = vrot.slane %v1201, 2
        %1205 = vrot.lane.b32.xlu0 %v1204, 8
        %v1206 = vpop.permute.xlu0 %1205
        %v1208 = vrot.slane %v1201, 4
        %1209 = vrot.lane.b32.xlu0 %v1208, 16
        %v1210 = vpop.permute.xlu0 %1209
        %v1212 = vrot.slane %v1201, 6
        %1213 = vrot.lane.b32.xlu0 %v1212, 24
        %v1214 = vpop.permute.xlu0 %1213
        %v1216 = vsel %vm525, %v1201, %v1206
        %v1217 = vsel %vm924, %v1216, %v1210
        %v1218 = vsel %vm926, %v1217, %v1214
        %v1219 = vld [vmem:[%s4 + $0x2e8] sm:$0xff]
        %v1220 = vld [vmem:[%s4 + $0x2f0] sm:$0xff]
        %v1221 = vld [vmem:[%s4 + $0x2f8] sm:$0xff]
        %v1222 = vld [vmem:[%s4 + $0x300] sm:$0xff]
        %v1224 = vsel %vm769, %v1218, 0
        %1226 = vmatpush.msra.mxu0 0.0
        %1227 = vmatpush.msra.mxu0 0.0
        %1228 = vmatpush.msra.mxu0 0.0
        %1229 = vmatpush.msra.mxu0 0.0
        %1230 = vmatpush.msra.mxu0 0.0
        %1231 = vmatpush.msra.mxu0 0.0
        %1232 = vmatpush.msra.mxu0 0.0
        %1233 = vmatpush.msra.mxu0 0.0
        %1234 = vmatpush.msra.mxu0 0.0
        %1235 = vmatpush.msra.mxu0 0.0
        %1236 = vmatpush.msra.mxu0 0.0
        %1237 = vmatpush.msra.mxu0 0.0
        %1238 = vmatpush.msra.mxu0 %v1222
        %1239 = vmatpush.msra.mxu0 %v1221
        %1240 = vmatpush.msra.mxu0 %v1220
        %1241 = vmatpush.msra.mxu0 %v1219
        %1242 = vmatmul.f32.gmra.mxu0 %v1224
        %v1243 = vpop.f32.mrf.mxu0
        %v1244 = vadd.f32 0.0, %v1243
        %1245 = vdwg.mxu0
        %v1246 = vadd.f32 %v1063, %v1244
        %v1247 = vld [vmem:[%s4 + $0x308] sm:$0x1]
        %v1248 = vperm.slane %v1247, 0
        %v1249 = vadd.f32 %v1246, %v1248
        %v1250 = vld [vmem:[%s4 + $0x310] sm:$0x1]
        %v1251 = vld [vmem:[%s4 + $0x318] sm:$0x1]
        %v1252 = vsel %vm729, %v1249, 0.0
        %1253 = vadd.xlane.f32.xlu0 %v1252
        %v1254 = vpop.xlane.xlu0 %1253
        %v1255 = vmul.f32 %v1254, %v739
        %v1256 = vsub.f32 %v1249, %v1255
        %v1257 = vmul.f32 %v1256, %v1256
        %v1258 = vsel %vm729, %v1257, 0.0
        %1259 = vadd.xlane.f32.xlu0 %v1258
        %v1260 = vpop.xlane.xlu0 %1259
        %v1261 = vmul.f32 %v1260, %v739
        %v1262 = vadd.f32 %v1261, 1e-06
        %v1263 = vrsqrt.pop %v1262
        %v1264 = vmul.f32 %v1263, %v1262
        %v1265 = vmul.f32 %v1264, %v1263
        %v1266 = vmul.f32 0.5, %v1265
        %v1267 = vsub.f32 1.5, %v1266
        %v1268 = vmul.f32 %v1263, %v1267
        %vm1269 = vweird.f32 %v1262
        %vm1270 = vweird.f32 %v1263
        %vm1271 = vmor %vm1269, %vm1270
        %v1272 = vsel %vm1271, %v1263, %v1268
        %v1273 = vmul.f32 %v1256, %v1272
        %v1274 = vperm.slane %v1250, 0
        %v1275 = vmul.f32 %v1273, %v1274
        %v1276 = vperm.slane %v1251, 0
        %v1277 = vadd.f32 %v1275, %v1276
        %v1278 = vld [vmem:[%s4 + $0x320] sm:$0xff]
        %v1279 = vld [vmem:[%s4 + $0x328] sm:$0xff]
        %v1280 = vld [vmem:[%s4 + $0x330] sm:$0xff]
        %v1281 = vld [vmem:[%s4 + $0x338] sm:$0xff]
        %v1282 = vld [vmem:[%s4 + $0x340] sm:$0x1]
        %v1283 = vperm.slane %v1282, 0
        %v1285 = vsel %vm769, %v1277, 0
        %1287 = vmatpush.msra.mxu0 0.0
        %1288 = vmatpush.msra.mxu0 0.0
        %1289 = vmatpush.msra.mxu0 0.0
        %1290 = vmatpush.msra.mxu0 0.0
        %1291 = vmatpush.msra.mxu0 0.0
        %1292 = vmatpush.msra.mxu0 0.0
        %1293 = vmatpush.msra.mxu0 0.0
        %1294 = vmatpush.msra.mxu0 0.0
        %1295 = vmatpush.msra.mxu0 0.0
        %1296 = vmatpush.msra.mxu0 0.0
        %1297 = vmatpush.msra.mxu0 0.0
        %1298 = vmatpush.msra.mxu0 0.0
        %1299 = vmatpush.msra.mxu0 %v1281
        %1300 = vmatpush.msra.mxu0 %v1280
        %1301 = vmatpush.msra.mxu0 %v1279
        %1302 = vmatpush.msra.mxu0 %v1278
        %1303 = vmatmul.f32.gmra.mxu0 %v1285
        %v1304 = vpop.f32.mrf.mxu0
        %v1305 = vadd.f32 %v1283, %v1304
        %1306 = vdwg.mxu0
        %v1307 = vmul.f32 %v1305, %v1305
        %v1308 = vmul.f32 %v1305, %v1307
        %v1309 = vmul.f32 %v1308, 0.044715
        %v1310 = vadd.f32 %v1305, %v1309
        %v1311 = vmul.f32 %v1310, 0.7978846
        %v1312 = vtanh.pop %v1311
        %v1313 = vadd.f32 %v1312, 1.0
        %v1314 = vmul.f32 %v1313, 0.5
        %v1315 = vmul.f32 %v1305, %v1314
        %v1316 = vld [vmem:[%s4 + $0x348] sm:$0xff]
        %v1317 = vld [vmem:[%s4 + $0x350] sm:$0xff]
        %v1318 = vld [vmem:[%s4 + $0x358] sm:$0xff]
        %v1319 = vld [vmem:[%s4 + $0x360] sm:$0xff]
        %v1320 = vld [vmem:[%s4 + $0x368] sm:$0xff]
        %v1321 = vld [vmem:[%s4 + $0x370] sm:$0xff]
        %v1322 = vld [vmem:[%s4 + $0x378] sm:$0xff]
        %v1323 = vld [vmem:[%s4 + $0x380] sm:$0xff]
        %v1324 = vld [vmem:[%s4 + $0x388] sm:$0xff]
        %v1325 = vld [vmem:[%s4 + $0x390] sm:$0xff]
        %v1326 = vld [vmem:[%s4 + $0x398] sm:$0xff]
        %v1327 = vld [vmem:[%s4 + $0x3a0] sm:$0xff]
        %v1328 = vld [vmem:[%s4 + $0x3a8] sm:$0xff]
        %v1329 = vld [vmem:[%s4 + $0x3b0] sm:$0xff]
        %v1330 = vld [vmem:[%s4 + $0x3b8] sm:$0xff]
        %v1331 = vld [vmem:[%s4 + $0x3c0] sm:$0xff]
        %v1332 = vld [vmem:[%s4 + $0x3c8] sm:$0x1]
        %v1333 = vperm.slane %v1332, 0
        %1334 = vmatpush.msra.mxu0 %v1331
        %1335 = vmatpush.msra.mxu0 %v1330
        %1336 = vmatpush.msra.mxu0 %v1329
        %1337 = vmatpush.msra.mxu0 %v1328
        %1338 = vmatpush.msra.mxu0 %v1327
        %1339 = vmatpush.msra.mxu0 %v1326
        %1340 = vmatpush.msra.mxu0 %v1325
        %1341 = vmatpush.msra.mxu0 %v1324
        %1342 = vmatpush.msra.mxu0 %v1323
        %1343 = vmatpush.msra.mxu0 %v1322
        %1344 = vmatpush.msra.mxu0 %v1321
        %1345 = vmatpush.msra.mxu0 %v1320
        %1346 = vmatpush.msra.mxu0 %v1319
        %1347 = vmatpush.msra.mxu0 %v1318
        %1348 = vmatpush.msra.mxu0 %v1317
        %1349 = vmatpush.msra.mxu0 %v1316
        %1350 = vmatmul.f32.gmra.mxu0 %v1315
        %v1351 = vpop.f32.mrf.mxu0
        %v1352 = vadd.f32 %v1333, %v1351
        %1353 = vdwg.mxu0
        %v1354 = vadd.f32 %v1249, %v1352
        %v1355 = vld [vmem:[%s4 + $0x3d0] sm:$0x1]
        %v1356 = vld [vmem:[%s4 + $0x3d8] sm:$0x1]
        %v1357 = vsel %vm729, %v1354, 0.0
        %1358 = vadd.xlane.f32.xlu0 %v1357
        %v1359 = vpop.xlane.xlu0 %1358
        %v1360 = vmul.f32 %v1359, %v739
        %v1361 = vsub.f32 %v1354, %v1360
        %v1362 = vmul.f32 %v1361, %v1361
        %v1363 = vsel %vm729, %v1362, 0.0
        %1364 = vadd.xlane.f32.xlu0 %v1363
        %v1365 = vpop.xlane.xlu0 %1364
        %v1366 = vmul.f32 %v1365, %v739
        %v1367 = vadd.f32 %v1366, 1e-06
        %v1368 = vrsqrt.pop %v1367
        %v1369 = vmul.f32 %v1368, %v1367
        %v1370 = vmul.f32 %v1369, %v1368
        %v1371 = vmul.f32 0.5, %v1370
        %v1372 = vsub.f32 1.5, %v1371
        %v1373 = vmul.f32 %v1368, %v1372
        %vm1374 = vweird.f32 %v1367
        %vm1375 = vweird.f32 %v1368
        %vm1376 = vmor %vm1374, %vm1375
        %v1377 = vsel %vm1376, %v1368, %v1373
        %v1378 = vmul.f32 %v1361, %v1377
        %v1379 = vperm.slane %v1355, 0
        %v1380 = vmul.f32 %v1378, %v1379
        %v1381 = vperm.slane %v1356, 0
        %v1382 = vadd.f32 %v1380, %v1381
        %v1383 = vsel %vm729, %v1382, 0.0
        %v1384 = vrot.slane %v1383, 4
        %v1385 = vadd.f32 %v1383, %v1384
        %v1386 = vrot.slane %v1385, 2
        %v1387 = vadd.f32 %v1385, %v1386
        %v1388 = vrot.slane %v1387, 1
        %v1389 = vadd.f32 %v1387, %v1388
        %v1390 = vrcp.pop 2.0
        %v1391 = vmul.f32 2.0, %v1390
        %v1392 = vsub.f32 1.0, %v1391
        %v1393 = vmul.f32 %v1390, %v1392
        %v1394 = vadd.f32 %v1390, %v1393
        %vm1395 = vweird.f32 %v1390
        %v1396 = vsel %vm1395, %v1390, %v1394
        %v1397 = vmul.f32 %v1389, %v1396
        %v1398 = vld [vmem:[%s4 + $0x400] sm:$0xff]
        %v1399 = vld [vmem:[%s4 + $0x408] sm:$0xff]
        %v1400 = vld [vmem:[%s4 + $0x410] sm:$0xff]
        %v1401 = vld [vmem:[%s4 + $0x418] sm:$0xff]
        %v1402 = vld [vmem:[%s4 + $0x420] sm:$0x1]
        %v1404 = vsel %vm769, %v1397, 0
        %1406 = vmatpush.msra.mxu0 0.0
        %1407 = vmatpush.msra.mxu0 0.0
        %1408 = vmatpush.msra.mxu0 0.0
        %1409 = vmatpush.msra.mxu0 0.0
        %1410 = vmatpush.msra.mxu0 0.0
        %1411 = vmatpush.msra.mxu0 0.0
        %1412 = vmatpush.msra.mxu0 0.0
        %1413 = vmatpush.msra.mxu0 0.0
        %1414 = vmatpush.msra.mxu0 0.0
        %1415 = vmatpush.msra.mxu0 0.0
        %1416 = vmatpush.msra.mxu0 0.0
        %1417 = vmatpush.msra.mxu0 0.0
        %1418 = vmatpush.msra.mxu0 %v1401
        %1419 = vmatpush.msra.mxu0 %v1400
        %1420 = vmatpush.msra.mxu0 %v1399
        %1421 = vmatpush.msra.mxu0 %v1398
        %1422 = vmatmul.f32.gmra.mxu0 %v1404
        %v1423 = vpop.f32.mrf.mxu0
        %v1424 = vadd.f32 %v1402, %v1423
        %1425 = vdwg.mxu0
        %vm1426 = vcmask 73728
        %1427 = vst.msk [vmem:[%s246] sm:$0x1] %vm1426, %v1424
        %v1428 = vld [vmem:[%s4 + $0x3e0] sm:$0xff]
        %v1429 = vld [vmem:[%s4 + $0x3e8] sm:$0xff]
        %v1430 = vld [vmem:[%s4 + $0x3f0] sm:$0xff]
        %v1431 = vld [vmem:[%s4 + $0x3f8] sm:$0xff]
        %v1433 = vsel %vm769, %v1382, 0
        %1435 = vmatpush.msra.mxu0 0.0
        %1436 = vmatpush.msra.mxu0 0.0
        %1437 = vmatpush.msra.mxu0 0.0
        %1438 = vmatpush.msra.mxu0 0.0
        %1439 = vmatpush.msra.mxu0 0.0
        %1440 = vmatpush.msra.mxu0 0.0
        %1441 = vmatpush.msra.mxu0 0.0
        %1442 = vmatpush.msra.mxu0 0.0
        %1443 = vmatpush.msra.mxu0 0.0
        %1444 = vmatpush.msra.mxu0 0.0
        %1445 = vmatpush.msra.mxu0 0.0
        %1446 = vmatpush.msra.mxu0 0.0
        %1447 = vmatpush.msra.mxu0 %v1431
        %1448 = vmatpush.msra.mxu0 %v1430
        %1449 = vmatpush.msra.mxu0 %v1429
        %1450 = vmatpush.msra.mxu0 %v1428
        %1451 = vmatmul.f32.gmra.mxu0 %v1433
        %v1452 = vpop.f32.mrf.mxu0
        %v1453 = vadd.f32 0.0, %v1452
        %1454 = vdwg.mxu0
        %vm1455 = vcmp.eq.s32.totalorder %v268, 0
        %s1456 = sld [smem:[#allocation3 + %s270]]
        %v1457 = vstv %s1456
        %vm1458 = vcmp.eq.s32.totalorder %v266, %v1457
        %vm1459 = vmand %vm1455, %vm1458
        %v1460 = vsel %vm1459, 1.0, 0.0
        %v1461 = vadd.f32 %v1460, 0.0
        %vm1462 = vcmp.eq.s32.totalorder %v268, 1
        %s1463 = sld [smem:[#allocation3 + %s278]]
        %v1464 = vstv %s1463
        %vm1465 = vcmp.eq.s32.totalorder %v266, %v1464
        %vm1466 = vmand %vm1462, %vm1465
        %v1467 = vsel %vm1466, 1.0, 0.0
        %v1468 = vadd.f32 %v1461, %v1467
        %vm1469 = vcmask 15360
        %v1470 = vsel %vm1469, %v1468, 0.0
        %1471 = vadd.xlane.f32.xlu0 %v1470
        %v1472 = vpop.xlane.xlu0 %1471
        %v1473 = vsub.f32 1.0, %v1472
        %v1474 = vld [vmem:[%s4 + $0x428] sm:$0x1]
        %v1475 = vperm.slane %v1474, 0
        %v1476 = vmul.f32 %v1473, %v1475
        %v1478 = vsel %vm1469, %v1468, 0
        %v1481 = vsel %vm806, %v1453, 0
        %1483 = vmatpush.msra.mxu0 0.0
        %1484 = vmatpush.msra.mxu0 0.0
        %1485 = vmatpush.msra.mxu0 0.0
        %1486 = vmatpush.msra.mxu0 0.0
        %1487 = vmatpush.msra.mxu0 0.0
        %1488 = vmatpush.msra.mxu0 0.0
        %1489 = vmatpush.msra.mxu0 0.0
        %1490 = vmatpush.msra.mxu0 0.0
        %1491 = vmatpush.msra.mxu0 0.0
        %1492 = vmatpush.msra.mxu0 0.0
        %1493 = vmatpush.msra.mxu0 0.0
        %1494 = vmatpush.msra.mxu0 0.0
        %1495 = vmatpush.msra.mxu0 0.0
        %1496 = vmatpush.msra.mxu0 0.0
        %1497 = vmatpush.msra.mxu0 0.0
        %1498 = vmatpush.msra.mxu0 %v1481
        %1499 = vmatmul.f32.gmra.mxu0 %v1478
        %v1500 = vpop.f32.mrf.mxu0
        %v1501 = vadd.f32 %v1476, %v1500
        %1502 = vdwg.mxu0
        %v1503 = vld [vmem:[%s4 + $0x430] sm:$0xff]
        %v1504 = vadd.f32 %v1501, %v1503
        %v1505 = vld [vmem:[%s4 + $0x438] sm:$0x1]
        %v1506 = vld [vmem:[%s4 + $0x440] sm:$0x1]
        %v1507 = vsel %vm769, %v1504, 0.0
        %1508 = vadd.xlane.f32.xlu0 %v1507
        %v1509 = vpop.xlane.xlu0 %1508
        %v1510 = vmul.f32 %v1509, %v739
        %v1511 = vsub.f32 %v1504, %v1510
        %v1512 = vmul.f32 %v1511, %v1511
        %v1513 = vsel %vm769, %v1512, 0.0
        %1514 = vadd.xlane.f32.xlu0 %v1513
        %v1515 = vpop.xlane.xlu0 %1514
        %v1516 = vmul.f32 %v1515, %v739
        %v1517 = vadd.f32 %v1516, 1e-06
        %v1518 = vrsqrt.pop %v1517
        %v1519 = vmul.f32 %v1518, %v1517
        %v1520 = vmul.f32 %v1519, %v1518
        %v1521 = vmul.f32 0.5, %v1520
        %v1522 = vsub.f32 1.5, %v1521
        %v1523 = vmul.f32 %v1518, %v1522
        %vm1524 = vweird.f32 %v1517
        %vm1525 = vweird.f32 %v1518
        %vm1526 = vmor %vm1524, %vm1525
        %v1527 = vsel %vm1526, %v1518, %v1523
        %v1528 = vmul.f32 %v1511, %v1527
        %v1529 = vperm.slane %v1505, 0
        %v1530 = vmul.f32 %v1528, %v1529
        %v1531 = vperm.slane %v1506, 0
        %v1532 = vadd.f32 %v1530, %v1531
        %v1533 = vld [vmem:[%s4 + $0x448] sm:$0xff]
        %v1534 = vld [vmem:[%s4 + $0x450] sm:$0xff]
        %v1535 = vld [vmem:[%s4 + $0x458] sm:$0xff]
        %v1536 = vld [vmem:[%s4 + $0x460] sm:$0xff]
        %v1537 = vld [vmem:[%s4 + $0x468] sm:$0x1]
        %v1538 = vperm.slane %v1537, 0
        %v1540 = vsel %vm769, %v1532, 0
        %1542 = vmatpush.msra.mxu0 0.0
        %1543 = vmatpush.msra.mxu0 0.0
        %1544 = vmatpush.msra.mxu0 0.0
        %1545 = vmatpush.msra.mxu0 0.0
        %1546 = vmatpush.msra.mxu0 0.0
        %1547 = vmatpush.msra.mxu0 0.0
        %1548 = vmatpush.msra.mxu0 0.0
        %1549 = vmatpush.msra.mxu0 0.0
        %1550 = vmatpush.msra.mxu0 0.0
        %1551 = vmatpush.msra.mxu0 0.0
        %1552 = vmatpush.msra.mxu0 0.0
        %1553 = vmatpush.msra.mxu0 0.0
        %1554 = vmatpush.msra.mxu0 %v1536
        %1555 = vmatpush.msra.mxu0 %v1535
        %1556 = vmatpush.msra.mxu0 %v1534
        %1557 = vmatpush.msra.mxu0 %v1533
        %1558 = vmatmul.f32.gmra.mxu0 %v1540
        %v1559 = vpop.f32.mrf.mxu0
        %v1560 = vadd.f32 %v1538, %v1559
        %1561 = vdwg.mxu0
        %1563 = vrot.lane.b32.xlu0 %v1560, 120
        %v1564 = vpop.permute.xlu0 %1563
        %1565 = vrot.lane.b32.xlu0 %v1560, 112
        %v1566 = vpop.permute.xlu0 %1565
        %1567 = vrot.lane.b32.xlu0 %v1560, 104
        %v1568 = vpop.permute.xlu0 %1567
        %v1569 = vadd.s32 %v266, 8
        %v1570 = vadd.s32 %v266, 16
        %v1571 = vadd.s32 %v266, 24
        %vm1572 = vcmp.ge.s32.totalorder %v1569, 0
        %vm1573 = vcmp.ge.s32.totalorder %v1570, 0
        %vm1574 = vcmp.ge.s32.totalorder %v1571, 0
        %vm1575 = vcmp.lt.s32.totalorder %v1569, 8
        %vm1576 = vcmp.lt.s32.totalorder %v1570, 8
        %vm1577 = vcmp.lt.s32.totalorder %v1571, 8
        %vm1578 = vmand %vm812, %vm836
        %vm1579 = vmand %vm1572, %vm1575
        %vm1580 = vmand %vm1573, %vm1576
        %vm1581 = vmand %vm1574, %vm1577
        %vm1582 = vmand %vm1578, %vm815
        %vm1583 = vmand %vm1579, %vm815
        %vm1584 = vmand %vm1580, %vm815
        %vm1585 = vmand %vm1581, %vm815
        %vm1586 = vmand %vm1582, %vm840
        %vm1587 = vmand %vm1583, %vm840
        %vm1588 = vmand %vm1584, %vm840
        %vm1589 = vmand %vm1585, %vm840
        %vm1590 = vcmp.ge.s32.totalorder %v266, 8
        %vm1591 = vcmp.ge.s32.totalorder %v1569, 8
        %vm1592 = vcmp.ge.s32.totalorder %v1570, 8
        %vm1593 = vcmp.ge.s32.totalorder %v1571, 8
        %vm1594 = vcmp.lt.s32.totalorder %v266, 16
        %vm1595 = vcmp.lt.s32.totalorder %v1569, 16
        %vm1596 = vcmp.lt.s32.totalorder %v1570, 16
        %vm1597 = vcmp.lt.s32.totalorder %v1571, 16
        %vm1598 = vmand %vm1590, %vm1594
        %vm1599 = vmand %vm1591, %vm1595
        %vm1600 = vmand %vm1592, %vm1596
        %vm1601 = vmand %vm1593, %vm1597
        %vm1602 = vcmp.ge.s32.totalorder %v268, 8
        %vm1603 = vmand %vm1598, %vm1602
        %vm1604 = vmand %vm1599, %vm1602
        %vm1605 = vmand %vm1600, %vm1602
        %vm1606 = vmand %vm1601, %vm1602
        %vm1607 = vcmp.lt.s32.totalorder %v268, 16
        %vm1608 = vmand %vm1603, %vm1607
        %vm1609 = vmand %vm1604, %vm1607
        %vm1610 = vmand %vm1605, %vm1607
        %vm1611 = vmand %vm1606, %vm1607
        %vm1612 = vmor %vm1586, %vm1608
        %vm1613 = vmor %vm1587, %vm1609
        %vm1614 = vmor %vm1588, %vm1610
        %vm1615 = vmor %vm1589, %vm1611
        %vm1616 = vcmp.ge.s32.totalorder %v266, 16
        %vm1617 = vcmp.ge.s32.totalorder %v1569, 16
        %vm1618 = vcmp.ge.s32.totalorder %v1570, 16
        %vm1619 = vcmp.ge.s32.totalorder %v1571, 16
        %vm1620 = vcmp.lt.s32.totalorder %v266, 24
        %vm1621 = vcmp.lt.s32.totalorder %v1569, 24
        %vm1622 = vcmp.lt.s32.totalorder %v1570, 24
        %vm1623 = vcmp.lt.s32.totalorder %v1571, 24
        %vm1624 = vmand %vm1616, %vm1620
        %vm1625 = vmand %vm1617, %vm1621
        %vm1626 = vmand %vm1618, %vm1622
        %vm1627 = vmand %vm1619, %vm1623
        %vm1628 = vcmp.ge.s32.totalorder %v268, 16
        %vm1629 = vmand %vm1624, %vm1628
        %vm1630 = vmand %vm1625, %vm1628
        %vm1631 = vmand %vm1626, %vm1628
        %vm1632 = vmand %vm1627, %vm1628
        %vm1633 = vcmp.lt.s32.totalorder %v268, 24
        %vm1634 = vmand %vm1629, %vm1633
        %vm1635 = vmand %vm1630, %vm1633
        %vm1636 = vmand %vm1631, %vm1633
        %vm1637 = vmand %vm1632, %vm1633
        %vm1638 = vmor %vm1612, %vm1634
        %vm1639 = vmor %vm1613, %vm1635
        %vm1640 = vmor %vm1614, %vm1636
        %vm1641 = vmor %vm1615, %vm1637
        %vm1642 = vcmp.ge.s32.totalorder %v266, 24
        %vm1643 = vcmp.ge.s32.totalorder %v1569, 24
        %vm1644 = vcmp.ge.s32.totalorder %v1570, 24
        %vm1645 = vcmp.ge.s32.totalorder %v1571, 24
        %vm1646 = vcmp.lt.s32.totalorder %v266, 32
        %vm1647 = vcmp.lt.s32.totalorder %v1569, 32
        %vm1648 = vcmp.lt.s32.totalorder %v1570, 32
        %vm1649 = vcmp.lt.s32.totalorder %v1571, 32
        %vm1650 = vmand %vm1642, %vm1646
        %vm1651 = vmand %vm1643, %vm1647
        %vm1652 = vmand %vm1644, %vm1648
        %vm1653 = vmand %vm1645, %vm1649
        %vm1654 = vcmp.ge.s32.totalorder %v268, 24
        %vm1655 = vmand %vm1650, %vm1654
        %vm1656 = vmand %vm1651, %vm1654
        %vm1657 = vmand %vm1652, %vm1654
        %vm1658 = vmand %vm1653, %vm1654
        %vm1659 = vcmp.lt.s32.totalorder %v268, 32
        %vm1660 = vmand %vm1655, %vm1659
        %vm1661 = vmand %vm1656, %vm1659
        %vm1662 = vmand %vm1657, %vm1659
        %vm1663 = vmand %vm1658, %vm1659
        %vm1664 = vmor %vm1638, %vm1660
        %vm1665 = vmor %vm1639, %vm1661
        %vm1666 = vmor %vm1640, %vm1662
        %vm1667 = vmor %vm1641, %vm1663
        %v1668 = vsel %vm1664, 0.0, -1e+30
        %v1669 = vsel %vm1665, 0.0, -1e+30
        %v1670 = vsel %vm1666, 0.0, -1e+30
        %v1671 = vsel %vm1667, 0.0, -1e+30
        %1672 = vrot.lane.b32.xlu0 %v1560, 96
        %v1673 = vpop.permute.xlu0 %1672
        %1674 = vrot.lane.b32.xlu0 %v1564, 96
        %v1675 = vpop.permute.xlu0 %1674
        %1676 = vrot.lane.b32.xlu0 %v1566, 96
        %v1677 = vpop.permute.xlu0 %1676
        %1678 = vrot.lane.b32.xlu0 %v1568, 96
        %v1679 = vpop.permute.xlu0 %1678
        %v1680 = vsel %vm525, %v1560, 0
        %v1682 = vsel %vm525, %v1564, 0
        %v1684 = vsel %vm525, %v1566, 0
        %v1686 = vsel %vm525, %v1568, 0
        %v1688 = vsel %vm525, %v1673, 0
        %v1690 = vsel %vm525, %v1675, 0
        %v1692 = vsel %vm525, %v1677, 0
        %v1694 = vsel %vm525, %v1679, 0
        %1696 = vmatpush.xpose.msra.mxu0 0.0
        %1697 = vmatpush.xpose.msra.mxu0 0.0
        %1698 = vmatpush.xpose.msra.mxu0 0.0
        %1699 = vmatpush.xpose.msra.mxu0 0.0
        %1700 = vmatpush.xpose.msra.mxu0 0.0
        %1701 = vmatpush.xpose.msra.mxu0 0.0
        %1702 = vmatpush.xpose.msra.mxu0 0.0
        %1703 = vmatpush.xpose.msra.mxu0 0.0
        %1704 = vmatpush.xpose.msra.mxu0 0.0
        %1705 = vmatpush.xpose.msra.mxu0 0.0
        %1706 = vmatpush.xpose.msra.mxu0 0.0
        %1707 = vmatpush.xpose.msra.mxu0 0.0
        %1708 = vmatpush.xpose.msra.mxu0 %v1694
        %1709 = vmatpush.xpose.msra.mxu0 %v1692
        %1710 = vmatpush.xpose.msra.mxu0 %v1690
        %1711 = vmatpush.xpose.msra.mxu0 %v1688
        %1712 = vmatmul.f32.gmra.mxu0 %v1680
        %v1713 = vpop.f32.mrf.mxu0
        %v1714 = vadd.f32 0.0, %v1713
        %1715 = vmatmul.f32.gmra.mxu0 %v1682
        %v1716 = vpop.f32.mrf.mxu0
        %v1717 = vadd.f32 0.0, %v1716
        %1718 = vmatmul.f32.gmra.mxu0 %v1684
        %v1719 = vpop.f32.mrf.mxu0
        %v1720 = vadd.f32 0.0, %v1719
        %1721 = vmatmul.f32.gmra.mxu0 %v1686
        %v1722 = vpop.f32.mrf.mxu0
        %v1723 = vadd.f32 0.0, %v1722
        %1724 = vdwg.mxu0
        %v1725 = vmul.f32 %v1714, 0.35355338
        %v1726 = vmul.f32 %v1717, 0.35355338
        %v1727 = vmul.f32 %v1720, 0.35355338
        %v1728 = vmul.f32 %v1723, 0.35355338
        %v1729 = vadd.f32 %v1725, %v1668
        %v1730 = vadd.f32 %v1726, %v1669
        %v1731 = vadd.f32 %v1727, %v1670
        %v1732 = vadd.f32 %v1728, %v1671
        %v1733 = vsel %vm769, %v1729, -inf
        %1734 = vmax.xlane.f32.xlu0 %v1733
        %v1735 = vpop.xlane.xlu0 %1734
        %v1736 = vsel %vm769, %v1730, -inf
        %1737 = vmax.xlane.f32.xlu0 %v1736
        %v1738 = vpop.xlane.xlu0 %1737
        %v1739 = vsel %vm769, %v1731, -inf
        %1740 = vmax.xlane.f32.xlu0 %v1739
        %v1741 = vpop.xlane.xlu0 %1740
        %v1742 = vsel %vm769, %v1732, -inf
        %1743 = vmax.xlane.f32.xlu0 %v1742
        %v1744 = vpop.xlane.xlu0 %1743
        %v1745 = vsub.f32 %v1729, %v1735
        %v1746 = vsub.f32 %v1730, %v1738
        %v1747 = vsub.f32 %v1731, %v1741
        %v1748 = vsub.f32 %v1732, %v1744
        %v1749 = vmul.f32 %v1745, 1.442695
        %v1750 = vpow.pop %v1749
        %v1751 = vmul.f32 %v1746, 1.442695
        %v1752 = vpow.pop %v1751
        %v1753 = vmul.f32 %v1747, 1.442695
        %v1754 = vpow.pop %v1753
        %v1755 = vmul.f32 %v1748, 1.442695
        %v1756 = vpow.pop %v1755
        %v1757 = vsel %vm769, %v1750, 0.0
        %1758 = vadd.xlane.f32.xlu0 %v1757
        %v1759 = vpop.xlane.xlu0 %1758
        %v1760 = vsel %vm769, %v1752, 0.0
        %1761 = vadd.xlane.f32.xlu0 %v1760
        %v1762 = vpop.xlane.xlu0 %1761
        %v1763 = vsel %vm769, %v1754, 0.0
        %1764 = vadd.xlane.f32.xlu0 %v1763
        %v1765 = vpop.xlane.xlu0 %1764
        %v1766 = vsel %vm769, %v1756, 0.0
        %1767 = vadd.xlane.f32.xlu0 %v1766
        %v1768 = vpop.xlane.xlu0 %1767
        %v1769 = vrcp.pop %v1759
        %v1770 = vrcp.pop %v1762
        %v1771 = vrcp.pop %v1765
        %v1772 = vrcp.pop %v1768
        %v1773 = vmul.f32 %v1750, %v1769
        %v1774 = vmul.f32 %v1752, %v1770
        %v1775 = vmul.f32 %v1754, %v1771
        %v1776 = vmul.f32 %v1756, %v1772
        %1777 = vrot.lane.b32.xlu0 %v1560, 64
        %v1778 = vpop.permute.xlu0 %1777
        %1779 = vrot.lane.b32.xlu0 %v1564, 64
        %v1780 = vpop.permute.xlu0 %1779
        %1781 = vrot.lane.b32.xlu0 %v1566, 64
        %v1782 = vpop.permute.xlu0 %1781
        %1783 = vrot.lane.b32.xlu0 %v1568, 64
        %v1784 = vpop.permute.xlu0 %1783
        %v1790 = vsel %vm769, %v1773, 0
        %v1793 = vsel %vm769, %v1774, 0
        %v1796 = vsel %vm769, %v1775, 0
        %v1799 = vsel %vm769, %v1776, 0
        %1801 = vmatpush.msra.mxu0 0.0
        %1802 = vmatpush.msra.mxu0 0.0
        %1803 = vmatpush.msra.mxu0 0.0
        %1804 = vmatpush.msra.mxu0 0.0
        %1805 = vmatpush.msra.mxu0 0.0
        %1806 = vmatpush.msra.mxu0 0.0
        %1807 = vmatpush.msra.mxu0 0.0
        %1808 = vmatpush.msra.mxu0 0.0
        %1809 = vmatpush.msra.mxu0 0.0
        %1810 = vmatpush.msra.mxu0 0.0
        %1811 = vmatpush.msra.mxu0 0.0
        %1812 = vmatpush.msra.mxu0 0.0
        %1813 = vmatpush.msra.mxu0 %v1784
        %1814 = vmatpush.msra.mxu0 %v1782
        %1815 = vmatpush.msra.mxu0 %v1780
        %1816 = vmatpush.msra.mxu0 %v1778
        %1817 = vmatmul.f32.gmra.mxu0 %v1790
        %v1818 = vpop.f32.mrf.mxu0
        %v1819 = vadd.f32 0.0, %v1818
        %1820 = vmatmul.f32.gmra.mxu0 %v1793
        %v1821 = vpop.f32.mrf.mxu0
        %v1822 = vadd.f32 0.0, %v1821
        %1823 = vmatmul.f32.gmra.mxu0 %v1796
        %v1824 = vpop.f32.mrf.mxu0
        %v1825 = vadd.f32 0.0, %v1824
        %1826 = vmatmul.f32.gmra.mxu0 %v1799
        %v1827 = vpop.f32.mrf.mxu0
        %v1828 = vadd.f32 0.0, %v1827
        %1829 = vdwg.mxu0
        %1831 = vrot.lane.b32.xlu0 %v1822, 8
        %v1832 = vpop.permute.xlu0 %1831
        %1835 = vrot.lane.b32.xlu0 %v1825, 16
        %v1836 = vpop.permute.xlu0 %1835
        %1839 = vrot.lane.b32.xlu0 %v1828, 24
        %v1840 = vpop.permute.xlu0 %1839
        %v1842 = vsel %vm525, %v1819, %v1832
        %v1843 = vsel %vm924, %v1842, %v1836
        %v1844 = vsel %vm926, %v1843, %v1840
        %v1845 = vld [vmem:[%s4 + $0x470] sm:$0xff]
        %v1846 = vld [vmem:[%s4 + $0x478] sm:$0xff]
        %v1847 = vld [vmem:[%s4 + $0x480] sm:$0xff]
        %v1848 = vld [vmem:[%s4 + $0x488] sm:$0xff]
        %v1850 = vsel %vm769, %v1844, 0
        %1852 = vmatpush.msra.mxu0 0.0
        %1853 = vmatpush.msra.mxu0 0.0
        %1854 = vmatpush.msra.mxu0 0.0
        %1855 = vmatpush.msra.mxu0 0.0
        %1856 = vmatpush.msra.mxu0 0.0
        %1857 = vmatpush.msra.mxu0 0.0
        %1858 = vmatpush.msra.mxu0 0.0
        %1859 = vmatpush.msra.mxu0 0.0
        %1860 = vmatpush.msra.mxu0 0.0
        %1861 = vmatpush.msra.mxu0 0.0
        %1862 = vmatpush.msra.mxu0 0.0
        %1863 = vmatpush.msra.mxu0 0.0
        %1864 = vmatpush.msra.mxu0 %v1848
        %1865 = vmatpush.msra.mxu0 %v1847
        %1866 = vmatpush.msra.mxu0 %v1846
        %1867 = vmatpush.msra.mxu0 %v1845
        %1868 = vmatmul.f32.gmra.mxu0 %v1850
        %v1869 = vpop.f32.mrf.mxu0
        %v1870 = vadd.f32 0.0, %v1869
        %1871 = vdwg.mxu0
        %v1872 = vadd.f32 %v1504, %v1870
        %v1873 = vld [vmem:[%s4 + $0x490] sm:$0x1]
        %v1874 = vperm.slane %v1873, 0
        %v1875 = vadd.f32 %v1872, %v1874
        %v1876 = vld [vmem:[%s4 + $0x498] sm:$0x1]
        %v1877 = vld [vmem:[%s4 + $0x4a0] sm:$0x1]
        %v1878 = vsel %vm769, %v1875, 0.0
        %1879 = vadd.xlane.f32.xlu0 %v1878
        %v1880 = vpop.xlane.xlu0 %1879
        %v1881 = vmul.f32 %v1880, %v739
        %v1882 = vsub.f32 %v1875, %v1881
        %v1883 = vmul.f32 %v1882, %v1882
        %v1884 = vsel %vm769, %v1883, 0.0
        %1885 = vadd.xlane.f32.xlu0 %v1884
        %v1886 = vpop.xlane.xlu0 %1885
        %v1887 = vmul.f32 %v1886, %v739
        %v1888 = vadd.f32 %v1887, 1e-06
        %v1889 = vrsqrt.pop %v1888
        %v1890 = vmul.f32 %v1889, %v1888
        %v1891 = vmul.f32 %v1890, %v1889
        %v1892 = vmul.f32 0.5, %v1891
        %v1893 = vsub.f32 1.5, %v1892
        %v1894 = vmul.f32 %v1889, %v1893
        %vm1895 = vweird.f32 %v1888
        %vm1896 = vweird.f32 %v1889
        %vm1897 = vmor %vm1895, %vm1896
        %v1898 = vsel %vm1897, %v1889, %v1894
        %v1899 = vmul.f32 %v1882, %v1898
        %v1900 = vperm.slane %v1876, 0
        %v1901 = vmul.f32 %v1899, %v1900
        %v1902 = vperm.slane %v1877, 0
        %v1903 = vadd.f32 %v1901, %v1902
        %v1904 = vld [vmem:[%s4 + $0x4a8] sm:$0xff]
        %v1905 = vld [vmem:[%s4 + $0x4b0] sm:$0xff]
        %v1906 = vld [vmem:[%s4 + $0x4b8] sm:$0xff]
        %v1907 = vld [vmem:[%s4 + $0x4c0] sm:$0xff]
        %v1908 = vld [vmem:[%s4 + $0x4c8] sm:$0x1]
        %v1909 = vperm.slane %v1908, 0
        %v1911 = vsel %vm769, %v1903, 0
        %1913 = vmatpush.msra.mxu0 0.0
        %1914 = vmatpush.msra.mxu0 0.0
        %1915 = vmatpush.msra.mxu0 0.0
        %1916 = vmatpush.msra.mxu0 0.0
        %1917 = vmatpush.msra.mxu0 0.0
        %1918 = vmatpush.msra.mxu0 0.0
        %1919 = vmatpush.msra.mxu0 0.0
        %1920 = vmatpush.msra.mxu0 0.0
        %1921 = vmatpush.msra.mxu0 0.0
        %1922 = vmatpush.msra.mxu0 0.0
        %1923 = vmatpush.msra.mxu0 0.0
        %1924 = vmatpush.msra.mxu0 0.0
        %1925 = vmatpush.msra.mxu0 %v1907
        %1926 = vmatpush.msra.mxu0 %v1906
        %1927 = vmatpush.msra.mxu0 %v1905
        %1928 = vmatpush.msra.mxu0 %v1904
        %1929 = vmatmul.f32.gmra.mxu0 %v1911
        %v1930 = vpop.f32.mrf.mxu0
        %v1931 = vadd.f32 %v1909, %v1930
        %1932 = vdwg.mxu0
        %v1933 = vmul.f32 %v1931, %v1931
        %v1934 = vmul.f32 %v1931, %v1933
        %v1935 = vmul.f32 %v1934, 0.044715
        %v1936 = vadd.f32 %v1931, %v1935
        %v1937 = vmul.f32 %v1936, 0.7978846
        %v1938 = vtanh.pop %v1937
        %v1939 = vadd.f32 %v1938, 1.0
        %v1940 = vmul.f32 %v1939, 0.5
        %v1941 = vmul.f32 %v1931, %v1940
        %v1942 = vld [vmem:[%s4 + $0x4d0] sm:$0xff]
        %v1943 = vld [vmem:[%s4 + $0x4d8] sm:$0xff]
        %v1944 = vld [vmem:[%s4 + $0x4e0] sm:$0xff]
        %v1945 = vld [vmem:[%s4 + $0x4e8] sm:$0xff]
        %v1946 = vld [vmem:[%s4 + $0x4f0] sm:$0xff]
        %v1947 = vld [vmem:[%s4 + $0x4f8] sm:$0xff]
        %v1948 = vld [vmem:[%s4 + $0x500] sm:$0xff]
        %v1949 = vld [vmem:[%s4 + $0x508] sm:$0xff]
        %v1950 = vld [vmem:[%s4 + $0x510] sm:$0xff]
        %v1951 = vld [vmem:[%s4 + $0x518] sm:$0xff]
        %v1952 = vld [vmem:[%s4 + $0x520] sm:$0xff]
        %v1953 = vld [vmem:[%s4 + $0x528] sm:$0xff]
        %v1954 = vld [vmem:[%s4 + $0x530] sm:$0xff]
        %v1955 = vld [vmem:[%s4 + $0x538] sm:$0xff]
        %v1956 = vld [vmem:[%s4 + $0x540] sm:$0xff]
        %v1957 = vld [vmem:[%s4 + $0x548] sm:$0xff]
        %v1958 = vld [vmem:[%s4 + $0x550] sm:$0x1]
        %v1959 = vperm.slane %v1958, 0
        %1960 = vmatpush.msra.mxu0 %v1957
        %1961 = vmatpush.msra.mxu0 %v1956
        %1962 = vmatpush.msra.mxu0 %v1955
        %1963 = vmatpush.msra.mxu0 %v1954
        %1964 = vmatpush.msra.mxu0 %v1953
        %1965 = vmatpush.msra.mxu0 %v1952
        %1966 = vmatpush.msra.mxu0 %v1951
        %1967 = vmatpush.msra.mxu0 %v1950
        %1968 = vmatpush.msra.mxu0 %v1949
        %1969 = vmatpush.msra.mxu0 %v1948
        %1970 = vmatpush.msra.mxu0 %v1947
        %1971 = vmatpush.msra.mxu0 %v1946
        %1972 = vmatpush.msra.mxu0 %v1945
        %1973 = vmatpush.msra.mxu0 %v1944
        %1974 = vmatpush.msra.mxu0 %v1943
        %1975 = vmatpush.msra.mxu0 %v1942
        %1976 = vmatmul.f32.gmra.mxu0 %v1941
        %v1977 = vpop.f32.mrf.mxu0
        %v1978 = vadd.f32 %v1959, %v1977
        %1979 = vdwg.mxu0
        %v1980 = vadd.f32 %v1875, %v1978
        %v1981 = vld [vmem:[%s4 + $0x558] sm:$0x1]
        %v1982 = vld [vmem:[%s4 + $0x560] sm:$0x1]
        %v1983 = vsel %vm769, %v1980, 0.0
        %1984 = vadd.xlane.f32.xlu0 %v1983
        %v1985 = vpop.xlane.xlu0 %1984
        %v1986 = vmul.f32 %v1985, %v739
        %v1987 = vsub.f32 %v1980, %v1986
        %v1988 = vmul.f32 %v1987, %v1987
        %v1989 = vsel %vm769, %v1988, 0.0
        %1990 = vadd.xlane.f32.xlu0 %v1989
        %v1991 = vpop.xlane.xlu0 %1990
        %v1992 = vmul.f32 %v1991, %v739
        %v1993 = vadd.f32 %v1992, 1e-06
        %v1994 = vrsqrt.pop %v1993
        %v1995 = vmul.f32 %v1994, %v1993
        %v1996 = vmul.f32 %v1995, %v1994
        %v1997 = vmul.f32 0.5, %v1996
        %v1998 = vsub.f32 1.5, %v1997
        %v1999 = vmul.f32 %v1994, %v1998
        %vm2000 = vweird.f32 %v1993
        %vm2001 = vweird.f32 %v1994
        %vm2002 = vmor %vm2000, %vm2001
        %v2003 = vsel %vm2002, %v1994, %v1999
        %v2004 = vmul.f32 %v1987, %v2003
        %v2005 = vperm.slane %v1981, 0
        %v2006 = vmul.f32 %v2004, %v2005
        %v2007 = vperm.slane %v1982, 0
        %v2008 = vadd.f32 %v2006, %v2007
        %v2009 = vld [vmem:[%s3 + $0x48] sm:$0xff]
        %v2010 = vld [vmem:[%s3 + $0x50] sm:$0xff]
        %v2011 = vld [vmem:[%s3 + $0x58] sm:$0xff]
        %v2012 = vld [vmem:[%s3 + $0x60] sm:$0xff]
        %v2013 = vld [vmem:[%s3 + $0x68] sm:$0xff]
        %v2014 = vld [vmem:[%s3 + $0x70] sm:$0xff]
        %v2015 = vld [vmem:[%s3 + $0x78] sm:$0xff]
        %v2016 = vld [vmem:[%s3 + $0x80] sm:$0xff]
        %v2017 = vld [vmem:[%s3 + $0x88] sm:$0xff]
        %v2018 = vld [vmem:[%s3 + $0x90] sm:$0xff]
        %v2019 = vld [vmem:[%s3 + $0x98] sm:$0xff]
        %v2020 = vld [vmem:[%s3 + $0xa0] sm:$0xff]
        %s2021 = scalar_lea.vmem %s3, 168
        %v2022 = vld [vmem:[%s2021] ss:$8 sm:$0x7]
        %v2024 = vperm.slane %v2022, 0
        %v2025 = vperm.slane %v2022, 1
        %v2026 = vperm.slane %v2022, 2
        %v2031 = vsel %vm769, %v2008, 0
        %2033 = vmatpush.msra.mxu0 0.0
        %2034 = vmatpush.msra.mxu0 0.0
        %2035 = vmatpush.msra.mxu0 0.0
        %2036 = vmatpush.msra.mxu0 0.0
        %2037 = vmatpush.msra.mxu0 0.0
        %2038 = vmatpush.msra.mxu0 0.0
        %2039 = vmatpush.msra.mxu0 0.0
        %2040 = vmatpush.msra.mxu0 0.0
        %2041 = vmatpush.msra.mxu0 0.0
        %2042 = vmatpush.msra.mxu0 0.0
        %2043 = vmatpush.msra.mxu0 0.0
        %2044 = vmatpush.msra.mxu0 0.0
        %2045 = vmatpush.msra.mxu0 %v2018
        %2046 = vmatpush.msra.mxu0 %v2015
        %2047 = vmatpush.msra.mxu0 %v2012
        %2048 = vmatpush.msra.mxu0 %v2009
        %2049 = vmatmul.f32.gmra.mxu0 %v2031
        %v2050 = vpop.f32.mrf.mxu0
        %v2051 = vadd.f32 %v2024, %v2050
        %2052 = vdwg.mxu0
        %2053 = vmatpush.msra.mxu0 0.0
        %2054 = vmatpush.msra.mxu0 0.0
        %2055 = vmatpush.msra.mxu0 0.0
        %2056 = vmatpush.msra.mxu0 0.0
        %2057 = vmatpush.msra.mxu0 0.0
        %2058 = vmatpush.msra.mxu0 0.0
        %2059 = vmatpush.msra.mxu0 0.0
        %2060 = vmatpush.msra.mxu0 0.0
        %2061 = vmatpush.msra.mxu0 0.0
        %2062 = vmatpush.msra.mxu0 0.0
        %2063 = vmatpush.msra.mxu0 0.0
        %2064 = vmatpush.msra.mxu0 0.0
        %2065 = vmatpush.msra.mxu0 %v2019
        %2066 = vmatpush.msra.mxu0 %v2016
        %2067 = vmatpush.msra.mxu0 %v2013
        %2068 = vmatpush.msra.mxu0 %v2010
        %2069 = vmatmul.f32.gmra.mxu0 %v2031
        %v2070 = vpop.f32.mrf.mxu0
        %v2071 = vadd.f32 %v2025, %v2070
        %2072 = vdwg.mxu0
        %2073 = vmatpush.msra.mxu0 0.0
        %2074 = vmatpush.msra.mxu0 0.0
        %2075 = vmatpush.msra.mxu0 0.0
        %2076 = vmatpush.msra.mxu0 0.0
        %2077 = vmatpush.msra.mxu0 0.0
        %2078 = vmatpush.msra.mxu0 0.0
        %2079 = vmatpush.msra.mxu0 0.0
        %2080 = vmatpush.msra.mxu0 0.0
        %2081 = vmatpush.msra.mxu0 0.0
        %2082 = vmatpush.msra.mxu0 0.0
        %2083 = vmatpush.msra.mxu0 0.0
        %2084 = vmatpush.msra.mxu0 0.0
        %2085 = vmatpush.msra.mxu0 %v2020
        %2086 = vmatpush.msra.mxu0 %v2017
        %2087 = vmatpush.msra.mxu0 %v2014
        %2088 = vmatpush.msra.mxu0 %v2011
        %2089 = vmatmul.f32.gmra.mxu0 %v2031
        %v2090 = vpop.f32.mrf.mxu0
        %v2091 = vadd.f32 %v2026, %v2090
        %2092 = vdwg.mxu0
        %2093 = vmatpush.msra.mxu0 0.0
        %2094 = vmatpush.msra.mxu0 0.0
        %2095 = vmatpush.msra.mxu0 0.0
        %2096 = vmatpush.msra.mxu0 0.0
        %2097 = vmatpush.msra.mxu0 0.0
        %2098 = vmatpush.msra.mxu0 0.0
        %2099 = vmatpush.msra.mxu0 0.0
        %2100 = vmatpush.msra.mxu0 0.0
        %2101 = vmatpush.msra.mxu0 0.0
        %2102 = vmatpush.msra.mxu0 0.0
        %2103 = vmatpush.msra.mxu0 0.0
        %2104 = vmatpush.msra.mxu0 0.0
        %2105 = vmatpush.msra.mxu0 0.0
        %2106 = vmatpush.msra.mxu0 0.0
        %2107 = vmatpush.msra.mxu0 0.0
        %2108 = vmatpush.msra.mxu0 %v2051
        %2109 = vmatmul.f32.gmra.mxu0 %v527
        %v2110 = vpop.f32.mrf.mxu0
        %v2111 = vadd.f32 0.0, %v2110
        %2112 = vdwg.mxu0
        %2113 = vmatpush.msra.mxu0 0.0
        %2114 = vmatpush.msra.mxu0 0.0
        %2115 = vmatpush.msra.mxu0 0.0
        %2116 = vmatpush.msra.mxu0 0.0
        %2117 = vmatpush.msra.mxu0 0.0
        %2118 = vmatpush.msra.mxu0 0.0
        %2119 = vmatpush.msra.mxu0 0.0
        %2120 = vmatpush.msra.mxu0 0.0
        %2121 = vmatpush.msra.mxu0 0.0
        %2122 = vmatpush.msra.mxu0 0.0
        %2123 = vmatpush.msra.mxu0 0.0
        %2124 = vmatpush.msra.mxu0 0.0
        %2125 = vmatpush.msra.mxu0 0.0
        %2126 = vmatpush.msra.mxu0 0.0
        %2127 = vmatpush.msra.mxu0 0.0
        %2128 = vmatpush.msra.mxu0 %v2071
        %2129 = vmatmul.f32.gmra.mxu0 %v527
        %v2130 = vpop.f32.mrf.mxu0
        %v2131 = vadd.f32 0.0, %v2130
        %2132 = vdwg.mxu0
        %2133 = vmatpush.msra.mxu0 0.0
        %2134 = vmatpush.msra.mxu0 0.0
        %2135 = vmatpush.msra.mxu0 0.0
        %2136 = vmatpush.msra.mxu0 0.0
        %2137 = vmatpush.msra.mxu0 0.0
        %2138 = vmatpush.msra.mxu0 0.0
        %2139 = vmatpush.msra.mxu0 0.0
        %2140 = vmatpush.msra.mxu0 0.0
        %2141 = vmatpush.msra.mxu0 0.0
        %2142 = vmatpush.msra.mxu0 0.0
        %2143 = vmatpush.msra.mxu0 0.0
        %2144 = vmatpush.msra.mxu0 0.0
        %2145 = vmatpush.msra.mxu0 0.0
        %2146 = vmatpush.msra.mxu0 0.0
        %2147 = vmatpush.msra.mxu0 0.0
        %2148 = vmatpush.msra.mxu0 %v2091
        %2149 = vmatmul.f32.gmra.mxu0 %v527
        %v2150 = vpop.f32.mrf.mxu0
        %v2151 = vadd.f32 0.0, %v2150
        %2152 = vdwg.mxu0
        %2153 = vst [vmem:[%s261] sm:$0x3f] %v2111
        %2154 = vst [vmem:[%s261 + $0x8] sm:$0x3f] %v2131
        %2155 = vst [vmem:[%s261 + $0x10] sm:$0x3f] %v2151
        %p2156 = scmp.lt.s32.totalorder %s35, 1
        %s2157 = scalar_select %p2156, %s35, 1
        %s2158 = smul.addr %s2157, 3
        %s2159 = smul.addr %s2158, 8
        %s2160 = scalar_lea.vmem %s5, %s2159
        %p2161 = scmp.lt.s32.totalorder %s35, 1
        %s2162 = scalar_select %p2161, %s35, 1
        %s2163 = smul.addr %s2162, 3
        %s2164 = smul.addr %s2163, 8
        %s2165 = scalar_lea.vmem %s6, %s2164
        %s2166 = sand.u32 %s163, 1
        %s2167 = scalar_lea.sflag [#allocation6], %s2166
        %s2168 = sand.u32 %s163, 1
        %s2169 = scalar_lea.vmem [#allocation5], %s2168
        // Predicated region
        $region33: #{model_forward.1} parent=31 // pred_check
          %p2170 = pneg %p121
        $region34: #{model_forward.1} parent=31 // pred_check_branch
          %2172 = sbr.rel (%p2170) target = $region36
        $region35: #{model_forward.1} parent=31 // pred_region
          _
        $region36: #{model_forward.1} parent=31 // pred_fallthru
          _
        // Predicated region
        $region37: #{model_forward.1} parent=31 // pred_check
          %p2173 = pneg %p147
        $region38: #{model_forward.1} parent=31 // pred_check_branch
          %2175 = sbr.rel (%p2173) target = $region40
        $region39: #{model_forward.1} parent=31 // pred_region
          _
        $region40: #{model_forward.1} parent=31 // pred_fallthru
          _
        // Predicated region
        $region41: #{model_forward.1} parent=31 // pred_check
          %p2176 = pneg %p173
        $region42: #{model_forward.1} parent=31 // pred_check_branch
          %2178 = sbr.rel (%p2176) target = $region44
        $region43: #{model_forward.1} parent=31 // pred_region
          %2180 = vsyncadd %s2167, 0
          %s2181 = scalar_lea.hbm %s7, %s35
          %s2183 = sshll.u32 %s2169, 4
          %s2184 = int_to_ptr.vmem [resolvable:$true] %s2183
          %s2185 = sshll.u32 %s2181, 4
          %s2186 = int_to_ptr.hbm [resolvable:$true] %s2185
          %2188 = dma.vmem_to_hbm [thread:$0]  %s2184, 16, %s2186, %s2167
        $region44: #{model_forward.1} parent=31 // pred_fallthru
          _
      $region32: #{model_forward.1} parent=5 // pred_fallthru
        _
      %p2189 = scmp.le.s32.totalorder 2, %s30
      // Predicated region
      $region45: #{model_forward.1} parent=5 // pred_check
        %p2190 = pneg %p2189
      $region46: #{model_forward.1} parent=5 // pred_check_branch
        %2192 = sbr.rel (%p2190) target = $region48
      $region47: #{model_forward.1} parent=5 // pred_region
        %s2193 = ssub.s32 %s30, 2
        // Predicated region
        $region49: #{model_forward.1} parent=47 // pred_check
          %p2194 = pneg %p127
        $region50: #{model_forward.1} parent=47 // pred_check_branch
          %2196 = sbr.rel (%p2194) target = $region52
        $region51: #{model_forward.1} parent=47 // pred_region
          %p2197 = scmp.lt.s32.totalorder %s36, 1
          %s2198 = scalar_select %p2197, %s36, 1
          %s2199 = smul.addr %s2198, 3
          %s2200 = smul.addr %s2199, 8
          %s2201 = scalar_lea.vmem %s5, %s2200
        $region52: #{model_forward.1} parent=47 // pred_fallthru
          _
        // Predicated region
        $region53: #{model_forward.1} parent=47 // pred_check
          %p2202 = pneg %p153
        $region54: #{model_forward.1} parent=47 // pred_check_branch
          %2204 = sbr.rel (%p2202) target = $region56
        $region55: #{model_forward.1} parent=47 // pred_region
          %p2205 = scmp.lt.s32.totalorder %s36, 1
          %s2206 = scalar_select %p2205, %s36, 1
          %s2207 = smul.addr %s2206, 3
          %s2208 = smul.addr %s2207, 8
          %s2209 = scalar_lea.vmem %s6, %s2208
        $region56: #{model_forward.1} parent=47 // pred_fallthru
          _
        // Predicated region
        $region57: #{model_forward.1} parent=47 // pred_check
          %p2210 = pneg %p179
        $region58: #{model_forward.1} parent=47 // pred_check_branch
          %2212 = sbr.rel (%p2210) target = $region60
        $region59: #{model_forward.1} parent=47 // pred_region
          %s2213 = sand.u32 %s164, 1
          %s2214 = scalar_lea.sflag [#allocation6], %s2213
          %s2215 = sand.u32 %s164, 1
          %s2216 = scalar_lea.vmem [#allocation5], %s2215
          %2218 = dma.done %s2214, 16
        $region60: #{model_forward.1} parent=47 // pred_fallthru
          _
      $region48: #{model_forward.1} parent=5 // pred_fallthru
        _
    $region6: #{model_forward.1} parent=1 // loop_footer
      %s34 = sadd.s32 1, %s30
    $region7: #{model_forward.1} parent=1 // loop_footer_branch
      %29 = sbr.rel target = $region3
    $region8: #{model_forward.1} parent=1 // loop_exit
      _
    %2219 = vsyncpa [#allocation6], 1
    %s2220 = scalar_lea.sflag [#allocation6], 1
    %2221 = vsyncpa %s2220, 1

</llo_original>
